<compile_context>
chip_gen: v7x
topology: tpu7x:2x2x1
jax: 0.10.0
libtpu: 0.0.40
codegen_flags: <defaults>
</compile_context>

<pallas_src>
import numpy as np

import jax
import jax.numpy as jnp
from jax import lax
from jax.experimental import pallas as pl
from jax.experimental.pallas import tpu as pltpu


# ----------------------------------------------------------------------------
# fixed layout constants for the 28x28 single-channel input
# ----------------------------------------------------------------------------
_PH1, _PW1 = 15, 16          # conv1 pooled grid; W padded 15 -> 16 (col 15 garbage)
_Q1 = _PH1 * _PW1            # 240 flattened conv1-pooled positions (mult of 8)
_NTAP = 16                   # 4x4 phase-shifted input taps per pooled position
_C1 = 64                     # conv1 channels
_C2 = 32                     # conv2 channels
_QP = 200                    # per-kh patch rows (mult of 8, covers _Q2 + 2)
_Q2 = 192                    # wrapped conv2 rows kept (>= 11*16+11+1, mult of 8)
_P2 = 36                     # 6x6 pooled conv2 positions
_P2PAD = 40                  # padded pooled rows (mult of 8)
_NSEL = 4 * _P2PAD           # 160 one-hot selection rows (4 pool candidates x 40)


# ----------------------------------------------------------------------------
# helpers
# ----------------------------------------------------------------------------
def _batch_blocks(batch, cap):
    """Pick a batch block size and the padded batch size it implies."""
    bb = min(cap, batch)
    padded = ((batch + bb - 1) // bb) * bb
    return bb, padded


def _pad_batch(x, padded):
    if x.shape[0] == padded:
        return x
    pad = [(0, padded - x.shape[0])] + [(0, 0)] * (x.ndim - 1)
    return jnp.pad(x, pad)


def _conv1_phase_weights(w1_hwio):
    """Fold the 3x3 taps and the 2x2 pooling phase (di, dj) into one (16, 256)
    RHS: column block d*64 + cout holds phase d = di*2 + dj."""
    w4 = jnp.zeros((2, 2, 4, 4, _C1), jnp.float32)
    for di in range(2):
        for dj in range(2):
            w4 = w4.at[di, dj, di:di + 3, dj:dj + 3, :].set(w1_hwio[:, :, 0, :])
    return jnp.transpose(w4.reshape(4, _NTAP, _C1), (1, 0, 2)).reshape(_NTAP, 4 * _C1)


def _conv2_pool_selection():
    """One-hot pooling-selection rows, built once at trace time (numpy).
    Group g = pool candidate offset {0, 1, 16, 17}; row p = pooled (ph, pw);
    column q = ph*32 + pw*2 + offset in the 16-wide flattened conv2 grid."""
    sel = np.zeros((4, _P2PAD, _Q2), np.float32)
    p = np.arange(_P2)
    base = (p // 6) * (2 * _PW1) + (p % 6) * 2
    for g, off in enumerate((0, 1, _PW1, _PW1 + 1)):
        sel[g, p, base + off] = 1.0
    return jnp.asarray(sel.reshape(_NSEL, _Q2))


# ----------------------------------------------------------------------------
# fused conv1 + ReLU + pool + conv2 + ReLU + pool kernel
# ----------------------------------------------------------------------------
def _conv_stack_kernel(pmat_ref, w1_ref, b1_ref, w2_ref, b2_ref, sel_ref, o_ref):
    """pmat_ref: (bb, 240, 16)   4x4 phase-shifted input taps per pooled px
    w1_ref:   (16, 256)        conv1 taps fused with the 4 pooling phases
    b1_ref:   (1, 64)
    w2_ref:   (3, 64, 96)      conv2 weights, kw folded into the N dim
    b2_ref:   (1, 32)
    sel_ref:  (160, 192)       one-hot 2x2-pool selection rows
    o_ref:    (bb, 40, 32)     pooled conv2 features (rows 36..39 are padding)
    """
    bb = pmat_ref.shape[0]

    # --- conv1 (3x3, pad=2) + ReLU + 2x2 maxpool -----------------------------
    # One stationary-RHS matmul with batch collapsed into M (240 % 8 == 0, so
    # the reshape is layout preserving).
    x2 = pmat_ref[...].reshape(bb * _Q1, _NTAP)
    z = jnp.dot(x2, w1_ref[...], preferred_element_type=jnp.float32)  # (bb*240, 256)
    # phase max as a tree over 128/64-lane groups (one misaligned lane slice)
    m = jnp.maximum(z[:, :128], z[:, 128:])
    h1 = jnp.maximum(m[:, :64], m[:, 64:])
    # phase-uniform bias + monotone ReLU commute with the phase max
    h1 = jnp.maximum(h1 + b1_ref[...], 0.0)
    h1 = h1.reshape(bb, _Q1, _C1)      # 15x16 grid per image; col 15 is garbage

    # --- conv2 (3x3, valid) + ReLU + 2x2 maxpool -----------------------------
    # kh taps are sublane-aligned slices (offsets 0/16/32); kw is folded into
    # the matmul N dim and recombined below with two shifted adds.
    fcat = None
    for kh in range(3):
        patch = h1[:, kh * _PW1: kh * _PW1 + _QP, :].reshape(bb * _QP, _C1)
        t = jnp.dot(patch, w2_ref[kh], preferred_element_type=jnp.float32)
        fcat = t if fcat is None else fcat + t
    fcat = fcat.reshape(bb, _QP, 3 * _C2)
    conv = (fcat[:, 0:_Q2, 0:_C2]
            + fcat[:, 1:1 + _Q2, _C2:2 * _C2]
            + fcat[:, 2:2 + _Q2, 2 * _C2:3 * _C2])                 # (bb, 192, 32)
    y = jnp.maximum(conv + b2_ref[...], 0.0)
    # rows whose w-coordinate wraps (or touch the padded col 15) are finite
    # garbage and are never picked by the one-hot selection below.

    # 2x2 maxpool: one selection matmul per image, then a tree max over the 4
    # candidate groups (sublane offsets 0/40/80/120, all aligned).
    selb = jnp.broadcast_to(sel_ref[...], (bb, _NSEL, _Q2))
    cand = jnp.einsum("bpq,bqc->bpc", selb, y,
                      preferred_element_type=jnp.float32)          # (bb, 160, 32)
    pooled = jnp.maximum(
        jnp.maximum(cand[:, 0:_P2PAD], cand[:, _P2PAD:2 * _P2PAD]),
        jnp.maximum(cand[:, 2 * _P2PAD:3 * _P2PAD], cand[:, 3 * _P2PAD:4 * _P2PAD]))
    o_ref[...] = pooled.astype(o_ref.dtype)


def conv_stack(x_bhw, w1_hwio, b1, w2_hwio, b2, *, block_b=32):
    """Fused conv1->ReLU->pool->conv2->ReLU->pool. x: (B, 28, 28).
    Returns pooled features (B, 36, 32) flattened in (h, w) row-major order."""
    B = x_bhw.shape[0]

    # TODO(synk): the zero-pad + 2x2-phase im2col stays in XLA -- pure layout
    # plumbing (~15 KB/image) feeding the single fused conv kernel.
    xp = jnp.pad(x_bhw.astype(jnp.float32), ((0, 0), (2, 2), (2, 4)))   # (B, 32, 34)
    planes = [xp[:, a:a + 2 * _PH1 - 1:2, c:c + 2 * _PW1 - 1:2]
              for a in range(4) for c in range(4)]                       # each (B,15,16)
    pmat = jnp.stack(planes, axis=-1).reshape(B, _Q1, _NTAP)             # (B, 240, 16)

    w1f = _conv1_phase_weights(w1_hwio.astype(jnp.float32))              # (16, 256)
    # (KH, KW, Cin, Cout) -> (KH, Cin, KW*Cout): kw folded into the N dim
    w2c = jnp.transpose(w2_hwio.astype(jnp.float32),
                        (0, 2, 1, 3)).reshape(3, _C1, 3 * _C2)           # (3, 64, 96)
    sel = _conv2_pool_selection()                                        # (160, 192)

    bb, Bp = _batch_blocks(B, block_b)
    pmat = _pad_batch(pmat, Bp)

    flops = 2 * Bp * (_Q1 * _NTAP * 4 * _C1
                      + 3 * _QP * _C1 * 3 * _C2
                      + _NSEL * _Q2 * _C2)
    bytes_accessed = (pmat.size + Bp * _P2PAD * _C2
                      + w1f.size + w2c.size + sel.size + _C1 + _C2) * 4

    out = pl.pallas_call(
        _conv_stack_kernel,
        out_shape=jax.ShapeDtypeStruct((Bp, _P2PAD, _C2), jnp.float32),
        grid=(Bp // bb,),
        in_specs=[
            pl.BlockSpec((bb, _Q1, _NTAP), lambda i: (i, 0, 0)),
            pl.BlockSpec((_NTAP, 4 * _C1), lambda i: (0, 0)),
            pl.BlockSpec((1, _C1), lambda i: (0, 0)),
            pl.BlockSpec((3, _C1, 3 * _C2), lambda i: (0, 0, 0)),
            pl.BlockSpec((1, _C2), lambda i: (0, 0)),
            pl.BlockSpec((_NSEL, _Q2), lambda i: (0, 0)),
        ],
        out_specs=pl.BlockSpec((bb, _P2PAD, _C2), lambda i: (i, 0, 0)),
        compiler_params=pltpu.CompilerParams(
            dimension_semantics=("parallel",),
            vmem_limit_bytes=48 * 1024 * 1024),
        cost_estimate=pl.CostEstimate(flops=flops, transcendentals=0,
                                      bytes_accessed=bytes_accessed),
    )(pmat, w1f, b1.reshape(1, _C1).astype(jnp.float32),
      w2c, b2.reshape(1, _C2).astype(jnp.float32), sel)
    return out[:B, :_P2, :]


# ----------------------------------------------------------------------------
# fc1 + ReLU + fc3 + log_softmax, fused
# ----------------------------------------------------------------------------
def _fc_kernel(x_ref, w1_ref, b1_ref, w3_ref, b3_ref, o_ref):
    h = jnp.dot(x_ref[...], w1_ref[...], preferred_element_type=jnp.float32)
    h = jnp.maximum(h + b1_ref[...], 0.0)
    y = jnp.dot(h, w3_ref[...], preferred_element_type=jnp.float32) + b3_ref[...]
    m = jnp.max(y, axis=-1, keepdims=True)
    z = y - m
    lse = jnp.log(jnp.sum(jnp.exp(z), axis=-1, keepdims=True))
    o_ref[...] = (z - lse).astype(o_ref.dtype)


def fc_head(x, w1_io, b1, w3_io, b3, *, block_b=256):
    # TODO(synk): folding this into the conv kernel needs an in-kernel
    # (pos, chan)->lane flatten relayout; the (B, 1152) hop through XLA costs
    # only ~4.6 KB/image so it is kept as a second fused kernel.
    B, Nin = x.shape
    N1, Nout = w1_io.shape[1], w3_io.shape[1]
    bb, Bp = _batch_blocks(B, block_b)
    xp = _pad_batch(x.astype(jnp.float32), Bp)
    flops = 2 * Bp * (Nin * N1 + N1 * Nout)
    bytes_accessed = (Bp * (Nin + Nout) + Nin * N1 + N1 * Nout + N1 + Nout) * 4
    out = pl.pallas_call(
        _fc_kernel,
        out_shape=jax.ShapeDtypeStruct((Bp, Nout), jnp.float32),
        grid=(Bp // bb,),
        in_specs=[
            pl.BlockSpec((bb, Nin), lambda i: (i, 0)),
            pl.BlockSpec((Nin, N1), lambda i: (0, 0)),
            pl.BlockSpec((1, N1), lambda i: (0, 0)),
            pl.BlockSpec((N1, Nout), lambda i: (0, 0)),
            pl.BlockSpec((1, Nout), lambda i: (0, 0)),
        ],
        out_specs=pl.BlockSpec((bb, Nout), lambda i: (i, 0)),
        compiler_params=pltpu.CompilerParams(
            dimension_semantics=("parallel",),
            vmem_limit_bytes=48 * 1024 * 1024),
        cost_estimate=pl.CostEstimate(flops=flops, transcendentals=Bp * Nout,
                                      bytes_accessed=bytes_accessed),
    )(xp, w1_io.astype(jnp.float32), b1.reshape(1, N1).astype(jnp.float32),
      w3_io.astype(jnp.float32), b3.reshape(1, Nout).astype(jnp.float32))
    return out[:B]


# ----------------------------------------------------------------------------
# parameters
# ----------------------------------------------------------------------------
def init_params(key):
    ks = jax.random.split(key, 8)

    def nrm(k, shape, scale):
        return scale * jax.random.normal(k, shape, dtype=jnp.float32)

    # Generated in PyTorch-native shapes (OIHW conv, [out,in] linear with a
    # (C,H,W) flatten), then converted once to the kernel layouts.
    conv1_w = nrm(ks[0], (64, 1, 3, 3), 0.10)
    conv1_b = nrm(ks[1], (64,), 0.10)
    conv2_w = nrm(ks[2], (32, 64, 3, 3), 0.05)
    conv2_b = nrm(ks[3], (32,), 0.05)
    fc1_w = nrm(ks[4], (256, 32 * 6 * 6), 0.02)
    fc1_b = nrm(ks[5], (256,), 0.02)
    fc3_w = nrm(ks[6], (10, 256), 0.05)
    fc3_b = nrm(ks[7], (10,), 0.05)

    # fc1 consumes NHWC-flattened features: permute its input rows from
    # PyTorch's (C,H,W) order to (H,W,C) order once, at init.
    fc1_w_hwc = fc1_w.reshape(256, 32, 6, 6).transpose(2, 3, 1, 0).reshape(1152, 256)
    return {
        "conv1_w": jnp.transpose(conv1_w, (2, 3, 1, 0)),   # OIHW -> HWIO (3,3,1,64)
        "conv1_b": conv1_b,
        "conv2_w": jnp.transpose(conv2_w, (2, 3, 1, 0)),   # (3,3,64,32)
        "conv2_b": conv2_b,
        "fc1_w": fc1_w_hwc,                                # (1152, 256)
        "fc1_b": fc1_b,
        "fc3_w": jnp.transpose(fc3_w, (1, 0)),             # (256, 10)
        "fc3_b": fc3_b,
    }


# ----------------------------------------------------------------------------
# full forward
# ----------------------------------------------------------------------------
@jax.jit
def cnn_adam_forward(x_nchw, params):
    x = x_nchw[:, 0].astype(jnp.float32)                              # (B, 28, 28)
    feats = conv_stack(x, params["conv1_w"], params["conv1_b"],
                       params["conv2_w"], params["conv2_b"])          # (B, 36, 32)
    feats = feats.reshape(feats.shape[0], -1)                         # (B, 1152) (h,w,c)
    return fc_head(feats, params["fc1_w"], params["fc1_b"],
                   params["fc3_w"], params["fc3_b"])                  # (B, 10)


# ----------------------------------------------------------------------------
# plain-XLA reference (self-check only)
# ----------------------------------------------------------------------------
def _maxpool_2x2_ref(x):
    B, H, W, C = x.shape
    Hc, Wc = (H // 2) * 2, (W // 2) * 2
    x = x[:, :Hc, :Wc, :].reshape(B, Hc // 2, 2, Wc // 2, 2, C)
    return jnp.max(x, axis=(2, 4))


def _reference_forward(x_nchw, params):
    hi = lax.Precision.HIGHEST
    x = jnp.transpose(x_nchw, (0, 2, 3, 1)).astype(jnp.float32)       # NHWC
    y = lax.conv_general_dilated(x, params["conv1_w"], (1, 1), [(2, 2), (2, 2)],
                                 dimension_numbers=("NHWC", "HWIO", "NHWC"),
                                 precision=hi)
    y = _maxpool_2x2_ref(jnp.maximum(y + params["conv1_b"], 0.0))
    y = lax.conv_general_dilated(y, params["conv2_w"], (1, 1), "VALID",
                                 dimension_numbers=("NHWC", "HWIO", "NHWC"),
                                 precision=hi)
    y = _maxpool_2x2_ref(jnp.maximum(y + params["conv2_b"], 0.0))
    feats = y.reshape(y.shape[0], -1)                                 # (B, 1152) (h,w,c)
    h = jnp.maximum(jnp.dot(feats, params["fc1_w"], precision=hi) + params["fc1_b"], 0.0)
    logits = jnp.dot(h, params["fc3_w"], precision=hi) + params["fc3_b"]
    return jax.nn.log_softmax(logits, axis=-1)


if __name__ == "__main__":
    key = jax.random.PRNGKey(0)
    kx, kp = jax.random.split(key)
    # fc1 expects 32*6*6 features -> 28x28 single-channel input (KMNIST-sized).
    x = jax.random.normal(kx, (2, 1, 28, 28), dtype=jnp.float32)
    params = init_params(kp)

    out = jax.block_until_ready(cnn_adam_forward(x, params))

    assert out.shape == (2, 10), out.shape
    assert bool(jnp.all(jnp.isfinite(out)))
    # log_softmax rows must exponentiate-sum to 1
    assert bool(jnp.all(jnp.abs(jnp.sum(jnp.exp(out), axis=1) - 1.0) < 1e-3))
    # cross-check against a plain-XLA implementation of the same module
    ref = jax.block_until_ready(_reference_forward(x, params))
    assert bool(jnp.max(jnp.abs(out - ref)) < 2e-2), float(jnp.max(jnp.abs(out - ref)))
    print("KERNEL_OK")
</pallas_src>

<mosaic_0001>
module attributes {stable_mosaic.version = 11 : i64} {
  func.func @_conv_stack_kernel(%arg0: i32, %arg1: memref<2x240x16xf32, #tpu.memory_space<vmem>>, %arg2: memref<16x256xf32, #tpu.memory_space<vmem>>, %arg3: memref<1x64xf32, #tpu.memory_space<vmem>>, %arg4: memref<3x64x96xf32, #tpu.memory_space<vmem>>, %arg5: memref<1x32xf32, #tpu.memory_space<vmem>>, %arg6: memref<160x192xf32, #tpu.memory_space<vmem>>, %arg7: memref<2x40x32xf32, #tpu.memory_space<vmem>>) attributes {dimension_semantics = [#tpu.dimension_semantics<parallel>], iteration_bounds = array<i64: 1>, scalar_prefetch = 0 : i64, scratch_operands = 0 : i64, tpu.core_type = #tpu.core_type<tc>, window_params = [{transform_indices = @transform_0, window_bounds = array<i64: 2, 240, 16>}, {pipeline_mode = #tpu.pipeline_mode<synchronous>, transform_indices = @transform_1, window_bounds = array<i64: 16, 256>}, {pipeline_mode = #tpu.pipeline_mode<synchronous>, transform_indices = @transform_2, window_bounds = array<i64: 1, 64>}, {pipeline_mode = #tpu.pipeline_mode<synchronous>, transform_indices = @transform_3, window_bounds = array<i64: 3, 64, 96>}, {pipeline_mode = #tpu.pipeline_mode<synchronous>, transform_indices = @transform_4, window_bounds = array<i64: 1, 32>}, {pipeline_mode = #tpu.pipeline_mode<synchronous>, transform_indices = @transform_5, window_bounds = array<i64: 160, 192>}, {transform_indices = @transform_6, window_bounds = array<i64: 2, 40, 32>}]} {
    %c0 = arith.constant 0 : index
    %c0_0 = arith.constant 0 : index
    %c0_1 = arith.constant 0 : index
    %0 = vector.load %arg1[%c0, %c0_0, %c0_1] : memref<2x240x16xf32, #tpu.memory_space<vmem>>, vector<2x240x16xf32>
    %1 = vector.shape_cast %0 : vector<2x240x16xf32> to vector<480x16xf32>
    %c0_2 = arith.constant 0 : index
    %c0_3 = arith.constant 0 : index
    %2 = vector.load %arg2[%c0_2, %c0_3] : memref<16x256xf32, #tpu.memory_space<vmem>>, vector<16x256xf32>
    %cst = arith.constant dense<0.000000e+00> : vector<480x256xf32>
    %3 = tpu.matmul %1, %2, %cst {dimension_numbers = #tpu.dot_dimension_numbers<[1], [0], [0], [1], [0, 0, 1, 1], [], []>} : vector<480x16xf32>, vector<16x256xf32>, vector<480x256xf32> -> vector<480x256xf32>
    %4 = vector.extract_strided_slice %3 {offsets = [0, 0], sizes = [480, 128], strides = [1, 1]} : vector<480x256xf32> to vector<480x128xf32>
    %5 = vector.extract_strided_slice %3 {offsets = [0, 128], sizes = [480, 128], strides = [1, 1]} : vector<480x256xf32> to vector<480x128xf32>
    %6 = arith.maximumf %4, %5 : vector<480x128xf32>
    %7 = vector.extract_strided_slice %6 {offsets = [0, 0], sizes = [480, 64], strides = [1, 1]} : vector<480x128xf32> to vector<480x64xf32>
    %8 = vector.extract_strided_slice %6 {offsets = [0, 64], sizes = [480, 64], strides = [1, 1]} : vector<480x128xf32> to vector<480x64xf32>
    %9 = arith.maximumf %7, %8 : vector<480x64xf32>
    %c0_4 = arith.constant 0 : index
    %c0_5 = arith.constant 0 : index
    %10 = vector.load %arg3[%c0_4, %c0_5] : memref<1x64xf32, #tpu.memory_space<vmem>>, vector<1x64xf32>
    %11 = vector.broadcast %10 : vector<1x64xf32> to vector<480x64xf32>
    %12 = arith.addf %9, %11 : vector<480x64xf32>
    %cst_6 = arith.constant 0.000000e+00 : f32
    %13 = vector.broadcast %cst_6 : f32 to vector<480x64xf32>
    %14 = arith.maximumf %12, %13 : vector<480x64xf32>
    %15 = vector.shape_cast %14 : vector<480x64xf32> to vector<2x240x64xf32>
    %16 = vector.extract_strided_slice %15 {offsets = [0, 0, 0], sizes = [2, 200, 64], strides = [1, 1, 1]} : vector<2x240x64xf32> to vector<2x200x64xf32>
    %17 = vector.shape_cast %16 : vector<2x200x64xf32> to vector<400x64xf32>
    %c0_7 = arith.constant 0 : index
    %c0_8 = arith.constant 0 : index
    %c0_9 = arith.constant 0 : index
    %18 = vector.load %arg4[%c0_7, %c0_8, %c0_9] : memref<3x64x96xf32, #tpu.memory_space<vmem>>, vector<1x64x96xf32>
    %19 = vector.shape_cast %18 : vector<1x64x96xf32> to vector<64x96xf32>
    %cst_10 = arith.constant dense<0.000000e+00> : vector<400x96xf32>
    %20 = tpu.matmul %17, %19, %cst_10 {dimension_numbers = #tpu.dot_dimension_numbers<[1], [0], [0], [1], [0, 0, 1, 1], [], []>} : vector<400x64xf32>, vector<64x96xf32>, vector<400x96xf32> -> vector<400x96xf32>
    %21 = vector.extract_strided_slice %15 {offsets = [0, 16, 0], sizes = [2, 200, 64], strides = [1, 1, 1]} : vector<2x240x64xf32> to vector<2x200x64xf32>
    %22 = vector.shape_cast %21 : vector<2x200x64xf32> to vector<400x64xf32>
    %c1 = arith.constant 1 : index
    %c0_11 = arith.constant 0 : index
    %c0_12 = arith.constant 0 : index
    %23 = vector.load %arg4[%c1, %c0_11, %c0_12] : memref<3x64x96xf32, #tpu.memory_space<vmem>>, vector<1x64x96xf32>
    %24 = vector.shape_cast %23 : vector<1x64x96xf32> to vector<64x96xf32>
    %cst_13 = arith.constant dense<0.000000e+00> : vector<400x96xf32>
    %25 = tpu.matmul %22, %24, %cst_13 {dimension_numbers = #tpu.dot_dimension_numbers<[1], [0], [0], [1], [0, 0, 1, 1], [], []>} : vector<400x64xf32>, vector<64x96xf32>, vector<400x96xf32> -> vector<400x96xf32>
    %26 = arith.addf %20, %25 : vector<400x96xf32>
    %27 = vector.extract_strided_slice %15 {offsets = [0, 32, 0], sizes = [2, 200, 64], strides = [1, 1, 1]} : vector<2x240x64xf32> to vector<2x200x64xf32>
    %28 = vector.shape_cast %27 : vector<2x200x64xf32> to vector<400x64xf32>
    %c2 = arith.constant 2 : index
    %c0_14 = arith.constant 0 : index
    %c0_15 = arith.constant 0 : index
    %29 = vector.load %arg4[%c2, %c0_14, %c0_15] : memref<3x64x96xf32, #tpu.memory_space<vmem>>, vector<1x64x96xf32>
    %30 = vector.shape_cast %29 : vector<1x64x96xf32> to vector<64x96xf32>
    %cst_16 = arith.constant dense<0.000000e+00> : vector<400x96xf32>
    %31 = tpu.matmul %28, %30, %cst_16 {dimension_numbers = #tpu.dot_dimension_numbers<[1], [0], [0], [1], [0, 0, 1, 1], [], []>} : vector<400x64xf32>, vector<64x96xf32>, vector<400x96xf32> -> vector<400x96xf32>
    %32 = arith.addf %26, %31 : vector<400x96xf32>
    %33 = vector.shape_cast %32 : vector<400x96xf32> to vector<2x200x96xf32>
    %34 = vector.extract_strided_slice %33 {offsets = [0, 0, 0], sizes = [2, 192, 32], strides = [1, 1, 1]} : vector<2x200x96xf32> to vector<2x192x32xf32>
    %35 = vector.extract_strided_slice %33 {offsets = [0, 1, 32], sizes = [2, 192, 32], strides = [1, 1, 1]} : vector<2x200x96xf32> to vector<2x192x32xf32>
    %36 = arith.addf %34, %35 : vector<2x192x32xf32>
    %37 = vector.extract_strided_slice %33 {offsets = [0, 2, 64], sizes = [2, 192, 32], strides = [1, 1, 1]} : vector<2x200x96xf32> to vector<2x192x32xf32>
    %38 = arith.addf %36, %37 : vector<2x192x32xf32>
    %c0_17 = arith.constant 0 : index
    %c0_18 = arith.constant 0 : index
    %39 = vector.load %arg5[%c0_17, %c0_18] : memref<1x32xf32, #tpu.memory_space<vmem>>, vector<1x32xf32>
    %40 = vector.shape_cast %39 : vector<1x32xf32> to vector<1x1x32xf32>
    %41 = vector.broadcast %40 : vector<1x1x32xf32> to vector<2x192x32xf32>
    %42 = arith.addf %38, %41 : vector<2x192x32xf32>
    %cst_19 = arith.constant 0.000000e+00 : f32
    %43 = vector.broadcast %cst_19 : f32 to vector<2x192x32xf32>
    %44 = arith.maximumf %42, %43 : vector<2x192x32xf32>
    %c0_20 = arith.constant 0 : index
    %c0_21 = arith.constant 0 : index
    %45 = vector.load %arg6[%c0_20, %c0_21] : memref<160x192xf32, #tpu.memory_space<vmem>>, vector<160x192xf32>
    %46 = vector.shape_cast %45 : vector<160x192xf32> to vector<1x160x192xf32>
    %47 = vector.broadcast %46 : vector<1x160x192xf32> to vector<2x160x192xf32>
    "tpu.trace_start"() <{level = 10 : i32, message = "bpq,bqc->bpc"}> : () -> ()
    %cst_22 = arith.constant dense<0.000000e+00> : vector<2x160x32xf32>
    %48 = tpu.matmul %47, %44, %cst_22 {dimension_numbers = #tpu.dot_dimension_numbers<[2], [1], [1], [2], [0, 0, 0, 1, 1, 2], [0], [0]>} : vector<2x160x192xf32>, vector<2x192x32xf32>, vector<2x160x32xf32> -> vector<2x160x32xf32>
    "tpu.trace_stop"() : () -> ()
    %49 = vector.extract_strided_slice %48 {offsets = [0, 0, 0], sizes = [2, 40, 32], strides = [1, 1, 1]} : vector<2x160x32xf32> to vector<2x40x32xf32>
    %50 = vector.extract_strided_slice %48 {offsets = [0, 40, 0], sizes = [2, 40, 32], strides = [1, 1, 1]} : vector<2x160x32xf32> to vector<2x40x32xf32>
    %51 = arith.maximumf %49, %50 : vector<2x40x32xf32>
    %52 = vector.extract_strided_slice %48 {offsets = [0, 80, 0], sizes = [2, 40, 32], strides = [1, 1, 1]} : vector<2x160x32xf32> to vector<2x40x32xf32>
    %53 = vector.extract_strided_slice %48 {offsets = [0, 120, 0], sizes = [2, 40, 32], strides = [1, 1, 1]} : vector<2x160x32xf32> to vector<2x40x32xf32>
    %54 = arith.maximumf %52, %53 : vector<2x40x32xf32>
    %55 = arith.maximumf %51, %54 : vector<2x40x32xf32>
    %c0_23 = arith.constant 0 : index
    %c0_24 = arith.constant 0 : index
    %c0_25 = arith.constant 0 : index
    %56 = vector.load %arg7[%c0_23, %c0_24, %c0_25] : memref<2x40x32xf32, #tpu.memory_space<vmem>>, vector<2x40x32xf32>
    tpu.vector_store %arg7[%c0_23, %c0_24, %c0_25], %55 {strides = array<i32>} : memref<2x40x32xf32, #tpu.memory_space<vmem>>, vector<2x40x32xf32>,
    return
  }
  func.func @transform_0(%arg0: i32) -> (i32, i32, i32) {
    %c0_i32 = arith.constant 0 : i32
    %c0_i32_0 = arith.constant 0 : i32
    %c0_i32_1 = arith.constant 0 : i32
    return %arg0, %c0_i32, %c0_i32_0 : i32, i32, i32
  }
  func.func @transform_1(%arg0: i32) -> (i32, i32) {
    %c0_i32 = arith.constant 0 : i32
    %c0_i32_0 = arith.constant 0 : i32
    %c0_i32_1 = arith.constant 0 : i32
    return %c0_i32, %c0_i32_0 : i32, i32
  }
  func.func @transform_2(%arg0: i32) -> (i32, i32) {
    %c0_i32 = arith.constant 0 : i32
    %c0_i32_0 = arith.constant 0 : i32
    %c0_i32_1 = arith.constant 0 : i32
    return %c0_i32, %c0_i32_0 : i32, i32
  }
  func.func @transform_3(%arg0: i32) -> (i32, i32, i32) {
    %c0_i32 = arith.constant 0 : i32
    %c0_i32_0 = arith.constant 0 : i32
    %c0_i32_1 = arith.constant 0 : i32
    %c0_i32_2 = arith.constant 0 : i32
    return %c0_i32, %c0_i32_0, %c0_i32_1 : i32, i32, i32
  }
  func.func @transform_4(%arg0: i32) -> (i32, i32) {
    %c0_i32 = arith.constant 0 : i32
    %c0_i32_0 = arith.constant 0 : i32
    %c0_i32_1 = arith.constant 0 : i32
    return %c0_i32, %c0_i32_0 : i32, i32
  }
  func.func @transform_5(%arg0: i32) -> (i32, i32) {
    %c0_i32 = arith.constant 0 : i32
    %c0_i32_0 = arith.constant 0 : i32
    %c0_i32_1 = arith.constant 0 : i32
    return %c0_i32, %c0_i32_0 : i32, i32
  }
  func.func @transform_6(%arg0: i32) -> (i32, i32, i32) {
    %c0_i32 = arith.constant 0 : i32
    %c0_i32_0 = arith.constant 0 : i32
    %c0_i32_1 = arith.constant 0 : i32
    return %arg0, %c0_i32, %c0_i32_0 : i32, i32, i32
  }
}

module attributes {stable_mosaic.version = 11 : i64} {
  func.func @_fc_kernel(%arg0: i32, %arg1: memref<2x1152xf32, #tpu.memory_space<vmem>>, %arg2: memref<1152x256xf32, #tpu.memory_space<vmem>>, %arg3: memref<1x256xf32, #tpu.memory_space<vmem>>, %arg4: memref<256x10xf32, #tpu.memory_space<vmem>>, %arg5: memref<1x10xf32, #tpu.memory_space<vmem>>, %arg6: memref<2x10xf32, #tpu.memory_space<vmem>>) attributes {dimension_semantics = [#tpu.dimension_semantics<parallel>], iteration_bounds = array<i64: 1>, scalar_prefetch = 0 : i64, scratch_operands = 0 : i64, tpu.core_type = #tpu.core_type<tc>, window_params = [{transform_indices = @transform_0, window_bounds = array<i64: 2, 1152>}, {pipeline_mode = #tpu.pipeline_mode<synchronous>, transform_indices = @transform_1, window_bounds = array<i64: 1152, 256>}, {pipeline_mode = #tpu.pipeline_mode<synchronous>, transform_indices = @transform_2, window_bounds = array<i64: 1, 256>}, {pipeline_mode = #tpu.pipeline_mode<synchronous>, transform_indices = @transform_3, window_bounds = array<i64: 256, 10>}, {pipeline_mode = #tpu.pipeline_mode<synchronous>, transform_indices = @transform_4, window_bounds = array<i64: 1, 10>}, {transform_indices = @transform_5, window_bounds = array<i64: 2, 10>}]} {
    %c0 = arith.constant 0 : index
    %c0_0 = arith.constant 0 : index
    %0 = vector.load %arg1[%c0, %c0_0] : memref<2x1152xf32, #tpu.memory_space<vmem>>, vector<2x1152xf32>
    %c0_1 = arith.constant 0 : index
    %c0_2 = arith.constant 0 : index
    %1 = vector.load %arg2[%c0_1, %c0_2] : memref<1152x256xf32, #tpu.memory_space<vmem>>, vector<1152x256xf32>
    %cst = arith.constant dense<0.000000e+00> : vector<2x256xf32>
    %2 = tpu.matmul %0, %1, %cst {dimension_numbers = #tpu.dot_dimension_numbers<[1], [0], [0], [1], [0, 0, 1, 1], [], []>} : vector<2x1152xf32>, vector<1152x256xf32>, vector<2x256xf32> -> vector<2x256xf32>
    %c0_3 = arith.constant 0 : index
    %c0_4 = arith.constant 0 : index
    %3 = vector.load %arg3[%c0_3, %c0_4] : memref<1x256xf32, #tpu.memory_space<vmem>>, vector<1x256xf32>
    %4 = vector.broadcast %3 : vector<1x256xf32> to vector<2x256xf32>
    %5 = arith.addf %2, %4 : vector<2x256xf32>
    %cst_5 = arith.constant 0.000000e+00 : f32
    %6 = vector.broadcast %cst_5 : f32 to vector<2x256xf32>
    %7 = arith.maximumf %5, %6 : vector<2x256xf32>
    %c0_6 = arith.constant 0 : index
    %c0_7 = arith.constant 0 : index
    %8 = vector.load %arg4[%c0_6, %c0_7] : memref<256x10xf32, #tpu.memory_space<vmem>>, vector<256x10xf32>
    %cst_8 = arith.constant dense<0.000000e+00> : vector<2x10xf32>
    %9 = tpu.matmul %7, %8, %cst_8 {dimension_numbers = #tpu.dot_dimension_numbers<[1], [0], [0], [1], [0, 0, 1, 1], [], []>} : vector<2x256xf32>, vector<256x10xf32>, vector<2x10xf32> -> vector<2x10xf32>
    %c0_9 = arith.constant 0 : index
    %c0_10 = arith.constant 0 : index
    %10 = vector.load %arg5[%c0_9, %c0_10] : memref<1x10xf32, #tpu.memory_space<vmem>>, vector<1x10xf32>
    %11 = vector.broadcast %10 : vector<1x10xf32> to vector<2x10xf32>
    %12 = arith.addf %9, %11 : vector<2x10xf32>
    %cst_11 = arith.constant dense<0xFF800000> : vector<2xf32>
    %13 = vector.multi_reduction <maximumf>, %12, %cst_11 [1] : vector<2x10xf32> to vector<2xf32>
    %14 = vector.shape_cast %13 : vector<2xf32> to vector<2x1xf32>
    %15 = vector.broadcast %14 : vector<2x1xf32> to vector<2x10xf32>
    %16 = arith.subf %12, %15 : vector<2x10xf32>
    %17 = math.exp %16 : vector<2x10xf32>
    %cst_12 = arith.constant dense<0.000000e+00> : vector<2xf32>
    %18 = vector.multi_reduction <add>, %17, %cst_12 [1] : vector<2x10xf32> to vector<2xf32>
    %19 = vector.shape_cast %18 : vector<2xf32> to vector<2x1xf32>
    %20 = math.log %19 : vector<2x1xf32>
    %21 = vector.broadcast %20 : vector<2x1xf32> to vector<2x10xf32>
    %22 = arith.subf %16, %21 : vector<2x10xf32>
    %c0_13 = arith.constant 0 : index
    %c0_14 = arith.constant 0 : index
    %23 = vector.load %arg6[%c0_13, %c0_14] : memref<2x10xf32, #tpu.memory_space<vmem>>, vector<2x10xf32>
    tpu.vector_store %arg6[%c0_13, %c0_14], %22 {strides = array<i32>} : memref<2x10xf32, #tpu.memory_space<vmem>>, vector<2x10xf32>,
    return
  }
  func.func @transform_0(%arg0: i32) -> (i32, i32) {
    %c0_i32 = arith.constant 0 : i32
    %c0_i32_0 = arith.constant 0 : i32
    return %arg0, %c0_i32 : i32, i32
  }
  func.func @transform_1(%arg0: i32) -> (i32, i32) {
    %c0_i32 = arith.constant 0 : i32
    %c0_i32_0 = arith.constant 0 : i32
    %c0_i32_1 = arith.constant 0 : i32
    return %c0_i32, %c0_i32_0 : i32, i32
  }
  func.func @transform_2(%arg0: i32) -> (i32, i32) {
    %c0_i32 = arith.constant 0 : i32
    %c0_i32_0 = arith.constant 0 : i32
    %c0_i32_1 = arith.constant 0 : i32
    return %c0_i32, %c0_i32_0 : i32, i32
  }
  func.func @transform_3(%arg0: i32) -> (i32, i32) {
    %c0_i32 = arith.constant 0 : i32
    %c0_i32_0 = arith.constant 0 : i32
    %c0_i32_1 = arith.constant 0 : i32
    return %c0_i32, %c0_i32_0 : i32, i32
  }
  func.func @transform_4(%arg0: i32) -> (i32, i32) {
    %c0_i32 = arith.constant 0 : i32
    %c0_i32_0 = arith.constant 0 : i32
    %c0_i32_1 = arith.constant 0 : i32
    return %c0_i32, %c0_i32_0 : i32, i32
  }
  func.func @transform_5(%arg0: i32) -> (i32, i32) {
    %c0_i32 = arith.constant 0 : i32
    %c0_i32_0 = arith.constant 0 : i32
    return %arg0, %c0_i32 : i32, i32
  }
}

</mosaic_0001>

<llo_original>
// kernel: cnn_adam_forward.3
$region0: #{cnn_adam_forward.3}
  #allocation0 [shape = 'u32[]', space=smem, size = 0x4, offset = 0x4, fixed_abs, tag = 'smem constant byte address 0x4 - core index']
  #allocation1 [shape = 'u32[144,128]{1,0:T(1,128)}', space=vmem, size = 0x12000, scoped, tag = 'internal scratch']
  %s0 = inlined_call_operand.vmem [shape: f32[2,1152], index: 0, kind: input, shape index: {}]
  %s1 = inlined_call_operand.vmem [shape: f32[1152,256], index: 1, kind: input, shape index: {}]
  %s2 = inlined_call_operand.vmem [shape: f32[1,256], index: 2, kind: input, shape index: {}]
  %s3 = inlined_call_operand.vmem [shape: f32[256,10], index: 3, kind: input, shape index: {}]
  %s4 = inlined_call_operand.vmem [shape: f32[1,10], index: 4, kind: input, shape index: {}]
  %s5 = inlined_call_operand.hbm [shape: f32[2,10], index: 5, kind: output, shape index: {}]
  %s6 = sld [smem:[#allocation0]]
  $region30: #{cnn_adam_forward.3} parent=0
    _
  %s8 = ssub.s32 1, %s6
  %s9 = scalar_select 0, %s8, %s6
  $region1: #{cnn_adam_forward.3} parent=0
    #allocation2 [shape = 'u8[1024]{0}', space=vmem, size = 0x400, scoped, tag = 'output window, operand 0, single buffered']
    #allocation3 [shape = 's32[1]{0}', space=sflag, size = 0x4, scoped, tag = 'scoped memory for cnn_adam_forward.3']
    %10 = vsyncpa [#allocation3], 0
    // Predicated region
    $region2: #{cnn_adam_forward.3} parent=1 // pred_check
      _
    $region3: #{cnn_adam_forward.3} parent=1 // pred_check_branch
      %12 = sbr.rel (0) target = $region5
    $region4: #{cnn_adam_forward.3} parent=1 // pred_region
      _
    $region5: #{cnn_adam_forward.3} parent=1 // pred_fallthru
      _
    // Predicated region
    $region6: #{cnn_adam_forward.3} parent=1 // pred_check
      _
    $region7: #{cnn_adam_forward.3} parent=1 // pred_check_branch
      %14 = sbr.rel (0) target = $region9
    $region8: #{cnn_adam_forward.3} parent=1 // pred_region
      _
    $region9: #{cnn_adam_forward.3} parent=1 // pred_fallthru
      _
    // Predicated region
    $region10: #{cnn_adam_forward.3} parent=1 // pred_check
      _
    $region11: #{cnn_adam_forward.3} parent=1 // pred_check_branch
      %16 = sbr.rel (0) target = $region13
    $region12: #{cnn_adam_forward.3} parent=1 // pred_region
      _
    $region13: #{cnn_adam_forward.3} parent=1 // pred_fallthru
      _
    // Predicated region
    $region14: #{cnn_adam_forward.3} parent=1 // pred_check
      _
    $region15: #{cnn_adam_forward.3} parent=1 // pred_check_branch
      %18 = sbr.rel (0) target = $region17
    $region16: #{cnn_adam_forward.3} parent=1 // pred_region
      _
    $region17: #{cnn_adam_forward.3} parent=1 // pred_fallthru
      _
    // Predicated region
    $region18: #{cnn_adam_forward.3} parent=1 // pred_check
      _
    $region19: #{cnn_adam_forward.3} parent=1 // pred_check_branch
      %20 = sbr.rel (0) target = $region21
    $region20: #{cnn_adam_forward.3} parent=1 // pred_region
      _
    $region21: #{cnn_adam_forward.3} parent=1 // pred_fallthru
      _
    %v21 = vld [vmem:[%s0] sm:$0xff]
    %v22 = vld [vmem:[%s0 + $0x8] sm:$0xff]
    %v23 = vld [vmem:[%s0 + $0x10] sm:$0x3]
    %v24 = vld [vmem:[%s1] sm:$0xff]
    %v25 = vld [vmem:[%s1 + $0x8] sm:$0xff]
    %v26 = vld [vmem:[%s1 + $0x10] sm:$0xff]
    %v27 = vld [vmem:[%s1 + $0x18] sm:$0xff]
    %v28 = vld [vmem:[%s1 + $0x20] sm:$0xff]
    %v29 = vld [vmem:[%s1 + $0x28] sm:$0xff]
    %v30 = vld [vmem:[%s1 + $0x30] sm:$0xff]
    %v31 = vld [vmem:[%s1 + $0x38] sm:$0xff]
    %v32 = vld [vmem:[%s1 + $0x40] sm:$0xff]
    %v33 = vld [vmem:[%s1 + $0x48] sm:$0xff]
    %v34 = vld [vmem:[%s1 + $0x50] sm:$0xff]
    %v35 = vld [vmem:[%s1 + $0x58] sm:$0xff]
    %v36 = vld [vmem:[%s1 + $0x60] sm:$0xff]
    %v37 = vld [vmem:[%s1 + $0x68] sm:$0xff]
    %v38 = vld [vmem:[%s1 + $0x70] sm:$0xff]
    %v39 = vld [vmem:[%s1 + $0x78] sm:$0xff]
    %v40 = vld [vmem:[%s1 + $0x80] sm:$0xff]
    %v41 = vld [vmem:[%s1 + $0x88] sm:$0xff]
    %v42 = vld [vmem:[%s1 + $0x90] sm:$0xff]
    %v43 = vld [vmem:[%s1 + $0x98] sm:$0xff]
    %v44 = vld [vmem:[%s1 + $0xa0] sm:$0xff]
    %v45 = vld [vmem:[%s1 + $0xa8] sm:$0xff]
    %v46 = vld [vmem:[%s1 + $0xb0] sm:$0xff]
    %v47 = vld [vmem:[%s1 + $0xb8] sm:$0xff]
    %v48 = vld [vmem:[%s1 + $0xc0] sm:$0xff]
    %v49 = vld [vmem:[%s1 + $0xc8] sm:$0xff]
    %v50 = vld [vmem:[%s1 + $0xd0] sm:$0xff]
    %v51 = vld [vmem:[%s1 + $0xd8] sm:$0xff]
    %v52 = vld [vmem:[%s1 + $0xe0] sm:$0xff]
    %v53 = vld [vmem:[%s1 + $0xe8] sm:$0xff]
    %v54 = vld [vmem:[%s1 + $0xf0] sm:$0xff]
    %v55 = vld [vmem:[%s1 + $0xf8] sm:$0xff]
    %v56 = vld [vmem:[%s1 + $0x100] sm:$0xff]
    %v57 = vld [vmem:[%s1 + $0x108] sm:$0xff]
    %v58 = vld [vmem:[%s1 + $0x110] sm:$0xff]
    %v59 = vld [vmem:[%s1 + $0x118] sm:$0xff]
    %v60 = vld [vmem:[%s1 + $0x120] sm:$0xff]
    %v61 = vld [vmem:[%s1 + $0x128] sm:$0xff]
    %v62 = vld [vmem:[%s1 + $0x130] sm:$0xff]
    %v63 = vld [vmem:[%s1 + $0x138] sm:$0xff]
    %v64 = vld [vmem:[%s1 + $0x140] sm:$0xff]
    %v65 = vld [vmem:[%s1 + $0x148] sm:$0xff]
    %v66 = vld [vmem:[%s1 + $0x150] sm:$0xff]
    %v67 = vld [vmem:[%s1 + $0x158] sm:$0xff]
    %v68 = vld [vmem:[%s1 + $0x160] sm:$0xff]
    %v69 = vld [vmem:[%s1 + $0x168] sm:$0xff]
    %v70 = vld [vmem:[%s1 + $0x170] sm:$0xff]
    %v71 = vld [vmem:[%s1 + $0x178] sm:$0xff]
    %v72 = vld [vmem:[%s1 + $0x180] sm:$0xff]
    %v73 = vld [vmem:[%s1 + $0x188] sm:$0xff]
    %v74 = vld [vmem:[%s1 + $0x190] sm:$0xff]
    %v75 = vld [vmem:[%s1 + $0x198] sm:$0xff]
    %v76 = vld [vmem:[%s1 + $0x1a0] sm:$0xff]
    %v77 = vld [vmem:[%s1 + $0x1a8] sm:$0xff]
    %v78 = vld [vmem:[%s1 + $0x1b0] sm:$0xff]
    %v79 = vld [vmem:[%s1 + $0x1b8] sm:$0xff]
    %v80 = vld [vmem:[%s1 + $0x1c0] sm:$0xff]
    %v81 = vld [vmem:[%s1 + $0x1c8] sm:$0xff]
    %v82 = vld [vmem:[%s1 + $0x1d0] sm:$0xff]
    %v83 = vld [vmem:[%s1 + $0x1d8] sm:$0xff]
    %v84 = vld [vmem:[%s1 + $0x1e0] sm:$0xff]
    %v85 = vld [vmem:[%s1 + $0x1e8] sm:$0xff]
    %v86 = vld [vmem:[%s1 + $0x1f0] sm:$0xff]
    %v87 = vld [vmem:[%s1 + $0x1f8] sm:$0xff]
    %v88 = vld [vmem:[%s1 + $0x200] sm:$0xff]
    %v89 = vld [vmem:[%s1 + $0x208] sm:$0xff]
    %v90 = vld [vmem:[%s1 + $0x210] sm:$0xff]
    %v91 = vld [vmem:[%s1 + $0x218] sm:$0xff]
    %v92 = vld [vmem:[%s1 + $0x220] sm:$0xff]
    %v93 = vld [vmem:[%s1 + $0x228] sm:$0xff]
    %v94 = vld [vmem:[%s1 + $0x230] sm:$0xff]
    %v95 = vld [vmem:[%s1 + $0x238] sm:$0xff]
    %v96 = vld [vmem:[%s1 + $0x240] sm:$0xff]
    %v97 = vld [vmem:[%s1 + $0x248] sm:$0xff]
    %v98 = vld [vmem:[%s1 + $0x250] sm:$0xff]
    %v99 = vld [vmem:[%s1 + $0x258] sm:$0xff]
    %v100 = vld [vmem:[%s1 + $0x260] sm:$0xff]
    %v101 = vld [vmem:[%s1 + $0x268] sm:$0xff]
    %v102 = vld [vmem:[%s1 + $0x270] sm:$0xff]
    %v103 = vld [vmem:[%s1 + $0x278] sm:$0xff]
    %v104 = vld [vmem:[%s1 + $0x280] sm:$0xff]
    %v105 = vld [vmem:[%s1 + $0x288] sm:$0xff]
    %v106 = vld [vmem:[%s1 + $0x290] sm:$0xff]
    %v107 = vld [vmem:[%s1 + $0x298] sm:$0xff]
    %v108 = vld [vmem:[%s1 + $0x2a0] sm:$0xff]
    %v109 = vld [vmem:[%s1 + $0x2a8] sm:$0xff]
    %v110 = vld [vmem:[%s1 + $0x2b0] sm:$0xff]
    %v111 = vld [vmem:[%s1 + $0x2b8] sm:$0xff]
    %v112 = vld [vmem:[%s1 + $0x2c0] sm:$0xff]
    %v113 = vld [vmem:[%s1 + $0x2c8] sm:$0xff]
    %v114 = vld [vmem:[%s1 + $0x2d0] sm:$0xff]
    %v115 = vld [vmem:[%s1 + $0x2d8] sm:$0xff]
    %v116 = vld [vmem:[%s1 + $0x2e0] sm:$0xff]
    %v117 = vld [vmem:[%s1 + $0x2e8] sm:$0xff]
    %v118 = vld [vmem:[%s1 + $0x2f0] sm:$0xff]
    %v119 = vld [vmem:[%s1 + $0x2f8] sm:$0xff]
    %v120 = vld [vmem:[%s1 + $0x300] sm:$0xff]
    %v121 = vld [vmem:[%s1 + $0x308] sm:$0xff]
    %v122 = vld [vmem:[%s1 + $0x310] sm:$0xff]
    %v123 = vld [vmem:[%s1 + $0x318] sm:$0xff]
    %v124 = vld [vmem:[%s1 + $0x320] sm:$0xff]
    %v125 = vld [vmem:[%s1 + $0x328] sm:$0xff]
    %v126 = vld [vmem:[%s1 + $0x330] sm:$0xff]
    %v127 = vld [vmem:[%s1 + $0x338] sm:$0xff]
    %v128 = vld [vmem:[%s1 + $0x340] sm:$0xff]
    %v129 = vld [vmem:[%s1 + $0x348] sm:$0xff]
    %v130 = vld [vmem:[%s1 + $0x350] sm:$0xff]
    %v131 = vld [vmem:[%s1 + $0x358] sm:$0xff]
    %v132 = vld [vmem:[%s1 + $0x360] sm:$0xff]
    %v133 = vld [vmem:[%s1 + $0x368] sm:$0xff]
    %v134 = vld [vmem:[%s1 + $0x370] sm:$0xff]
    %v135 = vld [vmem:[%s1 + $0x378] sm:$0xff]
    %v136 = vld [vmem:[%s1 + $0x380] sm:$0xff]
    %v137 = vld [vmem:[%s1 + $0x388] sm:$0xff]
    %v138 = vld [vmem:[%s1 + $0x390] sm:$0xff]
    %v139 = vld [vmem:[%s1 + $0x398] sm:$0xff]
    %v140 = vld [vmem:[%s1 + $0x3a0] sm:$0xff]
    %v141 = vld [vmem:[%s1 + $0x3a8] sm:$0xff]
    %v142 = vld [vmem:[%s1 + $0x3b0] sm:$0xff]
    %v143 = vld [vmem:[%s1 + $0x3b8] sm:$0xff]
    %v144 = vld [vmem:[%s1 + $0x3c0] sm:$0xff]
    %v145 = vld [vmem:[%s1 + $0x3c8] sm:$0xff]
    %v146 = vld [vmem:[%s1 + $0x3d0] sm:$0xff]
    %v147 = vld [vmem:[%s1 + $0x3d8] sm:$0xff]
    %v148 = vld [vmem:[%s1 + $0x3e0] sm:$0xff]
    %v149 = vld [vmem:[%s1 + $0x3e8] sm:$0xff]
    %v150 = vld [vmem:[%s1 + $0x3f0] sm:$0xff]
    %v151 = vld [vmem:[%s1 + $0x3f8] sm:$0xff]
    %v152 = vld [vmem:[%s1 + $0x400] sm:$0xff]
    %v153 = vld [vmem:[%s1 + $0x408] sm:$0xff]
    %v154 = vld [vmem:[%s1 + $0x410] sm:$0xff]
    %v155 = vld [vmem:[%s1 + $0x418] sm:$0xff]
    %v156 = vld [vmem:[%s1 + $0x420] sm:$0xff]
    %v157 = vld [vmem:[%s1 + $0x428] sm:$0xff]
    %v158 = vld [vmem:[%s1 + $0x430] sm:$0xff]
    %v159 = vld [vmem:[%s1 + $0x438] sm:$0xff]
    %v160 = vld [vmem:[%s1 + $0x440] sm:$0xff]
    %v161 = vld [vmem:[%s1 + $0x448] sm:$0xff]
    %v162 = vld [vmem:[%s1 + $0x450] sm:$0xff]
    %v163 = vld [vmem:[%s1 + $0x458] sm:$0xff]
    %v164 = vld [vmem:[%s1 + $0x460] sm:$0xff]
    %v165 = vld [vmem:[%s1 + $0x468] sm:$0xff]
    %v166 = vld [vmem:[%s1 + $0x470] sm:$0xff]
    %v167 = vld [vmem:[%s1 + $0x478] sm:$0xff]
    %v168 = vld [vmem:[%s1 + $0x480] sm:$0xff]
    %v169 = vld [vmem:[%s1 + $0x488] sm:$0xff]
    %v170 = vld [vmem:[%s1 + $0x490] sm:$0xff]
    %v171 = vld [vmem:[%s1 + $0x498] sm:$0xff]
    %v172 = vld [vmem:[%s1 + $0x4a0] sm:$0xff]
    %v173 = vld [vmem:[%s1 + $0x4a8] sm:$0xff]
    %v174 = vld [vmem:[%s1 + $0x4b0] sm:$0xff]
    %v175 = vld [vmem:[%s1 + $0x4b8] sm:$0xff]
    %v176 = vld [vmem:[%s1 + $0x4c0] sm:$0xff]
    %v177 = vld [vmem:[%s1 + $0x4c8] sm:$0xff]
    %v178 = vld [vmem:[%s1 + $0x4d0] sm:$0xff]
    %v179 = vld [vmem:[%s1 + $0x4d8] sm:$0xff]
    %v180 = vld [vmem:[%s1 + $0x4e0] sm:$0xff]
    %v181 = vld [vmem:[%s1 + $0x4e8] sm:$0xff]
    %v182 = vld [vmem:[%s1 + $0x4f0] sm:$0xff]
    %v183 = vld [vmem:[%s1 + $0x4f8] sm:$0xff]
    %v184 = vld [vmem:[%s1 + $0x500] sm:$0xff]
    %v185 = vld [vmem:[%s1 + $0x508] sm:$0xff]
    %v186 = vld [vmem:[%s1 + $0x510] sm:$0xff]
    %v187 = vld [vmem:[%s1 + $0x518] sm:$0xff]
    %v188 = vld [vmem:[%s1 + $0x520] sm:$0xff]
    %v189 = vld [vmem:[%s1 + $0x528] sm:$0xff]
    %v190 = vld [vmem:[%s1 + $0x530] sm:$0xff]
    %v191 = vld [vmem:[%s1 + $0x538] sm:$0xff]
    %v192 = vld [vmem:[%s1 + $0x540] sm:$0xff]
    %v193 = vld [vmem:[%s1 + $0x548] sm:$0xff]
    %v194 = vld [vmem:[%s1 + $0x550] sm:$0xff]
    %v195 = vld [vmem:[%s1 + $0x558] sm:$0xff]
    %v196 = vld [vmem:[%s1 + $0x560] sm:$0xff]
    %v197 = vld [vmem:[%s1 + $0x568] sm:$0xff]
    %v198 = vld [vmem:[%s1 + $0x570] sm:$0xff]
    %v199 = vld [vmem:[%s1 + $0x578] sm:$0xff]
    %v200 = vld [vmem:[%s1 + $0x580] sm:$0xff]
    %v201 = vld [vmem:[%s1 + $0x588] sm:$0xff]
    %v202 = vld [vmem:[%s1 + $0x590] sm:$0xff]
    %v203 = vld [vmem:[%s1 + $0x598] sm:$0xff]
    %v204 = vld [vmem:[%s1 + $0x5a0] sm:$0xff]
    %v205 = vld [vmem:[%s1 + $0x5a8] sm:$0xff]
    %v206 = vld [vmem:[%s1 + $0x5b0] sm:$0xff]
    %v207 = vld [vmem:[%s1 + $0x5b8] sm:$0xff]
    %v208 = vld [vmem:[%s1 + $0x5c0] sm:$0xff]
    %v209 = vld [vmem:[%s1 + $0x5c8] sm:$0xff]
    %v210 = vld [vmem:[%s1 + $0x5d0] sm:$0xff]
    %v211 = vld [vmem:[%s1 + $0x5d8] sm:$0xff]
    %v212 = vld [vmem:[%s1 + $0x5e0] sm:$0xff]
    %v213 = vld [vmem:[%s1 + $0x5e8] sm:$0xff]
    %v214 = vld [vmem:[%s1 + $0x5f0] sm:$0xff]
    %v215 = vld [vmem:[%s1 + $0x5f8] sm:$0xff]
    %v216 = vld [vmem:[%s1 + $0x600] sm:$0xff]
    %v217 = vld [vmem:[%s1 + $0x608] sm:$0xff]
    %v218 = vld [vmem:[%s1 + $0x610] sm:$0xff]
    %v219 = vld [vmem:[%s1 + $0x618] sm:$0xff]
    %v220 = vld [vmem:[%s1 + $0x620] sm:$0xff]
    %v221 = vld [vmem:[%s1 + $0x628] sm:$0xff]
    %v222 = vld [vmem:[%s1 + $0x630] sm:$0xff]
    %v223 = vld [vmem:[%s1 + $0x638] sm:$0xff]
    %v224 = vld [vmem:[%s1 + $0x640] sm:$0xff]
    %v225 = vld [vmem:[%s1 + $0x648] sm:$0xff]
    %v226 = vld [vmem:[%s1 + $0x650] sm:$0xff]
    %v227 = vld [vmem:[%s1 + $0x658] sm:$0xff]
    %v228 = vld [vmem:[%s1 + $0x660] sm:$0xff]
    %v229 = vld [vmem:[%s1 + $0x668] sm:$0xff]
    %v230 = vld [vmem:[%s1 + $0x670] sm:$0xff]
    %v231 = vld [vmem:[%s1 + $0x678] sm:$0xff]
    %v232 = vld [vmem:[%s1 + $0x680] sm:$0xff]
    %v233 = vld [vmem:[%s1 + $0x688] sm:$0xff]
    %v234 = vld [vmem:[%s1 + $0x690] sm:$0xff]
    %v235 = vld [vmem:[%s1 + $0x698] sm:$0xff]
    %v236 = vld [vmem:[%s1 + $0x6a0] sm:$0xff]
    %v237 = vld [vmem:[%s1 + $0x6a8] sm:$0xff]
    %v238 = vld [vmem:[%s1 + $0x6b0] sm:$0xff]
    %v239 = vld [vmem:[%s1 + $0x6b8] sm:$0xff]
    %v240 = vld [vmem:[%s1 + $0x6c0] sm:$0xff]
    %v241 = vld [vmem:[%s1 + $0x6c8] sm:$0xff]
    %v242 = vld [vmem:[%s1 + $0x6d0] sm:$0xff]
    %v243 = vld [vmem:[%s1 + $0x6d8] sm:$0xff]
    %v244 = vld [vmem:[%s1 + $0x6e0] sm:$0xff]
    %v245 = vld [vmem:[%s1 + $0x6e8] sm:$0xff]
    %v246 = vld [vmem:[%s1 + $0x6f0] sm:$0xff]
    %v247 = vld [vmem:[%s1 + $0x6f8] sm:$0xff]
    %v248 = vld [vmem:[%s1 + $0x700] sm:$0xff]
    %v249 = vld [vmem:[%s1 + $0x708] sm:$0xff]
    %v250 = vld [vmem:[%s1 + $0x710] sm:$0xff]
    %v251 = vld [vmem:[%s1 + $0x718] sm:$0xff]
    %v252 = vld [vmem:[%s1 + $0x720] sm:$0xff]
    %v253 = vld [vmem:[%s1 + $0x728] sm:$0xff]
    %v254 = vld [vmem:[%s1 + $0x730] sm:$0xff]
    %v255 = vld [vmem:[%s1 + $0x738] sm:$0xff]
    %v256 = vld [vmem:[%s1 + $0x740] sm:$0xff]
    %v257 = vld [vmem:[%s1 + $0x748] sm:$0xff]
    %v258 = vld [vmem:[%s1 + $0x750] sm:$0xff]
    %v259 = vld [vmem:[%s1 + $0x758] sm:$0xff]
    %v260 = vld [vmem:[%s1 + $0x760] sm:$0xff]
    %v261 = vld [vmem:[%s1 + $0x768] sm:$0xff]
    %v262 = vld [vmem:[%s1 + $0x770] sm:$0xff]
    %v263 = vld [vmem:[%s1 + $0x778] sm:$0xff]
    %v264 = vld [vmem:[%s1 + $0x780] sm:$0xff]
    %v265 = vld [vmem:[%s1 + $0x788] sm:$0xff]
    %v266 = vld [vmem:[%s1 + $0x790] sm:$0xff]
    %v267 = vld [vmem:[%s1 + $0x798] sm:$0xff]
    %v268 = vld [vmem:[%s1 + $0x7a0] sm:$0xff]
    %v269 = vld [vmem:[%s1 + $0x7a8] sm:$0xff]
    %v270 = vld [vmem:[%s1 + $0x7b0] sm:$0xff]
    %v271 = vld [vmem:[%s1 + $0x7b8] sm:$0xff]
    %v272 = vld [vmem:[%s1 + $0x7c0] sm:$0xff]
    %v273 = vld [vmem:[%s1 + $0x7c8] sm:$0xff]
    %v274 = vld [vmem:[%s1 + $0x7d0] sm:$0xff]
    %v275 = vld [vmem:[%s1 + $0x7d8] sm:$0xff]
    %v276 = vld [vmem:[%s1 + $0x7e0] sm:$0xff]
    %v277 = vld [vmem:[%s1 + $0x7e8] sm:$0xff]
    %v278 = vld [vmem:[%s1 + $0x7f0] sm:$0xff]
    %v279 = vld [vmem:[%s1 + $0x7f8] sm:$0xff]
    %v280 = vld [vmem:[%s1 + $0x800] sm:$0xff]
    %v281 = vld [vmem:[%s1 + $0x808] sm:$0xff]
    %v282 = vld [vmem:[%s1 + $0x810] sm:$0xff]
    %v283 = vld [vmem:[%s1 + $0x818] sm:$0xff]
    %v284 = vld [vmem:[%s1 + $0x820] sm:$0xff]
    %v285 = vld [vmem:[%s1 + $0x828] sm:$0xff]
    %v286 = vld [vmem:[%s1 + $0x830] sm:$0xff]
    %v287 = vld [vmem:[%s1 + $0x838] sm:$0xff]
    %v288 = vld [vmem:[%s1 + $0x840] sm:$0xff]
    %v289 = vld [vmem:[%s1 + $0x848] sm:$0xff]
    %v290 = vld [vmem:[%s1 + $0x850] sm:$0xff]
    %v291 = vld [vmem:[%s1 + $0x858] sm:$0xff]
    %v292 = vld [vmem:[%s1 + $0x860] sm:$0xff]
    %v293 = vld [vmem:[%s1 + $0x868] sm:$0xff]
    %v294 = vld [vmem:[%s1 + $0x870] sm:$0xff]
    %v295 = vld [vmem:[%s1 + $0x878] sm:$0xff]
    %v296 = vld [vmem:[%s1 + $0x880] sm:$0xff]
    %v297 = vld [vmem:[%s1 + $0x888] sm:$0xff]
    %v298 = vld [vmem:[%s1 + $0x890] sm:$0xff]
    %v299 = vld [vmem:[%s1 + $0x898] sm:$0xff]
    %v300 = vld [vmem:[%s1 + $0x8a0] sm:$0xff]
    %v301 = vld [vmem:[%s1 + $0x8a8] sm:$0xff]
    %v302 = vld [vmem:[%s1 + $0x8b0] sm:$0xff]
    %v303 = vld [vmem:[%s1 + $0x8b8] sm:$0xff]
    %v304 = vld [vmem:[%s1 + $0x8c0] sm:$0xff]
    %v305 = vld [vmem:[%s1 + $0x8c8] sm:$0xff]
    %v306 = vld [vmem:[%s1 + $0x8d0] sm:$0xff]
    %v307 = vld [vmem:[%s1 + $0x8d8] sm:$0xff]
    %v308 = vld [vmem:[%s1 + $0x8e0] sm:$0xff]
    %v309 = vld [vmem:[%s1 + $0x8e8] sm:$0xff]
    %v310 = vld [vmem:[%s1 + $0x8f0] sm:$0xff]
    %v311 = vld [vmem:[%s1 + $0x8f8] sm:$0xff]
    %v312 = vld [vmem:[%s2] sm:$0x3]
    %v314 = vlaneseq
    %v315 = vshrl.u32 %v314, 7
    %v316 = vsub.s32 0, %v315
    %v317 = vrot.slane %v312, %v316
    %v318 = vlaneseq
    %v319 = vshrl.u32 %v318, 7
    %v320 = vsub.s32 1, %v319
    %v321 = vrot.slane %v312, %v320
    %v327 = vcombine.high %v21, %v21
    %v329 = vunpack.c.l.s4 1983009808
    %v330 = vunpack.c.0.s8 %v329
    %v331 = vlaneseq
    %v332 = vshrl.u32 %v331, 7
    %v333 = vsub.s32 %v330, %v332
    %v334 = vrot.slane %v21, %v333
    %v336 = vunpack.c.l.s4 1983009808
    %v337 = vunpack.c.0.s8 %v336
    %v338 = vlaneseq
    %v339 = vshrl.u32 %v338, 7
    %v340 = vsub.s32 %v337, %v339
    %v341 = vrot.slane %v327, %v340
    %v342 = vcombine.high %v334, %v334
    %v343 = vcombine.high %v341, %v341
    %v344 = vcombine.high %v22, %v22
    %v346 = vunpack.c.l.s4 1983009808
    %v347 = vunpack.c.0.s8 %v346
    %v348 = vlaneseq
    %v349 = vshrl.u32 %v348, 7
    %v350 = vsub.s32 %v347, %v349
    %v351 = vrot.slane %v22, %v350
    %v353 = vunpack.c.l.s4 1983009808
    %v354 = vunpack.c.0.s8 %v353
    %v355 = vlaneseq
    %v356 = vshrl.u32 %v355, 7
    %v357 = vsub.s32 %v354, %v356
    %v358 = vrot.slane %v344, %v357
    %v359 = vcombine.high %v351, %v351
    %v360 = vcombine.high %v358, %v358
    %v362 = vunpack.c.l.s4 1983009808
    %v363 = vunpack.c.0.s8 %v362
    %v364 = vlaneseq
    %v365 = vshrl.u32 %v364, 7
    %v366 = vsub.s32 %v363, %v365
    %v367 = vrot.slane %v23, %v366
    %377 = vmatprep.subr.mxu0 %v25
    %378 = vmatpush1.msra.mxu0 %v24
    %379 = vmatprep.subr.mxu0 %v27
    %380 = vmatpush1.msra.mxu0 %v26
    %381 = vmatprep.subr.mxu0 %v29
    %382 = vmatpush1.msra.mxu0 %v28
    %383 = vmatprep.subr.mxu0 %v31
    %384 = vmatpush1.msra.mxu0 %v30
    %385 = vmatprep.subr.mxu0 %v33
    %386 = vmatpush1.msra.mxu0 %v32
    %387 = vmatprep.subr.mxu0 %v35
    %388 = vmatpush1.msra.mxu0 %v34
    %389 = vmatprep.subr.mxu0 %v37
    %390 = vmatpush1.msra.mxu0 %v36
    %391 = vmatprep.subr.mxu0 %v39
    %392 = vmatpush1.msra.mxu0 %v38
    %393 = vmatprep.subr.mxu0 %v41
    %394 = vmatpush1.msra.mxu0 %v40
    %395 = vmatprep.subr.mxu0 %v43
    %396 = vmatpush1.msra.mxu0 %v42
    %397 = vmatprep.subr.mxu0 %v45
    %398 = vmatpush1.msra.mxu0 %v44
    %399 = vmatprep.subr.mxu0 %v47
    %400 = vmatpush1.msra.mxu0 %v46
    %401 = vmatprep.subr.mxu0 %v49
    %402 = vmatpush1.msra.mxu0 %v48
    %403 = vmatprep.subr.mxu0 %v51
    %404 = vmatpush1.msra.mxu0 %v50
    %405 = vmatprep.subr.mxu0 %v53
    %406 = vmatpush1.msra.mxu0 %v52
    %407 = vmatprep.subr.mxu0 %v55
    %408 = vmatpush1.msra.mxu0 %v54
    %409 = vmatprep.subr.mxu0 %v57
    %410 = vmatpush1.msra.mxu0 %v56
    %411 = vmatprep.subr.mxu0 %v59
    %412 = vmatpush1.msra.mxu0 %v58
    %413 = vmatprep.subr.mxu0 %v61
    %414 = vmatpush1.msra.mxu0 %v60
    %415 = vmatprep.subr.mxu0 %v63
    %416 = vmatpush1.msra.mxu0 %v62
    %417 = vmatprep.subr.mxu0 %v65
    %418 = vmatpush1.msra.mxu0 %v64
    %419 = vmatprep.subr.mxu0 %v67
    %420 = vmatpush1.msra.mxu0 %v66
    %421 = vmatprep.subr.mxu0 %v69
    %422 = vmatpush1.msra.mxu0 %v68
    %423 = vmatprep.subr.mxu0 %v71
    %424 = vmatpush1.msra.mxu0 %v70
    %425 = vmatprep.subr.mxu0 %v73
    %426 = vmatpush1.msra.mxu0 %v72
    %427 = vmatprep.subr.mxu0 %v75
    %428 = vmatpush1.msra.mxu0 %v74
    %429 = vmatprep.subr.mxu0 %v77
    %430 = vmatpush1.msra.mxu0 %v76
    %431 = vmatprep.subr.mxu0 %v79
    %432 = vmatpush1.msra.mxu0 %v78
    %433 = vmatprep.subr.mxu0 %v81
    %434 = vmatpush1.msra.mxu0 %v80
    %435 = vmatprep.subr.mxu0 %v83
    %436 = vmatpush1.msra.mxu0 %v82
    %437 = vmatprep.subr.mxu0 %v85
    %438 = vmatpush1.msra.mxu0 %v84
    %439 = vmatprep.subr.mxu0 %v87
    %440 = vmatpush1.msra.mxu0 %v86
    %441 = vmatprep.mubr.f32.mxu0 %v342
    %442 = vmatmul.mubr.f32.gmra.mrb[0].mxu0 %v334
    %v443 = vpop.f32.mrb[0].mxu0
    %v444 = vadd.f32 %v317, %v443
    %v445 = vpop.f32.mrb[0].mxu0
    %v446 = vadd.f32 %v321, %v445
    %447 = vdwg.mxu0
    %448 = vmatprep.subr.mxu0 %v89
    %449 = vmatpush1.msra.mxu0 %v88
    %450 = vmatprep.subr.mxu0 %v91
    %451 = vmatpush1.msra.mxu0 %v90
    %452 = vmatprep.subr.mxu0 %v93
    %453 = vmatpush1.msra.mxu0 %v92
    %454 = vmatprep.subr.mxu0 %v95
    %455 = vmatpush1.msra.mxu0 %v94
    %456 = vmatprep.subr.mxu0 %v97
    %457 = vmatpush1.msra.mxu0 %v96
    %458 = vmatprep.subr.mxu0 %v99
    %459 = vmatpush1.msra.mxu0 %v98
    %460 = vmatprep.subr.mxu0 %v101
    %461 = vmatpush1.msra.mxu0 %v100
    %462 = vmatprep.subr.mxu0 %v103
    %463 = vmatpush1.msra.mxu0 %v102
    %464 = vmatprep.subr.mxu0 %v105
    %465 = vmatpush1.msra.mxu0 %v104
    %466 = vmatprep.subr.mxu0 %v107
    %467 = vmatpush1.msra.mxu0 %v106
    %468 = vmatprep.subr.mxu0 %v109
    %469 = vmatpush1.msra.mxu0 %v108
    %470 = vmatprep.subr.mxu0 %v111
    %471 = vmatpush1.msra.mxu0 %v110
    %472 = vmatprep.subr.mxu0 %v113
    %473 = vmatpush1.msra.mxu0 %v112
    %474 = vmatprep.subr.mxu0 %v115
    %475 = vmatpush1.msra.mxu0 %v114
    %476 = vmatprep.subr.mxu0 %v117
    %477 = vmatpush1.msra.mxu0 %v116
    %478 = vmatprep.subr.mxu0 %v119
    %479 = vmatpush1.msra.mxu0 %v118
    %480 = vmatprep.subr.mxu0 %v121
    %481 = vmatpush1.msra.mxu0 %v120
    %482 = vmatprep.subr.mxu0 %v123
    %483 = vmatpush1.msra.mxu0 %v122
    %484 = vmatprep.subr.mxu0 %v125
    %485 = vmatpush1.msra.mxu0 %v124
    %486 = vmatprep.subr.mxu0 %v127
    %487 = vmatpush1.msra.mxu0 %v126
    %488 = vmatprep.subr.mxu0 %v129
    %489 = vmatpush1.msra.mxu0 %v128
    %490 = vmatprep.subr.mxu0 %v131
    %491 = vmatpush1.msra.mxu0 %v130
    %492 = vmatprep.subr.mxu0 %v133
    %493 = vmatpush1.msra.mxu0 %v132
    %494 = vmatprep.subr.mxu0 %v135
    %495 = vmatpush1.msra.mxu0 %v134
    %496 = vmatprep.subr.mxu0 %v137
    %497 = vmatpush1.msra.mxu0 %v136
    %498 = vmatprep.subr.mxu0 %v139
    %499 = vmatpush1.msra.mxu0 %v138
    %500 = vmatprep.subr.mxu0 %v141
    %501 = vmatpush1.msra.mxu0 %v140
    %502 = vmatprep.subr.mxu0 %v143
    %503 = vmatpush1.msra.mxu0 %v142
    %504 = vmatprep.subr.mxu0 %v145
    %505 = vmatpush1.msra.mxu0 %v144
    %506 = vmatprep.subr.mxu0 %v147
    %507 = vmatpush1.msra.mxu0 %v146
    %508 = vmatprep.subr.mxu0 %v149
    %509 = vmatpush1.msra.mxu0 %v148
    %510 = vmatprep.subr.mxu0 %v151
    %511 = vmatpush1.msra.mxu0 %v150
    %512 = vmatprep.mubr.f32.mxu0 %v343
    %513 = vmatmul.mubr.f32.gmra.mrb[0].mxu0 %v341
    %v514 = vpop.f32.mrb[0].mxu0
    %v515 = vadd.f32 %v444, %v514
    %v516 = vpop.f32.mrb[0].mxu0
    %v517 = vadd.f32 %v446, %v516
    %518 = vdwg.mxu0
    %519 = vmatprep.subr.mxu0 %v153
    %520 = vmatpush1.msra.mxu0 %v152
    %521 = vmatprep.subr.mxu0 %v155
    %522 = vmatpush1.msra.mxu0 %v154
    %523 = vmatprep.subr.mxu0 %v157
    %524 = vmatpush1.msra.mxu0 %v156
    %525 = vmatprep.subr.mxu0 %v159
    %526 = vmatpush1.msra.mxu0 %v158
    %527 = vmatprep.subr.mxu0 %v161
    %528 = vmatpush1.msra.mxu0 %v160
    %529 = vmatprep.subr.mxu0 %v163
    %530 = vmatpush1.msra.mxu0 %v162
    %531 = vmatprep.subr.mxu0 %v165
    %532 = vmatpush1.msra.mxu0 %v164
    %533 = vmatprep.subr.mxu0 %v167
    %534 = vmatpush1.msra.mxu0 %v166
    %535 = vmatprep.subr.mxu0 %v169
    %536 = vmatpush1.msra.mxu0 %v168
    %537 = vmatprep.subr.mxu0 %v171
    %538 = vmatpush1.msra.mxu0 %v170
    %539 = vmatprep.subr.mxu0 %v173
    %540 = vmatpush1.msra.mxu0 %v172
    %541 = vmatprep.subr.mxu0 %v175
    %542 = vmatpush1.msra.mxu0 %v174
    %543 = vmatprep.subr.mxu0 %v177
    %544 = vmatpush1.msra.mxu0 %v176
    %545 = vmatprep.subr.mxu0 %v179
    %546 = vmatpush1.msra.mxu0 %v178
    %547 = vmatprep.subr.mxu0 %v181
    %548 = vmatpush1.msra.mxu0 %v180
    %549 = vmatprep.subr.mxu0 %v183
    %550 = vmatpush1.msra.mxu0 %v182
    %551 = vmatprep.subr.mxu0 %v185
    %552 = vmatpush1.msra.mxu0 %v184
    %553 = vmatprep.subr.mxu0 %v187
    %554 = vmatpush1.msra.mxu0 %v186
    %555 = vmatprep.subr.mxu0 %v189
    %556 = vmatpush1.msra.mxu0 %v188
    %557 = vmatprep.subr.mxu0 %v191
    %558 = vmatpush1.msra.mxu0 %v190
    %559 = vmatprep.subr.mxu0 %v193
    %560 = vmatpush1.msra.mxu0 %v192
    %561 = vmatprep.subr.mxu0 %v195
    %562 = vmatpush1.msra.mxu0 %v194
    %563 = vmatprep.subr.mxu0 %v197
    %564 = vmatpush1.msra.mxu0 %v196
    %565 = vmatprep.subr.mxu0 %v199
    %566 = vmatpush1.msra.mxu0 %v198
    %567 = vmatprep.subr.mxu0 %v201
    %568 = vmatpush1.msra.mxu0 %v200
    %569 = vmatprep.subr.mxu0 %v203
    %570 = vmatpush1.msra.mxu0 %v202
    %571 = vmatprep.subr.mxu0 %v205
    %572 = vmatpush1.msra.mxu0 %v204
    %573 = vmatprep.subr.mxu0 %v207
    %574 = vmatpush1.msra.mxu0 %v206
    %575 = vmatprep.subr.mxu0 %v209
    %576 = vmatpush1.msra.mxu0 %v208
    %577 = vmatprep.subr.mxu0 %v211
    %578 = vmatpush1.msra.mxu0 %v210
    %579 = vmatprep.subr.mxu0 %v213
    %580 = vmatpush1.msra.mxu0 %v212
    %581 = vmatprep.subr.mxu0 %v215
    %582 = vmatpush1.msra.mxu0 %v214
    %583 = vmatprep.mubr.f32.mxu0 %v359
    %584 = vmatmul.mubr.f32.gmra.mrb[0].mxu0 %v351
    %v585 = vpop.f32.mrb[0].mxu0
    %v586 = vadd.f32 %v515, %v585
    %v587 = vpop.f32.mrb[0].mxu0
    %v588 = vadd.f32 %v517, %v587
    %589 = vdwg.mxu0
    %590 = vmatprep.subr.mxu0 %v217
    %591 = vmatpush1.msra.mxu0 %v216
    %592 = vmatprep.subr.mxu0 %v219
    %593 = vmatpush1.msra.mxu0 %v218
    %594 = vmatprep.subr.mxu0 %v221
    %595 = vmatpush1.msra.mxu0 %v220
    %596 = vmatprep.subr.mxu0 %v223
    %597 = vmatpush1.msra.mxu0 %v222
    %598 = vmatprep.subr.mxu0 %v225
    %599 = vmatpush1.msra.mxu0 %v224
    %600 = vmatprep.subr.mxu0 %v227
    %601 = vmatpush1.msra.mxu0 %v226
    %602 = vmatprep.subr.mxu0 %v229
    %603 = vmatpush1.msra.mxu0 %v228
    %604 = vmatprep.subr.mxu0 %v231
    %605 = vmatpush1.msra.mxu0 %v230
    %606 = vmatprep.subr.mxu0 %v233
    %607 = vmatpush1.msra.mxu0 %v232
    %608 = vmatprep.subr.mxu0 %v235
    %609 = vmatpush1.msra.mxu0 %v234
    %610 = vmatprep.subr.mxu0 %v237
    %611 = vmatpush1.msra.mxu0 %v236
    %612 = vmatprep.subr.mxu0 %v239
    %613 = vmatpush1.msra.mxu0 %v238
    %614 = vmatprep.subr.mxu0 %v241
    %615 = vmatpush1.msra.mxu0 %v240
    %616 = vmatprep.subr.mxu0 %v243
    %617 = vmatpush1.msra.mxu0 %v242
    %618 = vmatprep.subr.mxu0 %v245
    %619 = vmatpush1.msra.mxu0 %v244
    %620 = vmatprep.subr.mxu0 %v247
    %621 = vmatpush1.msra.mxu0 %v246
    %622 = vmatprep.subr.mxu0 %v249
    %623 = vmatpush1.msra.mxu0 %v248
    %624 = vmatprep.subr.mxu0 %v251
    %625 = vmatpush1.msra.mxu0 %v250
    %626 = vmatprep.subr.mxu0 %v253
    %627 = vmatpush1.msra.mxu0 %v252
    %628 = vmatprep.subr.mxu0 %v255
    %629 = vmatpush1.msra.mxu0 %v254
    %630 = vmatprep.subr.mxu0 %v257
    %631 = vmatpush1.msra.mxu0 %v256
    %632 = vmatprep.subr.mxu0 %v259
    %633 = vmatpush1.msra.mxu0 %v258
    %634 = vmatprep.subr.mxu0 %v261
    %635 = vmatpush1.msra.mxu0 %v260
    %636 = vmatprep.subr.mxu0 %v263
    %637 = vmatpush1.msra.mxu0 %v262
    %638 = vmatprep.subr.mxu0 %v265
    %639 = vmatpush1.msra.mxu0 %v264
    %640 = vmatprep.subr.mxu0 %v267
    %641 = vmatpush1.msra.mxu0 %v266
    %642 = vmatprep.subr.mxu0 %v269
    %643 = vmatpush1.msra.mxu0 %v268
    %644 = vmatprep.subr.mxu0 %v271
    %645 = vmatpush1.msra.mxu0 %v270
    %646 = vmatprep.subr.mxu0 %v273
    %647 = vmatpush1.msra.mxu0 %v272
    %648 = vmatprep.subr.mxu0 %v275
    %649 = vmatpush1.msra.mxu0 %v274
    %650 = vmatprep.subr.mxu0 %v277
    %651 = vmatpush1.msra.mxu0 %v276
    %652 = vmatprep.subr.mxu0 %v279
    %653 = vmatpush1.msra.mxu0 %v278
    %654 = vmatprep.mubr.f32.mxu0 %v360
    %655 = vmatmul.mubr.f32.gmra.mrb[0].mxu0 %v358
    %v656 = vpop.f32.mrb[0].mxu0
    %v657 = vadd.f32 %v586, %v656
    %v658 = vpop.f32.mrb[0].mxu0
    %v659 = vadd.f32 %v588, %v658
    %660 = vdwg.mxu0
    %661 = vmatprep.subr.mxu0 %v281
    %662 = vmatpush1.msra.mxu0 %v280
    %663 = vmatprep.subr.mxu0 %v283
    %664 = vmatpush1.msra.mxu0 %v282
    %665 = vmatprep.subr.mxu0 %v285
    %666 = vmatpush1.msra.mxu0 %v284
    %667 = vmatprep.subr.mxu0 %v287
    %668 = vmatpush1.msra.mxu0 %v286
    %669 = vmatprep.subr.mxu0 %v289
    %670 = vmatpush1.msra.mxu0 %v288
    %671 = vmatprep.subr.mxu0 %v291
    %672 = vmatpush1.msra.mxu0 %v290
    %673 = vmatprep.subr.mxu0 %v293
    %674 = vmatpush1.msra.mxu0 %v292
    %675 = vmatprep.subr.mxu0 %v295
    %676 = vmatpush1.msra.mxu0 %v294
    %677 = vmatprep.subr.mxu0 %v297
    %678 = vmatpush1.msra.mxu0 %v296
    %679 = vmatprep.subr.mxu0 %v299
    %680 = vmatpush1.msra.mxu0 %v298
    %681 = vmatprep.subr.mxu0 %v301
    %682 = vmatpush1.msra.mxu0 %v300
    %683 = vmatprep.subr.mxu0 %v303
    %684 = vmatpush1.msra.mxu0 %v302
    %685 = vmatprep.subr.mxu0 %v305
    %686 = vmatpush1.msra.mxu0 %v304
    %687 = vmatprep.subr.mxu0 %v307
    %688 = vmatpush1.msra.mxu0 %v306
    %689 = vmatprep.subr.mxu0 %v309
    %690 = vmatpush1.msra.mxu0 %v308
    %691 = vmatprep.subr.mxu0 %v311
    %692 = vmatpush1.msra.mxu0 %v310
    %693 = vmatprep.subr.mxu0 0.0
    %694 = vmatpush1.msra.mxu0 0.0
    %695 = vmatprep.subr.mxu0 0.0
    %696 = vmatpush1.msra.mxu0 0.0
    %697 = vmatprep.subr.mxu0 0.0
    %698 = vmatpush1.msra.mxu0 0.0
    %699 = vmatprep.subr.mxu0 0.0
    %700 = vmatpush1.msra.mxu0 0.0
    %701 = vmatprep.subr.mxu0 0.0
    %702 = vmatpush1.msra.mxu0 0.0
    %703 = vmatprep.subr.mxu0 0.0
    %704 = vmatpush1.msra.mxu0 0.0
    %705 = vmatprep.subr.mxu0 0.0
    %706 = vmatpush1.msra.mxu0 0.0
    %707 = vmatprep.subr.mxu0 0.0
    %708 = vmatpush1.msra.mxu0 0.0
    %709 = vmatprep.subr.mxu0 0.0
    %710 = vmatpush1.msra.mxu0 0.0
    %711 = vmatprep.subr.mxu0 0.0
    %712 = vmatpush1.msra.mxu0 0.0
    %713 = vmatprep.subr.mxu0 0.0
    %714 = vmatpush1.msra.mxu0 0.0
    %715 = vmatprep.subr.mxu0 0.0
    %716 = vmatpush1.msra.mxu0 0.0
    %717 = vmatprep.subr.mxu0 0.0
    %718 = vmatpush1.msra.mxu0 0.0
    %719 = vmatprep.subr.mxu0 0.0
    %720 = vmatpush1.msra.mxu0 0.0
    %721 = vmatprep.subr.mxu0 0.0
    %722 = vmatpush1.msra.mxu0 0.0
    %723 = vmatprep.subr.mxu0 0.0
    %724 = vmatpush1.msra.mxu0 0.0
    %725 = vmatprep.mubr.f32.mxu0 0.0
    %726 = vmatmul.mubr.f32.gmra.mrb[0].mxu0 %v367
    %v727 = vpop.f32.mrb[0].mxu0
    %v728 = vadd.f32 %v657, %v727
    %v729 = vpop.f32.mrb[0].mxu0
    %v730 = vadd.f32 %v659, %v729
    %731 = vdwg.mxu0
    %v732 = vmax.f32 %v728, 0.0
    %v733 = vmax.f32 %v730, 0.0
    %v734 = vld [vmem:[%s3] sm:$0xff]
    %v735 = vld [vmem:[%s3 + $0x8] sm:$0xff]
    %v736 = vld [vmem:[%s3 + $0x10] sm:$0xff]
    %v737 = vld [vmem:[%s3 + $0x18] sm:$0xff]
    %v738 = vld [vmem:[%s3 + $0x20] sm:$0xff]
    %v739 = vld [vmem:[%s3 + $0x28] sm:$0xff]
    %v740 = vld [vmem:[%s3 + $0x30] sm:$0xff]
    %v741 = vld [vmem:[%s3 + $0x38] sm:$0xff]
    %v742 = vld [vmem:[%s3 + $0x40] sm:$0xff]
    %v743 = vld [vmem:[%s3 + $0x48] sm:$0xff]
    %v744 = vld [vmem:[%s3 + $0x50] sm:$0xff]
    %v745 = vld [vmem:[%s3 + $0x58] sm:$0xff]
    %v746 = vld [vmem:[%s3 + $0x60] sm:$0xff]
    %v747 = vld [vmem:[%s3 + $0x68] sm:$0xff]
    %v748 = vld [vmem:[%s3 + $0x70] sm:$0xff]
    %v749 = vld [vmem:[%s3 + $0x78] sm:$0xff]
    %v750 = vld [vmem:[%s3 + $0x80] sm:$0xff]
    %v751 = vld [vmem:[%s3 + $0x88] sm:$0xff]
    %v752 = vld [vmem:[%s3 + $0x90] sm:$0xff]
    %v753 = vld [vmem:[%s3 + $0x98] sm:$0xff]
    %v754 = vld [vmem:[%s3 + $0xa0] sm:$0xff]
    %v755 = vld [vmem:[%s3 + $0xa8] sm:$0xff]
    %v756 = vld [vmem:[%s3 + $0xb0] sm:$0xff]
    %v757 = vld [vmem:[%s3 + $0xb8] sm:$0xff]
    %v758 = vld [vmem:[%s3 + $0xc0] sm:$0xff]
    %v759 = vld [vmem:[%s3 + $0xc8] sm:$0xff]
    %v760 = vld [vmem:[%s3 + $0xd0] sm:$0xff]
    %v761 = vld [vmem:[%s3 + $0xd8] sm:$0xff]
    %v762 = vld [vmem:[%s3 + $0xe0] sm:$0xff]
    %v763 = vld [vmem:[%s3 + $0xe8] sm:$0xff]
    %v764 = vld [vmem:[%s3 + $0xf0] sm:$0xff]
    %v765 = vld [vmem:[%s3 + $0xf8] sm:$0xff]
    %v766 = vld [vmem:[%s4] sm:$0x1]
    %v768 = vlaneseq
    %v769 = vshrl.u32 %v768, 7
    %v770 = vsub.s32 0, %v769
    %v771 = vrot.slane %v766, %v770
    %773 = vmatprep.subr.mxu0 0.0
    %774 = vmatpush1.msra.mxu0 %v734
    %775 = vmatprep.subr.mxu0 0.0
    %776 = vmatpush1.msra.mxu0 %v735
    %777 = vmatprep.subr.mxu0 0.0
    %778 = vmatpush1.msra.mxu0 %v736
    %779 = vmatprep.subr.mxu0 0.0
    %780 = vmatpush1.msra.mxu0 %v737
    %781 = vmatprep.subr.mxu0 0.0
    %782 = vmatpush1.msra.mxu0 %v738
    %783 = vmatprep.subr.mxu0 0.0
    %784 = vmatpush1.msra.mxu0 %v739
    %785 = vmatprep.subr.mxu0 0.0
    %786 = vmatpush1.msra.mxu0 %v740
    %787 = vmatprep.subr.mxu0 0.0
    %788 = vmatpush1.msra.mxu0 %v741
    %789 = vmatprep.subr.mxu0 0.0
    %790 = vmatpush1.msra.mxu0 %v742
    %791 = vmatprep.subr.mxu0 0.0
    %792 = vmatpush1.msra.mxu0 %v743
    %793 = vmatprep.subr.mxu0 0.0
    %794 = vmatpush1.msra.mxu0 %v744
    %795 = vmatprep.subr.mxu0 0.0
    %796 = vmatpush1.msra.mxu0 %v745
    %797 = vmatprep.subr.mxu0 0.0
    %798 = vmatpush1.msra.mxu0 %v746
    %799 = vmatprep.subr.mxu0 0.0
    %800 = vmatpush1.msra.mxu0 %v747
    %801 = vmatprep.subr.mxu0 0.0
    %802 = vmatpush1.msra.mxu0 %v748
    %803 = vmatprep.subr.mxu0 0.0
    %804 = vmatpush1.msra.mxu0 %v749
    %805 = vmatprep.subr.mxu0 0.0
    %806 = vmatpush1.msra.mxu0 %v750
    %807 = vmatprep.subr.mxu0 0.0
    %808 = vmatpush1.msra.mxu0 %v751
    %809 = vmatprep.subr.mxu0 0.0
    %810 = vmatpush1.msra.mxu0 %v752
    %811 = vmatprep.subr.mxu0 0.0
    %812 = vmatpush1.msra.mxu0 %v753
    %813 = vmatprep.subr.mxu0 0.0
    %814 = vmatpush1.msra.mxu0 %v754
    %815 = vmatprep.subr.mxu0 0.0
    %816 = vmatpush1.msra.mxu0 %v755
    %817 = vmatprep.subr.mxu0 0.0
    %818 = vmatpush1.msra.mxu0 %v756
    %819 = vmatprep.subr.mxu0 0.0
    %820 = vmatpush1.msra.mxu0 %v757
    %821 = vmatprep.subr.mxu0 0.0
    %822 = vmatpush1.msra.mxu0 %v758
    %823 = vmatprep.subr.mxu0 0.0
    %824 = vmatpush1.msra.mxu0 %v759
    %825 = vmatprep.subr.mxu0 0.0
    %826 = vmatpush1.msra.mxu0 %v760
    %827 = vmatprep.subr.mxu0 0.0
    %828 = vmatpush1.msra.mxu0 %v761
    %829 = vmatprep.subr.mxu0 0.0
    %830 = vmatpush1.msra.mxu0 %v762
    %831 = vmatprep.subr.mxu0 0.0
    %832 = vmatpush1.msra.mxu0 %v763
    %833 = vmatprep.subr.mxu0 0.0
    %834 = vmatpush1.msra.mxu0 %v764
    %835 = vmatprep.subr.mxu0 0.0
    %836 = vmatpush1.msra.mxu0 %v765
    %837 = vmatprep.mubr.f32.mxu0 %v733
    %838 = vmatmul.mubr.f32.gmra.mrb[0].mxu0 %v732
    %v839 = vpop.f32.mrb[0].mxu0
    %v840 = vadd.f32 %v771, %v839
    %v841 = vpop.f32.mrb[0].mxu0
    %842 = vdwg.mxu0
    %vm843 = vcmask 74752
    %v844 = vsel %vm843, %v840, -inf
    %845 = vmax.xlane.f32.xlu0 %v844
    %v846 = vpop.xlane.xlu0 %845
    %v847 = vsub.f32 %v840, %v846
    %v848 = vmul.f32 %v847, 1.442695
    %v849 = vpow.pop %v848
    %v850 = vsel %vm843, %v849, 0.0
    %851 = vadd.xlane.f32.xlu0 %v850
    %v852 = vpop.xlane.xlu0 %851
    %v853 = vlog2.pop %v852
    %v854 = vmul.f32 %v853, 0.6931472
    %v855 = vsub.f32 %v847, %v854
    %856 = vst.msk [vmem:[#allocation2] sm:$0x3] %vm843, %v855
    // Predicated region
    $region22: #{cnn_adam_forward.3} parent=1 // pred_check
      _
    $region23: #{cnn_adam_forward.3} parent=1 // pred_check_branch
      %858 = sbr.rel (0) target = $region25
    $region24: #{cnn_adam_forward.3} parent=1 // pred_region
      %s860 = ssub.s32 32, 32
      %861 = vsyncadd [#allocation3], %s860
      %s863 = sshll.u32 [#allocation2], 4
      %s864 = int_to_ptr.vmem [resolvable:$true] %s863
      %866 = dma.vmem_to_hbm [thread:$0]  %s864, 32, %s5, [#allocation3]
    $region25: #{cnn_adam_forward.3} parent=1 // pred_fallthru
      _
    // Predicated region
    $region26: #{cnn_adam_forward.3} parent=1 // pred_check
      _
    $region27: #{cnn_adam_forward.3} parent=1 // pred_check_branch
      %868 = sbr.rel (0) target = $region29
    $region28: #{cnn_adam_forward.3} parent=1 // pred_region
      %869 = dma.done [#allocation3], 32
    $region29: #{cnn_adam_forward.3} parent=1 // pred_fallthru
      _
    %870 = vsyncpa [#allocation3], 1

// kernel: cnn_adam_forward.2
$region0: #{cnn_adam_forward.2}
  #allocation0 [shape = 'u32[]', space=smem, size = 0x4, offset = 0x4, fixed_abs, tag = 'smem constant byte address 0x4 - core index']
  #allocation1 [shape = 'u32[144,128]{1,0:T(1,128)}', space=vmem, size = 0x12000, scoped, tag = 'internal scratch']
  %s0 = inlined_call_operand.vmem [shape: f32[2,240,16], index: 0, kind: input, shape index: {}]
  %s1 = inlined_call_operand.vmem [shape: f32[16,256], index: 1, kind: input, shape index: {}]
  %s2 = inlined_call_operand.vmem [shape: f32[1,64], index: 2, kind: input, shape index: {}]
  %s3 = inlined_call_operand.vmem [shape: f32[3,64,96], index: 3, kind: input, shape index: {}]
  %s4 = inlined_call_operand.vmem [shape: f32[1,32], index: 4, kind: input, shape index: {}]
  %s5 = inlined_call_operand.vmem [shape: f32[160,192], index: 5, kind: input, shape index: {}]
  %s6 = inlined_call_operand.vmem [shape: f32[2,40,32], index: 6, kind: output, shape index: {}]
  %s7 = sld [smem:[#allocation0]]
  $region34: #{cnn_adam_forward.2} parent=0
    _
  %s9 = ssub.s32 1, %s7
  %s10 = scalar_select 0, %s9, %s7
  // Predicated region
  $region2: #{cnn_adam_forward.2} parent=0 // pred_check
    _
  $region3: #{cnn_adam_forward.2} parent=0 // pred_check_branch
    %12 = sbr.rel (0) target = $region5
  $region4: #{cnn_adam_forward.2} parent=0 // pred_region
    _
  $region5: #{cnn_adam_forward.2} parent=0 // pred_fallthru
    _
  // Predicated region
  $region6: #{cnn_adam_forward.2} parent=0 // pred_check
    _
  $region7: #{cnn_adam_forward.2} parent=0 // pred_check_branch
    %14 = sbr.rel (0) target = $region9
  $region8: #{cnn_adam_forward.2} parent=0 // pred_region
    _
  $region9: #{cnn_adam_forward.2} parent=0 // pred_fallthru
    _
  // Predicated region
  $region10: #{cnn_adam_forward.2} parent=0 // pred_check
    _
  $region11: #{cnn_adam_forward.2} parent=0 // pred_check_branch
    %16 = sbr.rel (0) target = $region13
  $region12: #{cnn_adam_forward.2} parent=0 // pred_region
    _
  $region13: #{cnn_adam_forward.2} parent=0 // pred_fallthru
    _
  // Predicated region
  $region14: #{cnn_adam_forward.2} parent=0 // pred_check
    _
  $region15: #{cnn_adam_forward.2} parent=0 // pred_check_branch
    %18 = sbr.rel (0) target = $region17
  $region16: #{cnn_adam_forward.2} parent=0 // pred_region
    _
  $region17: #{cnn_adam_forward.2} parent=0 // pred_fallthru
    _
  // Predicated region
  $region18: #{cnn_adam_forward.2} parent=0 // pred_check
    _
  $region19: #{cnn_adam_forward.2} parent=0 // pred_check_branch
    %20 = sbr.rel (0) target = $region21
  $region20: #{cnn_adam_forward.2} parent=0 // pred_region
    _
  $region21: #{cnn_adam_forward.2} parent=0 // pred_fallthru
    _
  // Predicated region
  $region22: #{cnn_adam_forward.2} parent=0 // pred_check
    _
  $region23: #{cnn_adam_forward.2} parent=0 // pred_check_branch
    %22 = sbr.rel (0) target = $region25
  $region24: #{cnn_adam_forward.2} parent=0 // pred_region
    _
  $region25: #{cnn_adam_forward.2} parent=0 // pred_fallthru
    _
  %v23 = vld [vmem:[%s0] sm:$0xff]
  %v24 = vld [vmem:[%s0 + $0x8] sm:$0xff]
  %v25 = vld [vmem:[%s0 + $0x10] sm:$0xff]
  %v26 = vld [vmem:[%s0 + $0x18] sm:$0xff]
  %v27 = vld [vmem:[%s0 + $0x20] sm:$0xff]
  %v28 = vld [vmem:[%s0 + $0x28] sm:$0xff]
  %v29 = vld [vmem:[%s0 + $0x30] sm:$0xff]
  %v30 = vld [vmem:[%s0 + $0x38] sm:$0xff]
  %v31 = vld [vmem:[%s0 + $0x40] sm:$0xff]
  %v32 = vld [vmem:[%s0 + $0x48] sm:$0xff]
  %v33 = vld [vmem:[%s0 + $0x50] sm:$0xff]
  %v34 = vld [vmem:[%s0 + $0x58] sm:$0xff]
  %v35 = vld [vmem:[%s0 + $0x60] sm:$0xff]
  %v36 = vld [vmem:[%s0 + $0x68] sm:$0xff]
  %v37 = vld [vmem:[%s0 + $0x70] sm:$0xff]
  %v38 = vld [vmem:[%s0 + $0x78] sm:$0xff]
  %v39 = vld [vmem:[%s0 + $0x80] sm:$0xff]
  %v40 = vld [vmem:[%s0 + $0x88] sm:$0xff]
  %v41 = vld [vmem:[%s0 + $0x90] sm:$0xff]
  %v42 = vld [vmem:[%s0 + $0x98] sm:$0xff]
  %v43 = vld [vmem:[%s0 + $0xa0] sm:$0xff]
  %v44 = vld [vmem:[%s0 + $0xa8] sm:$0xff]
  %v45 = vld [vmem:[%s0 + $0xb0] sm:$0xff]
  %v46 = vld [vmem:[%s0 + $0xb8] sm:$0xff]
  %v47 = vld [vmem:[%s0 + $0xc0] sm:$0xff]
  %v48 = vld [vmem:[%s0 + $0xc8] sm:$0xff]
  %v49 = vld [vmem:[%s0 + $0xd0] sm:$0xff]
  %v50 = vld [vmem:[%s0 + $0xd8] sm:$0xff]
  %v51 = vld [vmem:[%s0 + $0xe0] sm:$0xff]
  %v52 = vld [vmem:[%s0 + $0xe8] sm:$0xff]
  %v53 = vld [vmem:[%s0 + $0xf0] sm:$0xff]
  %v54 = vld [vmem:[%s0 + $0xf8] sm:$0xff]
  %v55 = vld [vmem:[%s0 + $0x100] sm:$0xff]
  %v56 = vld [vmem:[%s0 + $0x108] sm:$0xff]
  %v57 = vld [vmem:[%s0 + $0x110] sm:$0xff]
  %v58 = vld [vmem:[%s0 + $0x118] sm:$0xff]
  %v59 = vld [vmem:[%s0 + $0x120] sm:$0xff]
  %v60 = vld [vmem:[%s0 + $0x128] sm:$0xff]
  %v61 = vld [vmem:[%s0 + $0x130] sm:$0xff]
  %v62 = vld [vmem:[%s0 + $0x138] sm:$0xff]
  %v63 = vld [vmem:[%s0 + $0x140] sm:$0xff]
  %v64 = vld [vmem:[%s0 + $0x148] sm:$0xff]
  %v65 = vld [vmem:[%s0 + $0x150] sm:$0xff]
  %v66 = vld [vmem:[%s0 + $0x158] sm:$0xff]
  %v67 = vld [vmem:[%s0 + $0x160] sm:$0xff]
  %v68 = vld [vmem:[%s0 + $0x168] sm:$0xff]
  %v69 = vld [vmem:[%s0 + $0x170] sm:$0xff]
  %v70 = vld [vmem:[%s0 + $0x178] sm:$0xff]
  %v71 = vld [vmem:[%s0 + $0x180] sm:$0xff]
  %v72 = vld [vmem:[%s0 + $0x188] sm:$0xff]
  %v73 = vld [vmem:[%s0 + $0x190] sm:$0xff]
  %v74 = vld [vmem:[%s0 + $0x198] sm:$0xff]
  %v75 = vld [vmem:[%s0 + $0x1a0] sm:$0xff]
  %v76 = vld [vmem:[%s0 + $0x1a8] sm:$0xff]
  %v77 = vld [vmem:[%s0 + $0x1b0] sm:$0xff]
  %v78 = vld [vmem:[%s0 + $0x1b8] sm:$0xff]
  %v79 = vld [vmem:[%s0 + $0x1c0] sm:$0xff]
  %v80 = vld [vmem:[%s0 + $0x1c8] sm:$0xff]
  %v81 = vld [vmem:[%s0 + $0x1d0] sm:$0xff]
  %v82 = vld [vmem:[%s0 + $0x1d8] sm:$0xff]
  %v83 = vld [vmem:[%s1] sm:$0xff]
  %v84 = vld [vmem:[%s1 + $0x8] sm:$0xff]
  %v85 = vld [vmem:[%s1 + $0x10] sm:$0xff]
  %v86 = vld [vmem:[%s1 + $0x18] sm:$0xff]
  %vm87 = vcmask 130048
  %v89 = vsel %vm87, %v23, 0
  %v92 = vsel %vm87, %v24, 0
  %v95 = vsel %vm87, %v25, 0
  %v98 = vsel %vm87, %v26, 0
  %v101 = vsel %vm87, %v27, 0
  %v104 = vsel %vm87, %v28, 0
  %v107 = vsel %vm87, %v29, 0
  %v110 = vsel %vm87, %v30, 0
  %v113 = vsel %vm87, %v31, 0
  %v116 = vsel %vm87, %v32, 0
  %v119 = vsel %vm87, %v33, 0
  %v122 = vsel %vm87, %v34, 0
  %v125 = vsel %vm87, %v35, 0
  %v128 = vsel %vm87, %v36, 0
  %v131 = vsel %vm87, %v37, 0
  %v134 = vsel %vm87, %v38, 0
  %v137 = vsel %vm87, %v39, 0
  %v140 = vsel %vm87, %v40, 0
  %v143 = vsel %vm87, %v41, 0
  %v146 = vsel %vm87, %v42, 0
  %v149 = vsel %vm87, %v43, 0
  %v152 = vsel %vm87, %v44, 0
  %v155 = vsel %vm87, %v45, 0
  %v158 = vsel %vm87, %v46, 0
  %v161 = vsel %vm87, %v47, 0
  %v164 = vsel %vm87, %v48, 0
  %v167 = vsel %vm87, %v49, 0
  %v170 = vsel %vm87, %v50, 0
  %v173 = vsel %vm87, %v51, 0
  %v176 = vsel %vm87, %v52, 0
  %v179 = vsel %vm87, %v53, 0
  %v182 = vsel %vm87, %v54, 0
  %v185 = vsel %vm87, %v55, 0
  %v188 = vsel %vm87, %v56, 0
  %v191 = vsel %vm87, %v57, 0
  %v194 = vsel %vm87, %v58, 0
  %v197 = vsel %vm87, %v59, 0
  %v200 = vsel %vm87, %v60, 0
  %v203 = vsel %vm87, %v61, 0
  %v206 = vsel %vm87, %v62, 0
  %v209 = vsel %vm87, %v63, 0
  %v212 = vsel %vm87, %v64, 0
  %v215 = vsel %vm87, %v65, 0
  %v218 = vsel %vm87, %v66, 0
  %v221 = vsel %vm87, %v67, 0
  %v224 = vsel %vm87, %v68, 0
  %v227 = vsel %vm87, %v69, 0
  %v230 = vsel %vm87, %v70, 0
  %v233 = vsel %vm87, %v71, 0
  %v236 = vsel %vm87, %v72, 0
  %v239 = vsel %vm87, %v73, 0
  %v242 = vsel %vm87, %v74, 0
  %v245 = vsel %vm87, %v75, 0
  %v248 = vsel %vm87, %v76, 0
  %v251 = vsel %vm87, %v77, 0
  %v254 = vsel %vm87, %v78, 0
  %v257 = vsel %vm87, %v79, 0
  %v260 = vsel %vm87, %v80, 0
  %v263 = vsel %vm87, %v81, 0
  %v266 = vsel %vm87, %v82, 0
  %268 = vmatprep.subr.mxu0 %v84
  %269 = vmatpush1.msra.mxu0 %v83
  %270 = vmatprep.subr.mxu0 %v86
  %271 = vmatpush1.msra.mxu0 %v85
  %272 = vmatprep.subr.mxu0 0.0
  %273 = vmatpush1.msra.mxu0 0.0
  %274 = vmatprep.subr.mxu0 0.0
  %275 = vmatpush1.msra.mxu0 0.0
  %276 = vmatprep.subr.mxu0 0.0
  %277 = vmatpush1.msra.mxu0 0.0
  %278 = vmatprep.subr.mxu0 0.0
  %279 = vmatpush1.msra.mxu0 0.0
  %280 = vmatprep.subr.mxu0 0.0
  %281 = vmatpush1.msra.mxu0 0.0
  %282 = vmatprep.subr.mxu0 0.0
  %283 = vmatpush1.msra.mxu0 0.0
  %284 = vmatprep.subr.mxu0 0.0
  %285 = vmatpush1.msra.mxu0 0.0
  %286 = vmatprep.subr.mxu0 0.0
  %287 = vmatpush1.msra.mxu0 0.0
  %288 = vmatprep.subr.mxu0 0.0
  %289 = vmatpush1.msra.mxu0 0.0
  %290 = vmatprep.subr.mxu0 0.0
  %291 = vmatpush1.msra.mxu0 0.0
  %292 = vmatprep.subr.mxu0 0.0
  %293 = vmatpush1.msra.mxu0 0.0
  %294 = vmatprep.subr.mxu0 0.0
  %295 = vmatpush1.msra.mxu0 0.0
  %296 = vmatprep.subr.mxu0 0.0
  %297 = vmatpush1.msra.mxu0 0.0
  %298 = vmatprep.subr.mxu0 0.0
  %299 = vmatpush1.msra.mxu0 0.0
  %300 = vmatprep.subr.mxu0 0.0
  %301 = vmatpush1.msra.mxu0 0.0
  %302 = vmatprep.subr.mxu0 0.0
  %303 = vmatpush1.msra.mxu0 0.0
  %304 = vmatprep.subr.mxu0 0.0
  %305 = vmatpush1.msra.mxu0 0.0
  %306 = vmatprep.subr.mxu0 0.0
  %307 = vmatpush1.msra.mxu0 0.0
  %308 = vmatprep.subr.mxu0 0.0
  %309 = vmatpush1.msra.mxu0 0.0
  %310 = vmatprep.subr.mxu0 0.0
  %311 = vmatpush1.msra.mxu0 0.0
  %312 = vmatprep.subr.mxu0 0.0
  %313 = vmatpush1.msra.mxu0 0.0
  %314 = vmatprep.subr.mxu0 0.0
  %315 = vmatpush1.msra.mxu0 0.0
  %316 = vmatprep.subr.mxu0 0.0
  %317 = vmatpush1.msra.mxu0 0.0
  %318 = vmatprep.subr.mxu0 0.0
  %319 = vmatpush1.msra.mxu0 0.0
  %320 = vmatprep.subr.mxu0 0.0
  %321 = vmatpush1.msra.mxu0 0.0
  %322 = vmatprep.subr.mxu0 0.0
  %323 = vmatpush1.msra.mxu0 0.0
  %324 = vmatprep.subr.mxu0 0.0
  %325 = vmatpush1.msra.mxu0 0.0
  %326 = vmatprep.subr.mxu0 0.0
  %327 = vmatpush1.msra.mxu0 0.0
  %328 = vmatprep.subr.mxu0 0.0
  %329 = vmatpush1.msra.mxu0 0.0
  %330 = vmatprep.subr.mxu0 0.0
  %331 = vmatpush1.msra.mxu0 0.0
  %332 = vmatprep.mubr.f32.mxu0 0.0
  %333 = vmatmul.mubr.f32.gmra.mrb[0].mxu0 %v89
  %v334 = vpop.f32.mrb[0].mxu0
  %v335 = vadd.f32 0.0, %v334
  %v336 = vpop.f32.mrb[0].mxu0
  %v337 = vadd.f32 0.0, %v336
  %338 = vmatprep.mubr.f32.mxu0 0.0
  %339 = vmatmul.mubr.f32.gmra.mrb[0].mxu0 %v92
  %v340 = vpop.f32.mrb[0].mxu0
  %v341 = vadd.f32 0.0, %v340
  %v342 = vpop.f32.mrb[0].mxu0
  %v343 = vadd.f32 0.0, %v342
  %344 = vmatprep.mubr.f32.mxu0 0.0
  %345 = vmatmul.mubr.f32.gmra.mrb[0].mxu0 %v95
  %v346 = vpop.f32.mrb[0].mxu0
  %v347 = vadd.f32 0.0, %v346
  %v348 = vpop.f32.mrb[0].mxu0
  %v349 = vadd.f32 0.0, %v348
  %350 = vmatprep.mubr.f32.mxu0 0.0
  %351 = vmatmul.mubr.f32.gmra.mrb[0].mxu0 %v98
  %v352 = vpop.f32.mrb[0].mxu0
  %v353 = vadd.f32 0.0, %v352
  %v354 = vpop.f32.mrb[0].mxu0
  %v355 = vadd.f32 0.0, %v354
  %356 = vmatprep.mubr.f32.mxu0 0.0
  %357 = vmatmul.mubr.f32.gmra.mrb[0].mxu0 %v101
  %v358 = vpop.f32.mrb[0].mxu0
  %v359 = vadd.f32 0.0, %v358
  %v360 = vpop.f32.mrb[0].mxu0
  %v361 = vadd.f32 0.0, %v360
  %362 = vmatprep.mubr.f32.mxu0 0.0
  %363 = vmatmul.mubr.f32.gmra.mrb[0].mxu0 %v104
  %v364 = vpop.f32.mrb[0].mxu0
  %v365 = vadd.f32 0.0, %v364
  %v366 = vpop.f32.mrb[0].mxu0
  %v367 = vadd.f32 0.0, %v366
  %368 = vmatprep.mubr.f32.mxu0 0.0
  %369 = vmatmul.mubr.f32.gmra.mrb[0].mxu0 %v107
  %v370 = vpop.f32.mrb[0].mxu0
  %v371 = vadd.f32 0.0, %v370
  %v372 = vpop.f32.mrb[0].mxu0
  %v373 = vadd.f32 0.0, %v372
  %374 = vmatprep.mubr.f32.mxu0 0.0
  %375 = vmatmul.mubr.f32.gmra.mrb[0].mxu0 %v110
  %v376 = vpop.f32.mrb[0].mxu0
  %v377 = vadd.f32 0.0, %v376
  %v378 = vpop.f32.mrb[0].mxu0
  %v379 = vadd.f32 0.0, %v378
  %380 = vmatprep.mubr.f32.mxu0 0.0
  %381 = vmatmul.mubr.f32.gmra.mrb[0].mxu0 %v113
  %v382 = vpop.f32.mrb[0].mxu0
  %v383 = vadd.f32 0.0, %v382
  %v384 = vpop.f32.mrb[0].mxu0
  %v385 = vadd.f32 0.0, %v384
  %386 = vmatprep.mubr.f32.mxu0 0.0
  %387 = vmatmul.mubr.f32.gmra.mrb[0].mxu0 %v116
  %v388 = vpop.f32.mrb[0].mxu0
  %v389 = vadd.f32 0.0, %v388
  %v390 = vpop.f32.mrb[0].mxu0
  %v391 = vadd.f32 0.0, %v390
  %392 = vmatprep.mubr.f32.mxu0 0.0
  %393 = vmatmul.mubr.f32.gmra.mrb[0].mxu0 %v119
  %v394 = vpop.f32.mrb[0].mxu0
  %v395 = vadd.f32 0.0, %v394
  %v396 = vpop.f32.mrb[0].mxu0
  %v397 = vadd.f32 0.0, %v396
  %398 = vmatprep.mubr.f32.mxu0 0.0
  %399 = vmatmul.mubr.f32.gmra.mrb[0].mxu0 %v122
  %v400 = vpop.f32.mrb[0].mxu0
  %v401 = vadd.f32 0.0, %v400
  %v402 = vpop.f32.mrb[0].mxu0
  %v403 = vadd.f32 0.0, %v402
  %404 = vmatprep.mubr.f32.mxu0 0.0
  %405 = vmatmul.mubr.f32.gmra.mrb[0].mxu0 %v125
  %v406 = vpop.f32.mrb[0].mxu0
  %v407 = vadd.f32 0.0, %v406
  %v408 = vpop.f32.mrb[0].mxu0
  %v409 = vadd.f32 0.0, %v408
  %410 = vmatprep.mubr.f32.mxu0 0.0
  %411 = vmatmul.mubr.f32.gmra.mrb[0].mxu0 %v128
  %v412 = vpop.f32.mrb[0].mxu0
  %v413 = vadd.f32 0.0, %v412
  %v414 = vpop.f32.mrb[0].mxu0
  %v415 = vadd.f32 0.0, %v414
  %416 = vmatprep.mubr.f32.mxu0 0.0
  %417 = vmatmul.mubr.f32.gmra.mrb[0].mxu0 %v131
  %v418 = vpop.f32.mrb[0].mxu0
  %v419 = vadd.f32 0.0, %v418
  %v420 = vpop.f32.mrb[0].mxu0
  %v421 = vadd.f32 0.0, %v420
  %422 = vmatprep.mubr.f32.mxu0 0.0
  %423 = vmatmul.mubr.f32.gmra.mrb[0].mxu0 %v134
  %v424 = vpop.f32.mrb[0].mxu0
  %v425 = vadd.f32 0.0, %v424
  %v426 = vpop.f32.mrb[0].mxu0
  %v427 = vadd.f32 0.0, %v426
  %428 = vmatprep.mubr.f32.mxu0 0.0
  %429 = vmatmul.mubr.f32.gmra.mrb[0].mxu0 %v137
  %v430 = vpop.f32.mrb[0].mxu0
  %v431 = vadd.f32 0.0, %v430
  %v432 = vpop.f32.mrb[0].mxu0
  %v433 = vadd.f32 0.0, %v432
  %434 = vmatprep.mubr.f32.mxu0 0.0
  %435 = vmatmul.mubr.f32.gmra.mrb[0].mxu0 %v140
  %v436 = vpop.f32.mrb[0].mxu0
  %v437 = vadd.f32 0.0, %v436
  %v438 = vpop.f32.mrb[0].mxu0
  %v439 = vadd.f32 0.0, %v438
  %440 = vmatprep.mubr.f32.mxu0 0.0
  %441 = vmatmul.mubr.f32.gmra.mrb[0].mxu0 %v143
  %v442 = vpop.f32.mrb[0].mxu0
  %v443 = vadd.f32 0.0, %v442
  %v444 = vpop.f32.mrb[0].mxu0
  %v445 = vadd.f32 0.0, %v444
  %446 = vmatprep.mubr.f32.mxu0 0.0
  %447 = vmatmul.mubr.f32.gmra.mrb[0].mxu0 %v146
  %v448 = vpop.f32.mrb[0].mxu0
  %v449 = vadd.f32 0.0, %v448
  %v450 = vpop.f32.mrb[0].mxu0
  %v451 = vadd.f32 0.0, %v450
  %452 = vmatprep.mubr.f32.mxu0 0.0
  %453 = vmatmul.mubr.f32.gmra.mrb[0].mxu0 %v149
  %v454 = vpop.f32.mrb[0].mxu0
  %v455 = vadd.f32 0.0, %v454
  %v456 = vpop.f32.mrb[0].mxu0
  %v457 = vadd.f32 0.0, %v456
  %458 = vmatprep.mubr.f32.mxu0 0.0
  %459 = vmatmul.mubr.f32.gmra.mrb[0].mxu0 %v152
  %v460 = vpop.f32.mrb[0].mxu0
  %v461 = vadd.f32 0.0, %v460
  %v462 = vpop.f32.mrb[0].mxu0
  %v463 = vadd.f32 0.0, %v462
  %464 = vmatprep.mubr.f32.mxu0 0.0
  %465 = vmatmul.mubr.f32.gmra.mrb[0].mxu0 %v155
  %v466 = vpop.f32.mrb[0].mxu0
  %v467 = vadd.f32 0.0, %v466
  %v468 = vpop.f32.mrb[0].mxu0
  %v469 = vadd.f32 0.0, %v468
  %470 = vmatprep.mubr.f32.mxu0 0.0
  %471 = vmatmul.mubr.f32.gmra.mrb[0].mxu0 %v158
  %v472 = vpop.f32.mrb[0].mxu0
  %v473 = vadd.f32 0.0, %v472
  %v474 = vpop.f32.mrb[0].mxu0
  %v475 = vadd.f32 0.0, %v474
  %476 = vmatprep.mubr.f32.mxu0 0.0
  %477 = vmatmul.mubr.f32.gmra.mrb[0].mxu0 %v161
  %v478 = vpop.f32.mrb[0].mxu0
  %v479 = vadd.f32 0.0, %v478
  %v480 = vpop.f32.mrb[0].mxu0
  %v481 = vadd.f32 0.0, %v480
  %482 = vmatprep.mubr.f32.mxu0 0.0
  %483 = vmatmul.mubr.f32.gmra.mrb[0].mxu0 %v164
  %v484 = vpop.f32.mrb[0].mxu0
  %v485 = vadd.f32 0.0, %v484
  %v486 = vpop.f32.mrb[0].mxu0
  %v487 = vadd.f32 0.0, %v486
  %488 = vmatprep.mubr.f32.mxu0 0.0
  %489 = vmatmul.mubr.f32.gmra.mrb[0].mxu0 %v167
  %v490 = vpop.f32.mrb[0].mxu0
  %v491 = vadd.f32 0.0, %v490
  %v492 = vpop.f32.mrb[0].mxu0
  %v493 = vadd.f32 0.0, %v492
  %494 = vmatprep.mubr.f32.mxu0 0.0
  %495 = vmatmul.mubr.f32.gmra.mrb[0].mxu0 %v170
  %v496 = vpop.f32.mrb[0].mxu0
  %v497 = vadd.f32 0.0, %v496
  %v498 = vpop.f32.mrb[0].mxu0
  %v499 = vadd.f32 0.0, %v498
  %500 = vmatprep.mubr.f32.mxu0 0.0
  %501 = vmatmul.mubr.f32.gmra.mrb[0].mxu0 %v173
  %v502 = vpop.f32.mrb[0].mxu0
  %v503 = vadd.f32 0.0, %v502
  %v504 = vpop.f32.mrb[0].mxu0
  %v505 = vadd.f32 0.0, %v504
  %506 = vmatprep.mubr.f32.mxu0 0.0
  %507 = vmatmul.mubr.f32.gmra.mrb[0].mxu0 %v176
  %v508 = vpop.f32.mrb[0].mxu0
  %v509 = vpop.f32.mrb[0].mxu0
  %510 = vmatprep.mubr.f32.mxu0 0.0
  %511 = vmatmul.mubr.f32.gmra.mrb[0].mxu0 %v179
  %v512 = vpop.f32.mrb[0].mxu0
  %v513 = vadd.f32 0.0, %v512
  %v514 = vpop.f32.mrb[0].mxu0
  %v515 = vadd.f32 0.0, %v514
  %516 = vmatprep.mubr.f32.mxu0 0.0
  %517 = vmatmul.mubr.f32.gmra.mrb[0].mxu0 %v182
  %v518 = vpop.f32.mrb[0].mxu0
  %v519 = vadd.f32 0.0, %v518
  %v520 = vpop.f32.mrb[0].mxu0
  %v521 = vadd.f32 0.0, %v520
  %522 = vmatprep.mubr.f32.mxu0 0.0
  %523 = vmatmul.mubr.f32.gmra.mrb[0].mxu0 %v185
  %v524 = vpop.f32.mrb[0].mxu0
  %v525 = vadd.f32 0.0, %v524
  %v526 = vpop.f32.mrb[0].mxu0
  %v527 = vadd.f32 0.0, %v526
  %528 = vmatprep.mubr.f32.mxu0 0.0
  %529 = vmatmul.mubr.f32.gmra.mrb[0].mxu0 %v188
  %v530 = vpop.f32.mrb[0].mxu0
  %v531 = vadd.f32 0.0, %v530
  %v532 = vpop.f32.mrb[0].mxu0
  %v533 = vadd.f32 0.0, %v532
  %534 = vmatprep.mubr.f32.mxu0 0.0
  %535 = vmatmul.mubr.f32.gmra.mrb[0].mxu0 %v191
  %v536 = vpop.f32.mrb[0].mxu0
  %v537 = vadd.f32 0.0, %v536
  %v538 = vpop.f32.mrb[0].mxu0
  %v539 = vadd.f32 0.0, %v538
  %540 = vmatprep.mubr.f32.mxu0 0.0
  %541 = vmatmul.mubr.f32.gmra.mrb[0].mxu0 %v194
  %v542 = vpop.f32.mrb[0].mxu0
  %v543 = vadd.f32 0.0, %v542
  %v544 = vpop.f32.mrb[0].mxu0
  %v545 = vadd.f32 0.0, %v544
  %546 = vmatprep.mubr.f32.mxu0 0.0
  %547 = vmatmul.mubr.f32.gmra.mrb[0].mxu0 %v197
  %v548 = vpop.f32.mrb[0].mxu0
  %v549 = vadd.f32 0.0, %v548
  %v550 = vpop.f32.mrb[0].mxu0
  %v551 = vadd.f32 0.0, %v550
  %552 = vmatprep.mubr.f32.mxu0 0.0
  %553 = vmatmul.mubr.f32.gmra.mrb[0].mxu0 %v200
  %v554 = vpop.f32.mrb[0].mxu0
  %v555 = vadd.f32 0.0, %v554
  %v556 = vpop.f32.mrb[0].mxu0
  %v557 = vadd.f32 0.0, %v556
  %558 = vmatprep.mubr.f32.mxu0 0.0
  %559 = vmatmul.mubr.f32.gmra.mrb[0].mxu0 %v203
  %v560 = vpop.f32.mrb[0].mxu0
  %v561 = vadd.f32 0.0, %v560
  %v562 = vpop.f32.mrb[0].mxu0
  %v563 = vadd.f32 0.0, %v562
  %564 = vmatprep.mubr.f32.mxu0 0.0
  %565 = vmatmul.mubr.f32.gmra.mrb[0].mxu0 %v206
  %v566 = vpop.f32.mrb[0].mxu0
  %v567 = vadd.f32 0.0, %v566
  %v568 = vpop.f32.mrb[0].mxu0
  %v569 = vadd.f32 0.0, %v568
  %570 = vmatprep.mubr.f32.mxu0 0.0
  %571 = vmatmul.mubr.f32.gmra.mrb[0].mxu0 %v209
  %v572 = vpop.f32.mrb[0].mxu0
  %v573 = vadd.f32 0.0, %v572
  %v574 = vpop.f32.mrb[0].mxu0
  %v575 = vadd.f32 0.0, %v574
  %576 = vmatprep.mubr.f32.mxu0 0.0
  %577 = vmatmul.mubr.f32.gmra.mrb[0].mxu0 %v212
  %v578 = vpop.f32.mrb[0].mxu0
  %v579 = vadd.f32 0.0, %v578
  %v580 = vpop.f32.mrb[0].mxu0
  %v581 = vadd.f32 0.0, %v580
  %582 = vmatprep.mubr.f32.mxu0 0.0
  %583 = vmatmul.mubr.f32.gmra.mrb[0].mxu0 %v215
  %v584 = vpop.f32.mrb[0].mxu0
  %v585 = vadd.f32 0.0, %v584
  %v586 = vpop.f32.mrb[0].mxu0
  %v587 = vadd.f32 0.0, %v586
  %588 = vmatprep.mubr.f32.mxu0 0.0
  %589 = vmatmul.mubr.f32.gmra.mrb[0].mxu0 %v218
  %v590 = vpop.f32.mrb[0].mxu0
  %v591 = vadd.f32 0.0, %v590
  %v592 = vpop.f32.mrb[0].mxu0
  %v593 = vadd.f32 0.0, %v592
  %594 = vmatprep.mubr.f32.mxu0 0.0
  %595 = vmatmul.mubr.f32.gmra.mrb[0].mxu0 %v221
  %v596 = vpop.f32.mrb[0].mxu0
  %v597 = vadd.f32 0.0, %v596
  %v598 = vpop.f32.mrb[0].mxu0
  %v599 = vadd.f32 0.0, %v598
  %600 = vmatprep.mubr.f32.mxu0 0.0
  %601 = vmatmul.mubr.f32.gmra.mrb[0].mxu0 %v224
  %v602 = vpop.f32.mrb[0].mxu0
  %v603 = vadd.f32 0.0, %v602
  %v604 = vpop.f32.mrb[0].mxu0
  %v605 = vadd.f32 0.0, %v604
  %606 = vmatprep.mubr.f32.mxu0 0.0
  %607 = vmatmul.mubr.f32.gmra.mrb[0].mxu0 %v227
  %v608 = vpop.f32.mrb[0].mxu0
  %v609 = vadd.f32 0.0, %v608
  %v610 = vpop.f32.mrb[0].mxu0
  %v611 = vadd.f32 0.0, %v610
  %612 = vmatprep.mubr.f32.mxu0 0.0
  %613 = vmatmul.mubr.f32.gmra.mrb[0].mxu0 %v230
  %v614 = vpop.f32.mrb[0].mxu0
  %v615 = vadd.f32 0.0, %v614
  %v616 = vpop.f32.mrb[0].mxu0
  %v617 = vadd.f32 0.0, %v616
  %618 = vmatprep.mubr.f32.mxu0 0.0
  %619 = vmatmul.mubr.f32.gmra.mrb[0].mxu0 %v233
  %v620 = vpop.f32.mrb[0].mxu0
  %v621 = vadd.f32 0.0, %v620
  %v622 = vpop.f32.mrb[0].mxu0
  %v623 = vadd.f32 0.0, %v622
  %624 = vmatprep.mubr.f32.mxu0 0.0
  %625 = vmatmul.mubr.f32.gmra.mrb[0].mxu0 %v236
  %v626 = vpop.f32.mrb[0].mxu0
  %v627 = vadd.f32 0.0, %v626
  %v628 = vpop.f32.mrb[0].mxu0
  %v629 = vadd.f32 0.0, %v628
  %630 = vmatprep.mubr.f32.mxu0 0.0
  %631 = vmatmul.mubr.f32.gmra.mrb[0].mxu0 %v239
  %v632 = vpop.f32.mrb[0].mxu0
  %v633 = vadd.f32 0.0, %v632
  %v634 = vpop.f32.mrb[0].mxu0
  %v635 = vadd.f32 0.0, %v634
  %636 = vmatprep.mubr.f32.mxu0 0.0
  %637 = vmatmul.mubr.f32.gmra.mrb[0].mxu0 %v242
  %v638 = vpop.f32.mrb[0].mxu0
  %v639 = vadd.f32 0.0, %v638
  %v640 = vpop.f32.mrb[0].mxu0
  %v641 = vadd.f32 0.0, %v640
  %642 = vmatprep.mubr.f32.mxu0 0.0
  %643 = vmatmul.mubr.f32.gmra.mrb[0].mxu0 %v245
  %v644 = vpop.f32.mrb[0].mxu0
  %v645 = vadd.f32 0.0, %v644
  %v646 = vpop.f32.mrb[0].mxu0
  %v647 = vadd.f32 0.0, %v646
  %648 = vmatprep.mubr.f32.mxu0 0.0
  %649 = vmatmul.mubr.f32.gmra.mrb[0].mxu0 %v248
  %v650 = vpop.f32.mrb[0].mxu0
  %v651 = vadd.f32 0.0, %v650
  %v652 = vpop.f32.mrb[0].mxu0
  %v653 = vadd.f32 0.0, %v652
  %654 = vmatprep.mubr.f32.mxu0 0.0
  %655 = vmatmul.mubr.f32.gmra.mrb[0].mxu0 %v251
  %v656 = vpop.f32.mrb[0].mxu0
  %v657 = vadd.f32 0.0, %v656
  %v658 = vpop.f32.mrb[0].mxu0
  %v659 = vadd.f32 0.0, %v658
  %660 = vmatprep.mubr.f32.mxu0 0.0
  %661 = vmatmul.mubr.f32.gmra.mrb[0].mxu0 %v254
  %v662 = vpop.f32.mrb[0].mxu0
  %v663 = vadd.f32 0.0, %v662
  %v664 = vpop.f32.mrb[0].mxu0
  %v665 = vadd.f32 0.0, %v664
  %666 = vmatprep.mubr.f32.mxu0 0.0
  %667 = vmatmul.mubr.f32.gmra.mrb[0].mxu0 %v257
  %v668 = vpop.f32.mrb[0].mxu0
  %v669 = vadd.f32 0.0, %v668
  %v670 = vpop.f32.mrb[0].mxu0
  %v671 = vadd.f32 0.0, %v670
  %672 = vmatprep.mubr.f32.mxu0 0.0
  %673 = vmatmul.mubr.f32.gmra.mrb[0].mxu0 %v260
  %v674 = vpop.f32.mrb[0].mxu0
  %v675 = vadd.f32 0.0, %v674
  %v676 = vpop.f32.mrb[0].mxu0
  %v677 = vadd.f32 0.0, %v676
  %678 = vmatprep.mubr.f32.mxu0 0.0
  %679 = vmatmul.mubr.f32.gmra.mrb[0].mxu0 %v263
  %v680 = vpop.f32.mrb[0].mxu0
  %v681 = vadd.f32 0.0, %v680
  %v682 = vpop.f32.mrb[0].mxu0
  %v683 = vadd.f32 0.0, %v682
  %684 = vmatprep.mubr.f32.mxu0 0.0
  %685 = vmatmul.mubr.f32.gmra.mrb[0].mxu0 %v266
  %v686 = vpop.f32.mrb[0].mxu0
  %v687 = vpop.f32.mrb[0].mxu0
  %688 = vdwg.mxu0
  %v689 = vmax.f32 %v335, %v337
  %v690 = vmax.f32 %v341, %v343
  %v691 = vmax.f32 %v347, %v349
  %v692 = vmax.f32 %v353, %v355
  %v693 = vmax.f32 %v359, %v361
  %v694 = vmax.f32 %v365, %v367
  %v695 = vmax.f32 %v371, %v373
  %v696 = vmax.f32 %v377, %v379
  %v697 = vmax.f32 %v383, %v385
  %v698 = vmax.f32 %v389, %v391
  %v699 = vmax.f32 %v395, %v397
  %v700 = vmax.f32 %v401, %v403
  %v701 = vmax.f32 %v407, %v409
  %v702 = vmax.f32 %v413, %v415
  %v703 = vmax.f32 %v419, %v421
  %v704 = vmax.f32 %v425, %v427
  %v705 = vmax.f32 %v431, %v433
  %v706 = vmax.f32 %v437, %v439
  %v707 = vmax.f32 %v443, %v445
  %v708 = vmax.f32 %v449, %v451
  %v709 = vmax.f32 %v455, %v457
  %v710 = vmax.f32 %v461, %v463
  %v711 = vmax.f32 %v467, %v469
  %v712 = vmax.f32 %v473, %v475
  %v713 = vmax.f32 %v479, %v481
  %v714 = vmax.f32 %v485, %v487
  %v715 = vmax.f32 %v491, %v493
  %v716 = vmax.f32 %v497, %v499
  %v717 = vmax.f32 %v503, %v505
  %v718 = vmax.f32 %v513, %v515
  %v719 = vmax.f32 %v519, %v521
  %v720 = vmax.f32 %v525, %v527
  %v721 = vmax.f32 %v531, %v533
  %v722 = vmax.f32 %v537, %v539
  %v723 = vmax.f32 %v543, %v545
  %v724 = vmax.f32 %v549, %v551
  %v725 = vmax.f32 %v555, %v557
  %v726 = vmax.f32 %v561, %v563
  %v727 = vmax.f32 %v567, %v569
  %v728 = vmax.f32 %v573, %v575
  %v729 = vmax.f32 %v579, %v581
  %v730 = vmax.f32 %v585, %v587
  %v731 = vmax.f32 %v591, %v593
  %v732 = vmax.f32 %v597, %v599
  %v733 = vmax.f32 %v603, %v605
  %v734 = vmax.f32 %v609, %v611
  %v735 = vmax.f32 %v615, %v617
  %v736 = vmax.f32 %v621, %v623
  %v737 = vmax.f32 %v627, %v629
  %v738 = vmax.f32 %v633, %v635
  %v739 = vmax.f32 %v639, %v641
  %v740 = vmax.f32 %v645, %v647
  %v741 = vmax.f32 %v651, %v653
  %v742 = vmax.f32 %v657, %v659
  %v743 = vmax.f32 %v663, %v665
  %v744 = vmax.f32 %v669, %v671
  %v745 = vmax.f32 %v675, %v677
  %v746 = vmax.f32 %v681, %v683
  %805 = vrot.lane.b32.xlu0 %v689, 64
  %v806 = vpop.permute.xlu0 %805
  %807 = vrot.lane.b32.xlu0 %v690, 64
  %v808 = vpop.permute.xlu0 %807
  %809 = vrot.lane.b32.xlu0 %v691, 64
  %v810 = vpop.permute.xlu0 %809
  %811 = vrot.lane.b32.xlu0 %v692, 64
  %v812 = vpop.permute.xlu0 %811
  %813 = vrot.lane.b32.xlu0 %v693, 64
  %v814 = vpop.permute.xlu0 %813
  %815 = vrot.lane.b32.xlu0 %v694, 64
  %v816 = vpop.permute.xlu0 %815
  %817 = vrot.lane.b32.xlu0 %v695, 64
  %v818 = vpop.permute.xlu0 %817
  %819 = vrot.lane.b32.xlu0 %v696, 64
  %v820 = vpop.permute.xlu0 %819
  %821 = vrot.lane.b32.xlu0 %v697, 64
  %v822 = vpop.permute.xlu0 %821
  %823 = vrot.lane.b32.xlu0 %v698, 64
  %v824 = vpop.permute.xlu0 %823
  %825 = vrot.lane.b32.xlu0 %v699, 64
  %v826 = vpop.permute.xlu0 %825
  %827 = vrot.lane.b32.xlu0 %v700, 64
  %v828 = vpop.permute.xlu0 %827
  %829 = vrot.lane.b32.xlu0 %v701, 64
  %v830 = vpop.permute.xlu0 %829
  %831 = vrot.lane.b32.xlu0 %v702, 64
  %v832 = vpop.permute.xlu0 %831
  %833 = vrot.lane.b32.xlu0 %v703, 64
  %v834 = vpop.permute.xlu0 %833
  %835 = vrot.lane.b32.xlu0 %v704, 64
  %v836 = vpop.permute.xlu0 %835
  %837 = vrot.lane.b32.xlu0 %v705, 64
  %v838 = vpop.permute.xlu0 %837
  %839 = vrot.lane.b32.xlu0 %v706, 64
  %v840 = vpop.permute.xlu0 %839
  %841 = vrot.lane.b32.xlu0 %v707, 64
  %v842 = vpop.permute.xlu0 %841
  %843 = vrot.lane.b32.xlu0 %v708, 64
  %v844 = vpop.permute.xlu0 %843
  %845 = vrot.lane.b32.xlu0 %v709, 64
  %v846 = vpop.permute.xlu0 %845
  %847 = vrot.lane.b32.xlu0 %v710, 64
  %v848 = vpop.permute.xlu0 %847
  %849 = vrot.lane.b32.xlu0 %v711, 64
  %v850 = vpop.permute.xlu0 %849
  %851 = vrot.lane.b32.xlu0 %v712, 64
  %v852 = vpop.permute.xlu0 %851
  %853 = vrot.lane.b32.xlu0 %v713, 64
  %v854 = vpop.permute.xlu0 %853
  %855 = vrot.lane.b32.xlu0 %v714, 64
  %v856 = vpop.permute.xlu0 %855
  %857 = vrot.lane.b32.xlu0 %v715, 64
  %v858 = vpop.permute.xlu0 %857
  %859 = vrot.lane.b32.xlu0 %v716, 64
  %v860 = vpop.permute.xlu0 %859
  %861 = vrot.lane.b32.xlu0 %v717, 64
  %v862 = vpop.permute.xlu0 %861
  %863 = vrot.lane.b32.xlu0 %v718, 64
  %v864 = vpop.permute.xlu0 %863
  %865 = vrot.lane.b32.xlu0 %v719, 64
  %v866 = vpop.permute.xlu0 %865
  %867 = vrot.lane.b32.xlu0 %v720, 64
  %v868 = vpop.permute.xlu0 %867
  %869 = vrot.lane.b32.xlu0 %v721, 64
  %v870 = vpop.permute.xlu0 %869
  %871 = vrot.lane.b32.xlu0 %v722, 64
  %v872 = vpop.permute.xlu0 %871
  %873 = vrot.lane.b32.xlu0 %v723, 64
  %v874 = vpop.permute.xlu0 %873
  %875 = vrot.lane.b32.xlu0 %v724, 64
  %v876 = vpop.permute.xlu0 %875
  %877 = vrot.lane.b32.xlu0 %v725, 64
  %v878 = vpop.permute.xlu0 %877
  %879 = vrot.lane.b32.xlu0 %v726, 64
  %v880 = vpop.permute.xlu0 %879
  %881 = vrot.lane.b32.xlu0 %v727, 64
  %v882 = vpop.permute.xlu0 %881
  %883 = vrot.lane.b32.xlu0 %v728, 64
  %v884 = vpop.permute.xlu0 %883
  %885 = vrot.lane.b32.xlu0 %v729, 64
  %v886 = vpop.permute.xlu0 %885
  %887 = vrot.lane.b32.xlu0 %v730, 64
  %v888 = vpop.permute.xlu0 %887
  %889 = vrot.lane.b32.xlu0 %v731, 64
  %v890 = vpop.permute.xlu0 %889
  %891 = vrot.lane.b32.xlu0 %v732, 64
  %v892 = vpop.permute.xlu0 %891
  %893 = vrot.lane.b32.xlu0 %v733, 64
  %v894 = vpop.permute.xlu0 %893
  %895 = vrot.lane.b32.xlu0 %v734, 64
  %v896 = vpop.permute.xlu0 %895
  %897 = vrot.lane.b32.xlu0 %v735, 64
  %v898 = vpop.permute.xlu0 %897
  %899 = vrot.lane.b32.xlu0 %v736, 64
  %v900 = vpop.permute.xlu0 %899
  %901 = vrot.lane.b32.xlu0 %v737, 64
  %v902 = vpop.permute.xlu0 %901
  %903 = vrot.lane.b32.xlu0 %v738, 64
  %v904 = vpop.permute.xlu0 %903
  %905 = vrot.lane.b32.xlu0 %v739, 64
  %v906 = vpop.permute.xlu0 %905
  %907 = vrot.lane.b32.xlu0 %v740, 64
  %v908 = vpop.permute.xlu0 %907
  %909 = vrot.lane.b32.xlu0 %v741, 64
  %v910 = vpop.permute.xlu0 %909
  %911 = vrot.lane.b32.xlu0 %v742, 64
  %v912 = vpop.permute.xlu0 %911
  %913 = vrot.lane.b32.xlu0 %v743, 64
  %v914 = vpop.permute.xlu0 %913
  %915 = vrot.lane.b32.xlu0 %v744, 64
  %v916 = vpop.permute.xlu0 %915
  %917 = vrot.lane.b32.xlu0 %v745, 64
  %v918 = vpop.permute.xlu0 %917
  %919 = vrot.lane.b32.xlu0 %v746, 64
  %v920 = vpop.permute.xlu0 %919
  %v979 = vmax.f32 %v689, %v806
  %v980 = vmax.f32 %v690, %v808
  %v981 = vmax.f32 %v691, %v810
  %v982 = vmax.f32 %v692, %v812
  %v983 = vmax.f32 %v693, %v814
  %v984 = vmax.f32 %v694, %v816
  %v985 = vmax.f32 %v695, %v818
  %v986 = vmax.f32 %v696, %v820
  %v987 = vmax.f32 %v697, %v822
  %v988 = vmax.f32 %v698, %v824
  %v989 = vmax.f32 %v699, %v826
  %v990 = vmax.f32 %v700, %v828
  %v991 = vmax.f32 %v701, %v830
  %v992 = vmax.f32 %v702, %v832
  %v993 = vmax.f32 %v703, %v834
  %v994 = vmax.f32 %v704, %v836
  %v995 = vmax.f32 %v705, %v838
  %v996 = vmax.f32 %v706, %v840
  %v997 = vmax.f32 %v707, %v842
  %v998 = vmax.f32 %v708, %v844
  %v999 = vmax.f32 %v709, %v846
  %v1000 = vmax.f32 %v710, %v848
  %v1001 = vmax.f32 %v711, %v850
  %v1002 = vmax.f32 %v712, %v852
  %v1003 = vmax.f32 %v713, %v854
  %v1004 = vmax.f32 %v714, %v856
  %v1005 = vmax.f32 %v715, %v858
  %v1006 = vmax.f32 %v716, %v860
  %v1007 = vmax.f32 %v717, %v862
  %v1008 = vmax.f32 %v718, %v864
  %v1009 = vmax.f32 %v719, %v866
  %v1010 = vmax.f32 %v720, %v868
  %v1011 = vmax.f32 %v721, %v870
  %v1012 = vmax.f32 %v722, %v872
  %v1013 = vmax.f32 %v723, %v874
  %v1014 = vmax.f32 %v724, %v876
  %v1015 = vmax.f32 %v725, %v878
  %v1016 = vmax.f32 %v726, %v880
  %v1017 = vmax.f32 %v727, %v882
  %v1018 = vmax.f32 %v728, %v884
  %v1019 = vmax.f32 %v729, %v886
  %v1020 = vmax.f32 %v730, %v888
  %v1021 = vmax.f32 %v731, %v890
  %v1022 = vmax.f32 %v732, %v892
  %v1023 = vmax.f32 %v733, %v894
  %v1024 = vmax.f32 %v734, %v896
  %v1025 = vmax.f32 %v735, %v898
  %v1026 = vmax.f32 %v736, %v900
  %v1027 = vmax.f32 %v737, %v902
  %v1028 = vmax.f32 %v738, %v904
  %v1029 = vmax.f32 %v739, %v906
  %v1030 = vmax.f32 %v740, %v908
  %v1031 = vmax.f32 %v741, %v910
  %v1032 = vmax.f32 %v742, %v912
  %v1033 = vmax.f32 %v743, %v914
  %v1034 = vmax.f32 %v744, %v916
  %v1035 = vmax.f32 %v745, %v918
  %v1036 = vmax.f32 %v746, %v920
  %v1037 = vld [vmem:[%s2] sm:$0x1]
  %v1039 = vlaneseq
  %v1040 = vshrl.u32 %v1039, 7
  %v1041 = vsub.s32 0, %v1040
  %v1042 = vrot.slane %v1037, %v1041
  %v1044 = vadd.f32 %v979, %v1042
  %v1045 = vadd.f32 %v980, %v1042
  %v1046 = vadd.f32 %v981, %v1042
  %v1047 = vadd.f32 %v982, %v1042
  %v1048 = vadd.f32 %v983, %v1042
  %v1049 = vadd.f32 %v984, %v1042
  %v1050 = vadd.f32 %v985, %v1042
  %v1051 = vadd.f32 %v986, %v1042
  %v1052 = vadd.f32 %v987, %v1042
  %v1053 = vadd.f32 %v988, %v1042
  %v1054 = vadd.f32 %v989, %v1042
  %v1055 = vadd.f32 %v990, %v1042
  %v1056 = vadd.f32 %v991, %v1042
  %v1057 = vadd.f32 %v992, %v1042
  %v1058 = vadd.f32 %v993, %v1042
  %v1059 = vadd.f32 %v994, %v1042
  %v1060 = vadd.f32 %v995, %v1042
  %v1061 = vadd.f32 %v996, %v1042
  %v1062 = vadd.f32 %v997, %v1042
  %v1063 = vadd.f32 %v998, %v1042
  %v1064 = vadd.f32 %v999, %v1042
  %v1065 = vadd.f32 %v1000, %v1042
  %v1066 = vadd.f32 %v1001, %v1042
  %v1067 = vadd.f32 %v1002, %v1042
  %v1068 = vadd.f32 %v1003, %v1042
  %v1069 = vadd.f32 %v1004, %v1042
  %v1070 = vadd.f32 %v1005, %v1042
  %v1071 = vadd.f32 %v1006, %v1042
  %v1072 = vadd.f32 %v1007, %v1042
  %v1073 = vadd.f32 %v1008, %v1042
  %v1074 = vadd.f32 %v1009, %v1042
  %v1075 = vadd.f32 %v1010, %v1042
  %v1076 = vadd.f32 %v1011, %v1042
  %v1077 = vadd.f32 %v1012, %v1042
  %v1078 = vadd.f32 %v1013, %v1042
  %v1079 = vadd.f32 %v1014, %v1042
  %v1080 = vadd.f32 %v1015, %v1042
  %v1081 = vadd.f32 %v1016, %v1042
  %v1082 = vadd.f32 %v1017, %v1042
  %v1083 = vadd.f32 %v1018, %v1042
  %v1084 = vadd.f32 %v1019, %v1042
  %v1085 = vadd.f32 %v1020, %v1042
  %v1086 = vadd.f32 %v1021, %v1042
  %v1087 = vadd.f32 %v1022, %v1042
  %v1088 = vadd.f32 %v1023, %v1042
  %v1089 = vadd.f32 %v1024, %v1042
  %v1090 = vadd.f32 %v1025, %v1042
  %v1091 = vadd.f32 %v1026, %v1042
  %v1092 = vadd.f32 %v1027, %v1042
  %v1093 = vadd.f32 %v1028, %v1042
  %v1094 = vadd.f32 %v1029, %v1042
  %v1095 = vadd.f32 %v1030, %v1042
  %v1096 = vadd.f32 %v1031, %v1042
  %v1097 = vadd.f32 %v1032, %v1042
  %v1098 = vadd.f32 %v1033, %v1042
  %v1099 = vadd.f32 %v1034, %v1042
  %v1100 = vadd.f32 %v1035, %v1042
  %v1101 = vadd.f32 %v1036, %v1042
  %v1102 = vmax.f32 %v1044, 0.0
  %v1103 = vmax.f32 %v1045, 0.0
  %v1104 = vmax.f32 %v1046, 0.0
  %v1105 = vmax.f32 %v1047, 0.0
  %v1106 = vmax.f32 %v1048, 0.0
  %v1107 = vmax.f32 %v1049, 0.0
  %v1108 = vmax.f32 %v1050, 0.0
  %v1109 = vmax.f32 %v1051, 0.0
  %v1110 = vmax.f32 %v1052, 0.0
  %v1111 = vmax.f32 %v1053, 0.0
  %v1112 = vmax.f32 %v1054, 0.0
  %v1113 = vmax.f32 %v1055, 0.0
  %v1114 = vmax.f32 %v1056, 0.0
  %v1115 = vmax.f32 %v1057, 0.0
  %v1116 = vmax.f32 %v1058, 0.0
  %v1117 = vmax.f32 %v1059, 0.0
  %v1118 = vmax.f32 %v1060, 0.0
  %v1119 = vmax.f32 %v1061, 0.0
  %v1120 = vmax.f32 %v1062, 0.0
  %v1121 = vmax.f32 %v1063, 0.0
  %v1122 = vmax.f32 %v1064, 0.0
  %v1123 = vmax.f32 %v1065, 0.0
  %v1124 = vmax.f32 %v1066, 0.0
  %v1125 = vmax.f32 %v1067, 0.0
  %v1126 = vmax.f32 %v1068, 0.0
  %v1127 = vmax.f32 %v1069, 0.0
  %v1128 = vmax.f32 %v1070, 0.0
  %v1129 = vmax.f32 %v1071, 0.0
  %v1130 = vmax.f32 %v1072, 0.0
  %v1131 = vmax.f32 %v1073, 0.0
  %v1132 = vmax.f32 %v1074, 0.0
  %v1133 = vmax.f32 %v1075, 0.0
  %v1134 = vmax.f32 %v1076, 0.0
  %v1135 = vmax.f32 %v1077, 0.0
  %v1136 = vmax.f32 %v1078, 0.0
  %v1137 = vmax.f32 %v1079, 0.0
  %v1138 = vmax.f32 %v1080, 0.0
  %v1139 = vmax.f32 %v1081, 0.0
  %v1140 = vmax.f32 %v1082, 0.0
  %v1141 = vmax.f32 %v1083, 0.0
  %v1142 = vmax.f32 %v1084, 0.0
  %v1143 = vmax.f32 %v1085, 0.0
  %v1144 = vmax.f32 %v1086, 0.0
  %v1145 = vmax.f32 %v1087, 0.0
  %v1146 = vmax.f32 %v1088, 0.0
  %v1147 = vmax.f32 %v1089, 0.0
  %v1148 = vmax.f32 %v1090, 0.0
  %v1149 = vmax.f32 %v1091, 0.0
  %v1150 = vmax.f32 %v1092, 0.0
  %v1151 = vmax.f32 %v1093, 0.0
  %v1152 = vmax.f32 %v1094, 0.0
  %v1153 = vmax.f32 %v1095, 0.0
  %v1154 = vmax.f32 %v1096, 0.0
  %v1155 = vmax.f32 %v1097, 0.0
  %v1156 = vmax.f32 %v1098, 0.0
  %v1157 = vmax.f32 %v1099, 0.0
  %v1158 = vmax.f32 %v1100, 0.0
  %v1159 = vmax.f32 %v1101, 0.0
  %v1160 = vld [vmem:[%s3] sm:$0xff]
  %v1161 = vld [vmem:[%s3 + $0x8] sm:$0xff]
  %v1162 = vld [vmem:[%s3 + $0x10] sm:$0xff]
  %v1163 = vld [vmem:[%s3 + $0x18] sm:$0xff]
  %v1164 = vld [vmem:[%s3 + $0x20] sm:$0xff]
  %v1165 = vld [vmem:[%s3 + $0x28] sm:$0xff]
  %v1166 = vld [vmem:[%s3 + $0x30] sm:$0xff]
  %v1167 = vld [vmem:[%s3 + $0x38] sm:$0xff]
  %s1168 = scalar_lea.vmem %s3, 64
  %v1169 = vld [vmem:[%s1168] sm:$0xff]
  %v1170 = vld [vmem:[%s1168 + $0x8] sm:$0xff]
  %v1171 = vld [vmem:[%s1168 + $0x10] sm:$0xff]
  %v1172 = vld [vmem:[%s1168 + $0x18] sm:$0xff]
  %v1173 = vld [vmem:[%s1168 + $0x20] sm:$0xff]
  %v1174 = vld [vmem:[%s1168 + $0x28] sm:$0xff]
  %v1175 = vld [vmem:[%s1168 + $0x30] sm:$0xff]
  %v1176 = vld [vmem:[%s1168 + $0x38] sm:$0xff]
  %vm1177 = vcmask 523264
  %v1179 = vsel %vm1177, %v1104, 0
  %v1182 = vsel %vm1177, %v1105, 0
  %v1185 = vsel %vm1177, %v1106, 0
  %v1188 = vsel %vm1177, %v1107, 0
  %v1191 = vsel %vm1177, %v1108, 0
  %v1194 = vsel %vm1177, %v1109, 0
  %v1197 = vsel %vm1177, %v1110, 0
  %v1200 = vsel %vm1177, %v1111, 0
  %v1203 = vsel %vm1177, %v1112, 0
  %v1206 = vsel %vm1177, %v1113, 0
  %v1209 = vsel %vm1177, %v1114, 0
  %v1212 = vsel %vm1177, %v1115, 0
  %v1215 = vsel %vm1177, %v1116, 0
  %v1218 = vsel %vm1177, %v1117, 0
  %v1221 = vsel %vm1177, %v1118, 0
  %v1224 = vsel %vm1177, %v1119, 0
  %v1227 = vsel %vm1177, %v1120, 0
  %v1230 = vsel %vm1177, %v1121, 0
  %v1233 = vsel %vm1177, %v1122, 0
  %v1236 = vsel %vm1177, %v1123, 0
  %v1239 = vsel %vm1177, %v1124, 0
  %v1242 = vsel %vm1177, %v1125, 0
  %v1245 = vsel %vm1177, %v1126, 0
  %v1248 = vsel %vm1177, %v1127, 0
  %v1251 = vsel %vm1177, %v1128, 0
  %v1254 = vsel %vm1177, %v1133, 0
  %v1257 = vsel %vm1177, %v1134, 0
  %v1260 = vsel %vm1177, %v1135, 0
  %v1263 = vsel %vm1177, %v1136, 0
  %v1266 = vsel %vm1177, %v1137, 0
  %v1269 = vsel %vm1177, %v1138, 0
  %v1272 = vsel %vm1177, %v1139, 0
  %v1275 = vsel %vm1177, %v1140, 0
  %v1278 = vsel %vm1177, %v1141, 0
  %v1281 = vsel %vm1177, %v1142, 0
  %v1284 = vsel %vm1177, %v1143, 0
  %v1287 = vsel %vm1177, %v1144, 0
  %v1290 = vsel %vm1177, %v1145, 0
  %v1293 = vsel %vm1177, %v1146, 0
  %v1296 = vsel %vm1177, %v1147, 0
  %v1299 = vsel %vm1177, %v1148, 0
  %v1302 = vsel %vm1177, %v1149, 0
  %v1305 = vsel %vm1177, %v1150, 0
  %v1308 = vsel %vm1177, %v1151, 0
  %v1311 = vsel %vm1177, %v1152, 0
  %v1314 = vsel %vm1177, %v1153, 0
  %v1317 = vsel %vm1177, %v1154, 0
  %v1320 = vsel %vm1177, %v1155, 0
  %v1323 = vsel %vm1177, %v1156, 0
  %v1326 = vsel %vm1177, %v1157, 0
  %1328 = vmatprep.subr.mxu0 0.0
  %1329 = vmatpush1.msra.mxu0 %v1169
  %1330 = vmatprep.subr.mxu0 0.0
  %1331 = vmatpush1.msra.mxu0 %v1170
  %1332 = vmatprep.subr.mxu0 0.0
  %1333 = vmatpush1.msra.mxu0 %v1171
  %1334 = vmatprep.subr.mxu0 0.0
  %1335 = vmatpush1.msra.mxu0 %v1172
  %1336 = vmatprep.subr.mxu0 0.0
  %1337 = vmatpush1.msra.mxu0 %v1173
  %1338 = vmatprep.subr.mxu0 0.0
  %1339 = vmatpush1.msra.mxu0 %v1174
  %1340 = vmatprep.subr.mxu0 0.0
  %1341 = vmatpush1.msra.mxu0 %v1175
  %1342 = vmatprep.subr.mxu0 0.0
  %1343 = vmatpush1.msra.mxu0 %v1176
  %1344 = vmatprep.subr.mxu0 0.0
  %1345 = vmatpush1.msra.mxu0 0.0
  %1346 = vmatprep.subr.mxu0 0.0
  %1347 = vmatpush1.msra.mxu0 0.0
  %1348 = vmatprep.subr.mxu0 0.0
  %1349 = vmatpush1.msra.mxu0 0.0
  %1350 = vmatprep.subr.mxu0 0.0
  %1351 = vmatpush1.msra.mxu0 0.0
  %1352 = vmatprep.subr.mxu0 0.0
  %1353 = vmatpush1.msra.mxu0 0.0
  %1354 = vmatprep.subr.mxu0 0.0
  %1355 = vmatpush1.msra.mxu0 0.0
  %1356 = vmatprep.subr.mxu0 0.0
  %1357 = vmatpush1.msra.mxu0 0.0
  %1358 = vmatprep.subr.mxu0 0.0
  %1359 = vmatpush1.msra.mxu0 0.0
  %1360 = vmatprep.subr.mxu0 0.0
  %1361 = vmatpush1.msra.mxu0 0.0
  %1362 = vmatprep.subr.mxu0 0.0
  %1363 = vmatpush1.msra.mxu0 0.0
  %1364 = vmatprep.subr.mxu0 0.0
  %1365 = vmatpush1.msra.mxu0 0.0
  %1366 = vmatprep.subr.mxu0 0.0
  %1367 = vmatpush1.msra.mxu0 0.0
  %1368 = vmatprep.subr.mxu0 0.0
  %1369 = vmatpush1.msra.mxu0 0.0
  %1370 = vmatprep.subr.mxu0 0.0
  %1371 = vmatpush1.msra.mxu0 0.0
  %1372 = vmatprep.subr.mxu0 0.0
  %1373 = vmatpush1.msra.mxu0 0.0
  %1374 = vmatprep.subr.mxu0 0.0
  %1375 = vmatpush1.msra.mxu0 0.0
  %1376 = vmatprep.subr.mxu0 0.0
  %1377 = vmatpush1.msra.mxu0 0.0
  %1378 = vmatprep.subr.mxu0 0.0
  %1379 = vmatpush1.msra.mxu0 0.0
  %1380 = vmatprep.subr.mxu0 0.0
  %1381 = vmatpush1.msra.mxu0 0.0
  %1382 = vmatprep.subr.mxu0 0.0
  %1383 = vmatpush1.msra.mxu0 0.0
  %1384 = vmatprep.subr.mxu0 0.0
  %1385 = vmatpush1.msra.mxu0 0.0
  %1386 = vmatprep.subr.mxu0 0.0
  %1387 = vmatpush1.msra.mxu0 0.0
  %1388 = vmatprep.subr.mxu0 0.0
  %1389 = vmatpush1.msra.mxu0 0.0
  %1390 = vmatprep.subr.mxu0 0.0
  %1391 = vmatpush1.msra.mxu0 0.0
  %1392 = vmatprep.mubr.f32.mxu0 0.0
  %1393 = vmatmul.mubr.f32.gmra.mrb[0].mxu0 %v1179
  %v1394 = vpop.f32.mrb[0].mxu0
  %v1395 = vadd.f32 0.0, %v1394
  %v1396 = vpop.f32.mrb[0].mxu0
  %1397 = vmatprep.mubr.f32.mxu0 0.0
  %1398 = vmatmul.mubr.f32.gmra.mrb[0].mxu0 %v1182
  %v1399 = vpop.f32.mrb[0].mxu0
  %v1400 = vadd.f32 0.0, %v1399
  %v1401 = vpop.f32.mrb[0].mxu0
  %1402 = vmatprep.mubr.f32.mxu0 0.0
  %1403 = vmatmul.mubr.f32.gmra.mrb[0].mxu0 %v1185
  %v1404 = vpop.f32.mrb[0].mxu0
  %v1405 = vadd.f32 0.0, %v1404
  %v1406 = vpop.f32.mrb[0].mxu0
  %1407 = vmatprep.mubr.f32.mxu0 0.0
  %1408 = vmatmul.mubr.f32.gmra.mrb[0].mxu0 %v1188
  %v1409 = vpop.f32.mrb[0].mxu0
  %v1410 = vadd.f32 0.0, %v1409
  %v1411 = vpop.f32.mrb[0].mxu0
  %1412 = vmatprep.mubr.f32.mxu0 0.0
  %1413 = vmatmul.mubr.f32.gmra.mrb[0].mxu0 %v1191
  %v1414 = vpop.f32.mrb[0].mxu0
  %v1415 = vadd.f32 0.0, %v1414
  %v1416 = vpop.f32.mrb[0].mxu0
  %1417 = vmatprep.mubr.f32.mxu0 0.0
  %1418 = vmatmul.mubr.f32.gmra.mrb[0].mxu0 %v1194
  %v1419 = vpop.f32.mrb[0].mxu0
  %v1420 = vadd.f32 0.0, %v1419
  %v1421 = vpop.f32.mrb[0].mxu0
  %1422 = vmatprep.mubr.f32.mxu0 0.0
  %1423 = vmatmul.mubr.f32.gmra.mrb[0].mxu0 %v1197
  %v1424 = vpop.f32.mrb[0].mxu0
  %v1425 = vadd.f32 0.0, %v1424
  %v1426 = vpop.f32.mrb[0].mxu0
  %1427 = vmatprep.mubr.f32.mxu0 0.0
  %1428 = vmatmul.mubr.f32.gmra.mrb[0].mxu0 %v1200
  %v1429 = vpop.f32.mrb[0].mxu0
  %v1430 = vadd.f32 0.0, %v1429
  %v1431 = vpop.f32.mrb[0].mxu0
  %1432 = vmatprep.mubr.f32.mxu0 0.0
  %1433 = vmatmul.mubr.f32.gmra.mrb[0].mxu0 %v1203
  %v1434 = vpop.f32.mrb[0].mxu0
  %v1435 = vadd.f32 0.0, %v1434
  %v1436 = vpop.f32.mrb[0].mxu0
  %1437 = vmatprep.mubr.f32.mxu0 0.0
  %1438 = vmatmul.mubr.f32.gmra.mrb[0].mxu0 %v1206
  %v1439 = vpop.f32.mrb[0].mxu0
  %v1440 = vadd.f32 0.0, %v1439
  %v1441 = vpop.f32.mrb[0].mxu0
  %1442 = vmatprep.mubr.f32.mxu0 0.0
  %1443 = vmatmul.mubr.f32.gmra.mrb[0].mxu0 %v1209
  %v1444 = vpop.f32.mrb[0].mxu0
  %v1445 = vadd.f32 0.0, %v1444
  %v1446 = vpop.f32.mrb[0].mxu0
  %1447 = vmatprep.mubr.f32.mxu0 0.0
  %1448 = vmatmul.mubr.f32.gmra.mrb[0].mxu0 %v1212
  %v1449 = vpop.f32.mrb[0].mxu0
  %v1450 = vadd.f32 0.0, %v1449
  %v1451 = vpop.f32.mrb[0].mxu0
  %1452 = vmatprep.mubr.f32.mxu0 0.0
  %1453 = vmatmul.mubr.f32.gmra.mrb[0].mxu0 %v1215
  %v1454 = vpop.f32.mrb[0].mxu0
  %v1455 = vadd.f32 0.0, %v1454
  %v1456 = vpop.f32.mrb[0].mxu0
  %1457 = vmatprep.mubr.f32.mxu0 0.0
  %1458 = vmatmul.mubr.f32.gmra.mrb[0].mxu0 %v1218
  %v1459 = vpop.f32.mrb[0].mxu0
  %v1460 = vadd.f32 0.0, %v1459
  %v1461 = vpop.f32.mrb[0].mxu0
  %1462 = vmatprep.mubr.f32.mxu0 0.0
  %1463 = vmatmul.mubr.f32.gmra.mrb[0].mxu0 %v1221
  %v1464 = vpop.f32.mrb[0].mxu0
  %v1465 = vadd.f32 0.0, %v1464
  %v1466 = vpop.f32.mrb[0].mxu0
  %1467 = vmatprep.mubr.f32.mxu0 0.0
  %1468 = vmatmul.mubr.f32.gmra.mrb[0].mxu0 %v1224
  %v1469 = vpop.f32.mrb[0].mxu0
  %v1470 = vadd.f32 0.0, %v1469
  %v1471 = vpop.f32.mrb[0].mxu0
  %1472 = vmatprep.mubr.f32.mxu0 0.0
  %1473 = vmatmul.mubr.f32.gmra.mrb[0].mxu0 %v1227
  %v1474 = vpop.f32.mrb[0].mxu0
  %v1475 = vadd.f32 0.0, %v1474
  %v1476 = vpop.f32.mrb[0].mxu0
  %1477 = vmatprep.mubr.f32.mxu0 0.0
  %1478 = vmatmul.mubr.f32.gmra.mrb[0].mxu0 %v1230
  %v1479 = vpop.f32.mrb[0].mxu0
  %v1480 = vadd.f32 0.0, %v1479
  %v1481 = vpop.f32.mrb[0].mxu0
  %1482 = vmatprep.mubr.f32.mxu0 0.0
  %1483 = vmatmul.mubr.f32.gmra.mrb[0].mxu0 %v1233
  %v1484 = vpop.f32.mrb[0].mxu0
  %v1485 = vadd.f32 0.0, %v1484
  %v1486 = vpop.f32.mrb[0].mxu0
  %1487 = vmatprep.mubr.f32.mxu0 0.0
  %1488 = vmatmul.mubr.f32.gmra.mrb[0].mxu0 %v1236
  %v1489 = vpop.f32.mrb[0].mxu0
  %v1490 = vadd.f32 0.0, %v1489
  %v1491 = vpop.f32.mrb[0].mxu0
  %1492 = vmatprep.mubr.f32.mxu0 0.0
  %1493 = vmatmul.mubr.f32.gmra.mrb[0].mxu0 %v1239
  %v1494 = vpop.f32.mrb[0].mxu0
  %v1495 = vadd.f32 0.0, %v1494
  %v1496 = vpop.f32.mrb[0].mxu0
  %1497 = vmatprep.mubr.f32.mxu0 0.0
  %1498 = vmatmul.mubr.f32.gmra.mrb[0].mxu0 %v1242
  %v1499 = vpop.f32.mrb[0].mxu0
  %v1500 = vadd.f32 0.0, %v1499
  %v1501 = vpop.f32.mrb[0].mxu0
  %1502 = vmatprep.mubr.f32.mxu0 0.0
  %1503 = vmatmul.mubr.f32.gmra.mrb[0].mxu0 %v1245
  %v1504 = vpop.f32.mrb[0].mxu0
  %v1505 = vadd.f32 0.0, %v1504
  %v1506 = vpop.f32.mrb[0].mxu0
  %1507 = vmatprep.mubr.f32.mxu0 0.0
  %1508 = vmatmul.mubr.f32.gmra.mrb[0].mxu0 %v1248
  %v1509 = vpop.f32.mrb[0].mxu0
  %v1510 = vadd.f32 0.0, %v1509
  %v1511 = vpop.f32.mrb[0].mxu0
  %1512 = vmatprep.mubr.f32.mxu0 0.0
  %1513 = vmatmul.mubr.f32.gmra.mrb[0].mxu0 %v1251
  %v1514 = vpop.f32.mrb[0].mxu0
  %v1515 = vadd.f32 0.0, %v1514
  %v1516 = vpop.f32.mrb[0].mxu0
  %1517 = vmatprep.mubr.f32.mxu0 0.0
  %1518 = vmatmul.mubr.f32.gmra.mrb[0].mxu0 %v1254
  %v1519 = vpop.f32.mrb[0].mxu0
  %v1520 = vadd.f32 0.0, %v1519
  %v1521 = vpop.f32.mrb[0].mxu0
  %1522 = vmatprep.mubr.f32.mxu0 0.0
  %1523 = vmatmul.mubr.f32.gmra.mrb[0].mxu0 %v1257
  %v1524 = vpop.f32.mrb[0].mxu0
  %v1525 = vadd.f32 0.0, %v1524
  %v1526 = vpop.f32.mrb[0].mxu0
  %1527 = vmatprep.mubr.f32.mxu0 0.0
  %1528 = vmatmul.mubr.f32.gmra.mrb[0].mxu0 %v1260
  %v1529 = vpop.f32.mrb[0].mxu0
  %v1530 = vadd.f32 0.0, %v1529
  %v1531 = vpop.f32.mrb[0].mxu0
  %1532 = vmatprep.mubr.f32.mxu0 0.0
  %1533 = vmatmul.mubr.f32.gmra.mrb[0].mxu0 %v1263
  %v1534 = vpop.f32.mrb[0].mxu0
  %v1535 = vadd.f32 0.0, %v1534
  %v1536 = vpop.f32.mrb[0].mxu0
  %1537 = vmatprep.mubr.f32.mxu0 0.0
  %1538 = vmatmul.mubr.f32.gmra.mrb[0].mxu0 %v1266
  %v1539 = vpop.f32.mrb[0].mxu0
  %v1540 = vadd.f32 0.0, %v1539
  %v1541 = vpop.f32.mrb[0].mxu0
  %1542 = vmatprep.mubr.f32.mxu0 0.0
  %1543 = vmatmul.mubr.f32.gmra.mrb[0].mxu0 %v1269
  %v1544 = vpop.f32.mrb[0].mxu0
  %v1545 = vadd.f32 0.0, %v1544
  %v1546 = vpop.f32.mrb[0].mxu0
  %1547 = vmatprep.mubr.f32.mxu0 0.0
  %1548 = vmatmul.mubr.f32.gmra.mrb[0].mxu0 %v1272
  %v1549 = vpop.f32.mrb[0].mxu0
  %v1550 = vadd.f32 0.0, %v1549
  %v1551 = vpop.f32.mrb[0].mxu0
  %1552 = vmatprep.mubr.f32.mxu0 0.0
  %1553 = vmatmul.mubr.f32.gmra.mrb[0].mxu0 %v1275
  %v1554 = vpop.f32.mrb[0].mxu0
  %v1555 = vadd.f32 0.0, %v1554
  %v1556 = vpop.f32.mrb[0].mxu0
  %1557 = vmatprep.mubr.f32.mxu0 0.0
  %1558 = vmatmul.mubr.f32.gmra.mrb[0].mxu0 %v1278
  %v1559 = vpop.f32.mrb[0].mxu0
  %v1560 = vadd.f32 0.0, %v1559
  %v1561 = vpop.f32.mrb[0].mxu0
  %1562 = vmatprep.mubr.f32.mxu0 0.0
  %1563 = vmatmul.mubr.f32.gmra.mrb[0].mxu0 %v1281
  %v1564 = vpop.f32.mrb[0].mxu0
  %v1565 = vadd.f32 0.0, %v1564
  %v1566 = vpop.f32.mrb[0].mxu0
  %1567 = vmatprep.mubr.f32.mxu0 0.0
  %1568 = vmatmul.mubr.f32.gmra.mrb[0].mxu0 %v1284
  %v1569 = vpop.f32.mrb[0].mxu0
  %v1570 = vadd.f32 0.0, %v1569
  %v1571 = vpop.f32.mrb[0].mxu0
  %1572 = vmatprep.mubr.f32.mxu0 0.0
  %1573 = vmatmul.mubr.f32.gmra.mrb[0].mxu0 %v1287
  %v1574 = vpop.f32.mrb[0].mxu0
  %v1575 = vadd.f32 0.0, %v1574
  %v1576 = vpop.f32.mrb[0].mxu0
  %1577 = vmatprep.mubr.f32.mxu0 0.0
  %1578 = vmatmul.mubr.f32.gmra.mrb[0].mxu0 %v1290
  %v1579 = vpop.f32.mrb[0].mxu0
  %v1580 = vadd.f32 0.0, %v1579
  %v1581 = vpop.f32.mrb[0].mxu0
  %1582 = vmatprep.mubr.f32.mxu0 0.0
  %1583 = vmatmul.mubr.f32.gmra.mrb[0].mxu0 %v1293
  %v1584 = vpop.f32.mrb[0].mxu0
  %v1585 = vadd.f32 0.0, %v1584
  %v1586 = vpop.f32.mrb[0].mxu0
  %1587 = vmatprep.mubr.f32.mxu0 0.0
  %1588 = vmatmul.mubr.f32.gmra.mrb[0].mxu0 %v1296
  %v1589 = vpop.f32.mrb[0].mxu0
  %v1590 = vadd.f32 0.0, %v1589
  %v1591 = vpop.f32.mrb[0].mxu0
  %1592 = vmatprep.mubr.f32.mxu0 0.0
  %1593 = vmatmul.mubr.f32.gmra.mrb[0].mxu0 %v1299
  %v1594 = vpop.f32.mrb[0].mxu0
  %v1595 = vadd.f32 0.0, %v1594
  %v1596 = vpop.f32.mrb[0].mxu0
  %1597 = vmatprep.mubr.f32.mxu0 0.0
  %1598 = vmatmul.mubr.f32.gmra.mrb[0].mxu0 %v1302
  %v1599 = vpop.f32.mrb[0].mxu0
  %v1600 = vadd.f32 0.0, %v1599
  %v1601 = vpop.f32.mrb[0].mxu0
  %1602 = vmatprep.mubr.f32.mxu0 0.0
  %1603 = vmatmul.mubr.f32.gmra.mrb[0].mxu0 %v1305
  %v1604 = vpop.f32.mrb[0].mxu0
  %v1605 = vadd.f32 0.0, %v1604
  %v1606 = vpop.f32.mrb[0].mxu0
  %1607 = vmatprep.mubr.f32.mxu0 0.0
  %1608 = vmatmul.mubr.f32.gmra.mrb[0].mxu0 %v1308
  %v1609 = vpop.f32.mrb[0].mxu0
  %v1610 = vadd.f32 0.0, %v1609
  %v1611 = vpop.f32.mrb[0].mxu0
  %1612 = vmatprep.mubr.f32.mxu0 0.0
  %1613 = vmatmul.mubr.f32.gmra.mrb[0].mxu0 %v1311
  %v1614 = vpop.f32.mrb[0].mxu0
  %v1615 = vadd.f32 0.0, %v1614
  %v1616 = vpop.f32.mrb[0].mxu0
  %1617 = vmatprep.mubr.f32.mxu0 0.0
  %1618 = vmatmul.mubr.f32.gmra.mrb[0].mxu0 %v1314
  %v1619 = vpop.f32.mrb[0].mxu0
  %v1620 = vadd.f32 0.0, %v1619
  %v1621 = vpop.f32.mrb[0].mxu0
  %1622 = vmatprep.mubr.f32.mxu0 0.0
  %1623 = vmatmul.mubr.f32.gmra.mrb[0].mxu0 %v1317
  %v1624 = vpop.f32.mrb[0].mxu0
  %v1625 = vadd.f32 0.0, %v1624
  %v1626 = vpop.f32.mrb[0].mxu0
  %1627 = vmatprep.mubr.f32.mxu0 0.0
  %1628 = vmatmul.mubr.f32.gmra.mrb[0].mxu0 %v1320
  %v1629 = vpop.f32.mrb[0].mxu0
  %v1630 = vadd.f32 0.0, %v1629
  %v1631 = vpop.f32.mrb[0].mxu0
  %1632 = vmatprep.mubr.f32.mxu0 0.0
  %1633 = vmatmul.mubr.f32.gmra.mrb[0].mxu0 %v1323
  %v1634 = vpop.f32.mrb[0].mxu0
  %v1635 = vadd.f32 0.0, %v1634
  %v1636 = vpop.f32.mrb[0].mxu0
  %1637 = vmatprep.mubr.f32.mxu0 0.0
  %1638 = vmatmul.mubr.f32.gmra.mrb[0].mxu0 %v1326
  %v1639 = vpop.f32.mrb[0].mxu0
  %v1640 = vadd.f32 0.0, %v1639
  %v1641 = vpop.f32.mrb[0].mxu0
  %1642 = vdwg.mxu0
  %v1644 = vsel %vm1177, %v1102, 0
  %v1647 = vsel %vm1177, %v1103, 0
  %v1650 = vsel %vm1177, %v1131, 0
  %v1653 = vsel %vm1177, %v1132, 0
  %1655 = vmatprep.subr.mxu0 0.0
  %1656 = vmatpush1.msra.mxu0 %v1160
  %1657 = vmatprep.subr.mxu0 0.0
  %1658 = vmatpush1.msra.mxu0 %v1161
  %1659 = vmatprep.subr.mxu0 0.0
  %1660 = vmatpush1.msra.mxu0 %v1162
  %1661 = vmatprep.subr.mxu0 0.0
  %1662 = vmatpush1.msra.mxu0 %v1163
  %1663 = vmatprep.subr.mxu0 0.0
  %1664 = vmatpush1.msra.mxu0 %v1164
  %1665 = vmatprep.subr.mxu0 0.0
  %1666 = vmatpush1.msra.mxu0 %v1165
  %1667 = vmatprep.subr.mxu0 0.0
  %1668 = vmatpush1.msra.mxu0 %v1166
  %1669 = vmatprep.subr.mxu0 0.0
  %1670 = vmatpush1.msra.mxu0 %v1167
  %1671 = vmatprep.subr.mxu0 0.0
  %1672 = vmatpush1.msra.mxu0 0.0
  %1673 = vmatprep.subr.mxu0 0.0
  %1674 = vmatpush1.msra.mxu0 0.0
  %1675 = vmatprep.subr.mxu0 0.0
  %1676 = vmatpush1.msra.mxu0 0.0
  %1677 = vmatprep.subr.mxu0 0.0
  %1678 = vmatpush1.msra.mxu0 0.0
  %1679 = vmatprep.subr.mxu0 0.0
  %1680 = vmatpush1.msra.mxu0 0.0
  %1681 = vmatprep.subr.mxu0 0.0
  %1682 = vmatpush1.msra.mxu0 0.0
  %1683 = vmatprep.subr.mxu0 0.0
  %1684 = vmatpush1.msra.mxu0 0.0
  %1685 = vmatprep.subr.mxu0 0.0
  %1686 = vmatpush1.msra.mxu0 0.0
  %1687 = vmatprep.subr.mxu0 0.0
  %1688 = vmatpush1.msra.mxu0 0.0
  %1689 = vmatprep.subr.mxu0 0.0
  %1690 = vmatpush1.msra.mxu0 0.0
  %1691 = vmatprep.subr.mxu0 0.0
  %1692 = vmatpush1.msra.mxu0 0.0
  %1693 = vmatprep.subr.mxu0 0.0
  %1694 = vmatpush1.msra.mxu0 0.0
  %1695 = vmatprep.subr.mxu0 0.0
  %1696 = vmatpush1.msra.mxu0 0.0
  %1697 = vmatprep.subr.mxu0 0.0
  %1698 = vmatpush1.msra.mxu0 0.0
  %1699 = vmatprep.subr.mxu0 0.0
  %1700 = vmatpush1.msra.mxu0 0.0
  %1701 = vmatprep.subr.mxu0 0.0
  %1702 = vmatpush1.msra.mxu0 0.0
  %1703 = vmatprep.subr.mxu0 0.0
  %1704 = vmatpush1.msra.mxu0 0.0
  %1705 = vmatprep.subr.mxu0 0.0
  %1706 = vmatpush1.msra.mxu0 0.0
  %1707 = vmatprep.subr.mxu0 0.0
  %1708 = vmatpush1.msra.mxu0 0.0
  %1709 = vmatprep.subr.mxu0 0.0
  %1710 = vmatpush1.msra.mxu0 0.0
  %1711 = vmatprep.subr.mxu0 0.0
  %1712 = vmatpush1.msra.mxu0 0.0
  %1713 = vmatprep.subr.mxu0 0.0
  %1714 = vmatpush1.msra.mxu0 0.0
  %1715 = vmatprep.subr.mxu0 0.0
  %1716 = vmatpush1.msra.mxu0 0.0
  %1717 = vmatprep.subr.mxu0 0.0
  %1718 = vmatpush1.msra.mxu0 0.0
  %1719 = vmatprep.mubr.f32.mxu0 0.0
  %1720 = vmatmul.mubr.f32.gmra.mrb[0].mxu0 %v1644
  %v1721 = vpop.f32.mrb[0].mxu0
  %v1722 = vadd.f32 %v1395, %v1721
  %v1723 = vpop.f32.mrb[0].mxu0
  %1724 = vmatprep.mubr.f32.mxu0 0.0
  %1725 = vmatmul.mubr.f32.gmra.mrb[0].mxu0 %v1647
  %v1726 = vpop.f32.mrb[0].mxu0
  %v1727 = vadd.f32 %v1400, %v1726
  %v1728 = vpop.f32.mrb[0].mxu0
  %1729 = vmatprep.mubr.f32.mxu0 0.0
  %1730 = vmatmul.mubr.f32.gmra.mrb[0].mxu0 %v1179
  %v1731 = vpop.f32.mrb[0].mxu0
  %v1732 = vadd.f32 %v1405, %v1731
  %v1733 = vpop.f32.mrb[0].mxu0
  %1734 = vmatprep.mubr.f32.mxu0 0.0
  %1735 = vmatmul.mubr.f32.gmra.mrb[0].mxu0 %v1182
  %v1736 = vpop.f32.mrb[0].mxu0
  %v1737 = vadd.f32 %v1410, %v1736
  %v1738 = vpop.f32.mrb[0].mxu0
  %1739 = vmatprep.mubr.f32.mxu0 0.0
  %1740 = vmatmul.mubr.f32.gmra.mrb[0].mxu0 %v1185
  %v1741 = vpop.f32.mrb[0].mxu0
  %v1742 = vadd.f32 %v1415, %v1741
  %v1743 = vpop.f32.mrb[0].mxu0
  %1744 = vmatprep.mubr.f32.mxu0 0.0
  %1745 = vmatmul.mubr.f32.gmra.mrb[0].mxu0 %v1188
  %v1746 = vpop.f32.mrb[0].mxu0
  %v1747 = vadd.f32 %v1420, %v1746
  %v1748 = vpop.f32.mrb[0].mxu0
  %1749 = vmatprep.mubr.f32.mxu0 0.0
  %1750 = vmatmul.mubr.f32.gmra.mrb[0].mxu0 %v1191
  %v1751 = vpop.f32.mrb[0].mxu0
  %v1752 = vadd.f32 %v1425, %v1751
  %v1753 = vpop.f32.mrb[0].mxu0
  %1754 = vmatprep.mubr.f32.mxu0 0.0
  %1755 = vmatmul.mubr.f32.gmra.mrb[0].mxu0 %v1194
  %v1756 = vpop.f32.mrb[0].mxu0
  %v1757 = vadd.f32 %v1430, %v1756
  %v1758 = vpop.f32.mrb[0].mxu0
  %1759 = vmatprep.mubr.f32.mxu0 0.0
  %1760 = vmatmul.mubr.f32.gmra.mrb[0].mxu0 %v1197
  %v1761 = vpop.f32.mrb[0].mxu0
  %v1762 = vadd.f32 %v1435, %v1761
  %v1763 = vpop.f32.mrb[0].mxu0
  %1764 = vmatprep.mubr.f32.mxu0 0.0
  %1765 = vmatmul.mubr.f32.gmra.mrb[0].mxu0 %v1200
  %v1766 = vpop.f32.mrb[0].mxu0
  %v1767 = vadd.f32 %v1440, %v1766
  %v1768 = vpop.f32.mrb[0].mxu0
  %1769 = vmatprep.mubr.f32.mxu0 0.0
  %1770 = vmatmul.mubr.f32.gmra.mrb[0].mxu0 %v1203
  %v1771 = vpop.f32.mrb[0].mxu0
  %v1772 = vadd.f32 %v1445, %v1771
  %v1773 = vpop.f32.mrb[0].mxu0
  %1774 = vmatprep.mubr.f32.mxu0 0.0
  %1775 = vmatmul.mubr.f32.gmra.mrb[0].mxu0 %v1206
  %v1776 = vpop.f32.mrb[0].mxu0
  %v1777 = vadd.f32 %v1450, %v1776
  %v1778 = vpop.f32.mrb[0].mxu0
  %1779 = vmatprep.mubr.f32.mxu0 0.0
  %1780 = vmatmul.mubr.f32.gmra.mrb[0].mxu0 %v1209
  %v1781 = vpop.f32.mrb[0].mxu0
  %v1782 = vadd.f32 %v1455, %v1781
  %v1783 = vpop.f32.mrb[0].mxu0
  %1784 = vmatprep.mubr.f32.mxu0 0.0
  %1785 = vmatmul.mubr.f32.gmra.mrb[0].mxu0 %v1212
  %v1786 = vpop.f32.mrb[0].mxu0
  %v1787 = vadd.f32 %v1460, %v1786
  %v1788 = vpop.f32.mrb[0].mxu0
  %1789 = vmatprep.mubr.f32.mxu0 0.0
  %1790 = vmatmul.mubr.f32.gmra.mrb[0].mxu0 %v1215
  %v1791 = vpop.f32.mrb[0].mxu0
  %v1792 = vadd.f32 %v1465, %v1791
  %v1793 = vpop.f32.mrb[0].mxu0
  %1794 = vmatprep.mubr.f32.mxu0 0.0
  %1795 = vmatmul.mubr.f32.gmra.mrb[0].mxu0 %v1218
  %v1796 = vpop.f32.mrb[0].mxu0
  %v1797 = vadd.f32 %v1470, %v1796
  %v1798 = vpop.f32.mrb[0].mxu0
  %1799 = vmatprep.mubr.f32.mxu0 0.0
  %1800 = vmatmul.mubr.f32.gmra.mrb[0].mxu0 %v1221
  %v1801 = vpop.f32.mrb[0].mxu0
  %v1802 = vadd.f32 %v1475, %v1801
  %v1803 = vpop.f32.mrb[0].mxu0
  %1804 = vmatprep.mubr.f32.mxu0 0.0
  %1805 = vmatmul.mubr.f32.gmra.mrb[0].mxu0 %v1224
  %v1806 = vpop.f32.mrb[0].mxu0
  %v1807 = vadd.f32 %v1480, %v1806
  %v1808 = vpop.f32.mrb[0].mxu0
  %1809 = vmatprep.mubr.f32.mxu0 0.0
  %1810 = vmatmul.mubr.f32.gmra.mrb[0].mxu0 %v1227
  %v1811 = vpop.f32.mrb[0].mxu0
  %v1812 = vadd.f32 %v1485, %v1811
  %v1813 = vpop.f32.mrb[0].mxu0
  %1814 = vmatprep.mubr.f32.mxu0 0.0
  %1815 = vmatmul.mubr.f32.gmra.mrb[0].mxu0 %v1230
  %v1816 = vpop.f32.mrb[0].mxu0
  %v1817 = vadd.f32 %v1490, %v1816
  %v1818 = vpop.f32.mrb[0].mxu0
  %1819 = vmatprep.mubr.f32.mxu0 0.0
  %1820 = vmatmul.mubr.f32.gmra.mrb[0].mxu0 %v1233
  %v1821 = vpop.f32.mrb[0].mxu0
  %v1822 = vadd.f32 %v1495, %v1821
  %v1823 = vpop.f32.mrb[0].mxu0
  %1824 = vmatprep.mubr.f32.mxu0 0.0
  %1825 = vmatmul.mubr.f32.gmra.mrb[0].mxu0 %v1236
  %v1826 = vpop.f32.mrb[0].mxu0
  %v1827 = vadd.f32 %v1500, %v1826
  %v1828 = vpop.f32.mrb[0].mxu0
  %1829 = vmatprep.mubr.f32.mxu0 0.0
  %1830 = vmatmul.mubr.f32.gmra.mrb[0].mxu0 %v1239
  %v1831 = vpop.f32.mrb[0].mxu0
  %v1832 = vadd.f32 %v1505, %v1831
  %v1833 = vpop.f32.mrb[0].mxu0
  %1834 = vmatprep.mubr.f32.mxu0 0.0
  %1835 = vmatmul.mubr.f32.gmra.mrb[0].mxu0 %v1242
  %v1836 = vpop.f32.mrb[0].mxu0
  %v1837 = vadd.f32 %v1510, %v1836
  %v1838 = vpop.f32.mrb[0].mxu0
  %1839 = vmatprep.mubr.f32.mxu0 0.0
  %1840 = vmatmul.mubr.f32.gmra.mrb[0].mxu0 %v1245
  %v1841 = vpop.f32.mrb[0].mxu0
  %v1842 = vadd.f32 %v1515, %v1841
  %v1843 = vpop.f32.mrb[0].mxu0
  %1844 = vmatprep.mubr.f32.mxu0 0.0
  %1845 = vmatmul.mubr.f32.gmra.mrb[0].mxu0 %v1650
  %v1846 = vpop.f32.mrb[0].mxu0
  %v1847 = vadd.f32 %v1520, %v1846
  %v1848 = vpop.f32.mrb[0].mxu0
  %1849 = vmatprep.mubr.f32.mxu0 0.0
  %1850 = vmatmul.mubr.f32.gmra.mrb[0].mxu0 %v1653
  %v1851 = vpop.f32.mrb[0].mxu0
  %v1852 = vadd.f32 %v1525, %v1851
  %v1853 = vpop.f32.mrb[0].mxu0
  %1854 = vmatprep.mubr.f32.mxu0 0.0
  %1855 = vmatmul.mubr.f32.gmra.mrb[0].mxu0 %v1254
  %v1856 = vpop.f32.mrb[0].mxu0
  %v1857 = vadd.f32 %v1530, %v1856
  %v1858 = vpop.f32.mrb[0].mxu0
  %1859 = vmatprep.mubr.f32.mxu0 0.0
  %1860 = vmatmul.mubr.f32.gmra.mrb[0].mxu0 %v1257
  %v1861 = vpop.f32.mrb[0].mxu0
  %v1862 = vadd.f32 %v1535, %v1861
  %v1863 = vpop.f32.mrb[0].mxu0
  %1864 = vmatprep.mubr.f32.mxu0 0.0
  %1865 = vmatmul.mubr.f32.gmra.mrb[0].mxu0 %v1260
  %v1866 = vpop.f32.mrb[0].mxu0
  %v1867 = vadd.f32 %v1540, %v1866
  %v1868 = vpop.f32.mrb[0].mxu0
  %1869 = vmatprep.mubr.f32.mxu0 0.0
  %1870 = vmatmul.mubr.f32.gmra.mrb[0].mxu0 %v1263
  %v1871 = vpop.f32.mrb[0].mxu0
  %v1872 = vadd.f32 %v1545, %v1871
  %v1873 = vpop.f32.mrb[0].mxu0
  %1874 = vmatprep.mubr.f32.mxu0 0.0
  %1875 = vmatmul.mubr.f32.gmra.mrb[0].mxu0 %v1266
  %v1876 = vpop.f32.mrb[0].mxu0
  %v1877 = vadd.f32 %v1550, %v1876
  %v1878 = vpop.f32.mrb[0].mxu0
  %1879 = vmatprep.mubr.f32.mxu0 0.0
  %1880 = vmatmul.mubr.f32.gmra.mrb[0].mxu0 %v1269
  %v1881 = vpop.f32.mrb[0].mxu0
  %v1882 = vadd.f32 %v1555, %v1881
  %v1883 = vpop.f32.mrb[0].mxu0
  %1884 = vmatprep.mubr.f32.mxu0 0.0
  %1885 = vmatmul.mubr.f32.gmra.mrb[0].mxu0 %v1272
  %v1886 = vpop.f32.mrb[0].mxu0
  %v1887 = vadd.f32 %v1560, %v1886
  %v1888 = vpop.f32.mrb[0].mxu0
  %1889 = vmatprep.mubr.f32.mxu0 0.0
  %1890 = vmatmul.mubr.f32.gmra.mrb[0].mxu0 %v1275
  %v1891 = vpop.f32.mrb[0].mxu0
  %v1892 = vadd.f32 %v1565, %v1891
  %v1893 = vpop.f32.mrb[0].mxu0
  %1894 = vmatprep.mubr.f32.mxu0 0.0
  %1895 = vmatmul.mubr.f32.gmra.mrb[0].mxu0 %v1278
  %v1896 = vpop.f32.mrb[0].mxu0
  %v1897 = vadd.f32 %v1570, %v1896
  %v1898 = vpop.f32.mrb[0].mxu0
  %1899 = vmatprep.mubr.f32.mxu0 0.0
  %1900 = vmatmul.mubr.f32.gmra.mrb[0].mxu0 %v1281
  %v1901 = vpop.f32.mrb[0].mxu0
  %v1902 = vadd.f32 %v1575, %v1901
  %v1903 = vpop.f32.mrb[0].mxu0
  %1904 = vmatprep.mubr.f32.mxu0 0.0
  %1905 = vmatmul.mubr.f32.gmra.mrb[0].mxu0 %v1284
  %v1906 = vpop.f32.mrb[0].mxu0
  %v1907 = vadd.f32 %v1580, %v1906
  %v1908 = vpop.f32.mrb[0].mxu0
  %1909 = vmatprep.mubr.f32.mxu0 0.0
  %1910 = vmatmul.mubr.f32.gmra.mrb[0].mxu0 %v1287
  %v1911 = vpop.f32.mrb[0].mxu0
  %v1912 = vadd.f32 %v1585, %v1911
  %v1913 = vpop.f32.mrb[0].mxu0
  %1914 = vmatprep.mubr.f32.mxu0 0.0
  %1915 = vmatmul.mubr.f32.gmra.mrb[0].mxu0 %v1290
  %v1916 = vpop.f32.mrb[0].mxu0
  %v1917 = vadd.f32 %v1590, %v1916
  %v1918 = vpop.f32.mrb[0].mxu0
  %1919 = vmatprep.mubr.f32.mxu0 0.0
  %1920 = vmatmul.mubr.f32.gmra.mrb[0].mxu0 %v1293
  %v1921 = vpop.f32.mrb[0].mxu0
  %v1922 = vadd.f32 %v1595, %v1921
  %v1923 = vpop.f32.mrb[0].mxu0
  %1924 = vmatprep.mubr.f32.mxu0 0.0
  %1925 = vmatmul.mubr.f32.gmra.mrb[0].mxu0 %v1296
  %v1926 = vpop.f32.mrb[0].mxu0
  %v1927 = vadd.f32 %v1600, %v1926
  %v1928 = vpop.f32.mrb[0].mxu0
  %1929 = vmatprep.mubr.f32.mxu0 0.0
  %1930 = vmatmul.mubr.f32.gmra.mrb[0].mxu0 %v1299
  %v1931 = vpop.f32.mrb[0].mxu0
  %v1932 = vadd.f32 %v1605, %v1931
  %v1933 = vpop.f32.mrb[0].mxu0
  %1934 = vmatprep.mubr.f32.mxu0 0.0
  %1935 = vmatmul.mubr.f32.gmra.mrb[0].mxu0 %v1302
  %v1936 = vpop.f32.mrb[0].mxu0
  %v1937 = vadd.f32 %v1610, %v1936
  %v1938 = vpop.f32.mrb[0].mxu0
  %1939 = vmatprep.mubr.f32.mxu0 0.0
  %1940 = vmatmul.mubr.f32.gmra.mrb[0].mxu0 %v1305
  %v1941 = vpop.f32.mrb[0].mxu0
  %v1942 = vadd.f32 %v1615, %v1941
  %v1943 = vpop.f32.mrb[0].mxu0
  %1944 = vmatprep.mubr.f32.mxu0 0.0
  %1945 = vmatmul.mubr.f32.gmra.mrb[0].mxu0 %v1308
  %v1946 = vpop.f32.mrb[0].mxu0
  %v1947 = vadd.f32 %v1620, %v1946
  %v1948 = vpop.f32.mrb[0].mxu0
  %1949 = vmatprep.mubr.f32.mxu0 0.0
  %1950 = vmatmul.mubr.f32.gmra.mrb[0].mxu0 %v1311
  %v1951 = vpop.f32.mrb[0].mxu0
  %v1952 = vadd.f32 %v1625, %v1951
  %v1953 = vpop.f32.mrb[0].mxu0
  %1954 = vmatprep.mubr.f32.mxu0 0.0
  %1955 = vmatmul.mubr.f32.gmra.mrb[0].mxu0 %v1314
  %v1956 = vpop.f32.mrb[0].mxu0
  %v1957 = vadd.f32 %v1630, %v1956
  %v1958 = vpop.f32.mrb[0].mxu0
  %1959 = vmatprep.mubr.f32.mxu0 0.0
  %1960 = vmatmul.mubr.f32.gmra.mrb[0].mxu0 %v1317
  %v1961 = vpop.f32.mrb[0].mxu0
  %v1962 = vadd.f32 %v1635, %v1961
  %v1963 = vpop.f32.mrb[0].mxu0
  %1964 = vmatprep.mubr.f32.mxu0 0.0
  %1965 = vmatmul.mubr.f32.gmra.mrb[0].mxu0 %v1320
  %v1966 = vpop.f32.mrb[0].mxu0
  %v1967 = vadd.f32 %v1640, %v1966
  %v1968 = vpop.f32.mrb[0].mxu0
  %1969 = vdwg.mxu0
  %s1970 = scalar_lea.vmem %s3, 128
  %v1971 = vld [vmem:[%s1970] sm:$0xff]
  %v1972 = vld [vmem:[%s1970 + $0x8] sm:$0xff]
  %v1973 = vld [vmem:[%s1970 + $0x10] sm:$0xff]
  %v1974 = vld [vmem:[%s1970 + $0x18] sm:$0xff]
  %v1975 = vld [vmem:[%s1970 + $0x20] sm:$0xff]
  %v1976 = vld [vmem:[%s1970 + $0x28] sm:$0xff]
  %v1977 = vld [vmem:[%s1970 + $0x30] sm:$0xff]
  %v1978 = vld [vmem:[%s1970 + $0x38] sm:$0xff]
  %v1980 = vsel %vm1177, %v1129, 0
  %v1983 = vsel %vm1177, %v1130, 0
  %v1986 = vsel %vm1177, %v1158, 0
  %v1989 = vsel %vm1177, %v1159, 0
  %1991 = vmatprep.subr.mxu0 0.0
  %1992 = vmatpush1.msra.mxu0 %v1971
  %1993 = vmatprep.subr.mxu0 0.0
  %1994 = vmatpush1.msra.mxu0 %v1972
  %1995 = vmatprep.subr.mxu0 0.0
  %1996 = vmatpush1.msra.mxu0 %v1973
  %1997 = vmatprep.subr.mxu0 0.0
  %1998 = vmatpush1.msra.mxu0 %v1974
  %1999 = vmatprep.subr.mxu0 0.0
  %2000 = vmatpush1.msra.mxu0 %v1975
  %2001 = vmatprep.subr.mxu0 0.0
  %2002 = vmatpush1.msra.mxu0 %v1976
  %2003 = vmatprep.subr.mxu0 0.0
  %2004 = vmatpush1.msra.mxu0 %v1977
  %2005 = vmatprep.subr.mxu0 0.0
  %2006 = vmatpush1.msra.mxu0 %v1978
  %2007 = vmatprep.subr.mxu0 0.0
  %2008 = vmatpush1.msra.mxu0 0.0
  %2009 = vmatprep.subr.mxu0 0.0
  %2010 = vmatpush1.msra.mxu0 0.0
  %2011 = vmatprep.subr.mxu0 0.0
  %2012 = vmatpush1.msra.mxu0 0.0
  %2013 = vmatprep.subr.mxu0 0.0
  %2014 = vmatpush1.msra.mxu0 0.0
  %2015 = vmatprep.subr.mxu0 0.0
  %2016 = vmatpush1.msra.mxu0 0.0
  %2017 = vmatprep.subr.mxu0 0.0
  %2018 = vmatpush1.msra.mxu0 0.0
  %2019 = vmatprep.subr.mxu0 0.0
  %2020 = vmatpush1.msra.mxu0 0.0
  %2021 = vmatprep.subr.mxu0 0.0
  %2022 = vmatpush1.msra.mxu0 0.0
  %2023 = vmatprep.subr.mxu0 0.0
  %2024 = vmatpush1.msra.mxu0 0.0
  %2025 = vmatprep.subr.mxu0 0.0
  %2026 = vmatpush1.msra.mxu0 0.0
  %2027 = vmatprep.subr.mxu0 0.0
  %2028 = vmatpush1.msra.mxu0 0.0
  %2029 = vmatprep.subr.mxu0 0.0
  %2030 = vmatpush1.msra.mxu0 0.0
  %2031 = vmatprep.subr.mxu0 0.0
  %2032 = vmatpush1.msra.mxu0 0.0
  %2033 = vmatprep.subr.mxu0 0.0
  %2034 = vmatpush1.msra.mxu0 0.0
  %2035 = vmatprep.subr.mxu0 0.0
  %2036 = vmatpush1.msra.mxu0 0.0
  %2037 = vmatprep.subr.mxu0 0.0
  %2038 = vmatpush1.msra.mxu0 0.0
  %2039 = vmatprep.subr.mxu0 0.0
  %2040 = vmatpush1.msra.mxu0 0.0
  %2041 = vmatprep.subr.mxu0 0.0
  %2042 = vmatpush1.msra.mxu0 0.0
  %2043 = vmatprep.subr.mxu0 0.0
  %2044 = vmatpush1.msra.mxu0 0.0
  %2045 = vmatprep.subr.mxu0 0.0
  %2046 = vmatpush1.msra.mxu0 0.0
  %2047 = vmatprep.subr.mxu0 0.0
  %2048 = vmatpush1.msra.mxu0 0.0
  %2049 = vmatprep.subr.mxu0 0.0
  %2050 = vmatpush1.msra.mxu0 0.0
  %2051 = vmatprep.subr.mxu0 0.0
  %2052 = vmatpush1.msra.mxu0 0.0
  %2053 = vmatprep.subr.mxu0 0.0
  %2054 = vmatpush1.msra.mxu0 0.0
  %2055 = vmatprep.mubr.f32.mxu0 0.0
  %2056 = vmatmul.mubr.f32.gmra.mrb[0].mxu0 %v1185
  %v2057 = vpop.f32.mrb[0].mxu0
  %v2058 = vadd.f32 0.0, %v2057
  %v2059 = vpop.f32.mrb[0].mxu0
  %2060 = vmatprep.mubr.f32.mxu0 0.0
  %2061 = vmatmul.mubr.f32.gmra.mrb[0].mxu0 %v1188
  %v2062 = vpop.f32.mrb[0].mxu0
  %v2063 = vadd.f32 0.0, %v2062
  %v2064 = vpop.f32.mrb[0].mxu0
  %2065 = vmatprep.mubr.f32.mxu0 0.0
  %2066 = vmatmul.mubr.f32.gmra.mrb[0].mxu0 %v1191
  %v2067 = vpop.f32.mrb[0].mxu0
  %v2068 = vadd.f32 0.0, %v2067
  %v2069 = vpop.f32.mrb[0].mxu0
  %2070 = vmatprep.mubr.f32.mxu0 0.0
  %2071 = vmatmul.mubr.f32.gmra.mrb[0].mxu0 %v1194
  %v2072 = vpop.f32.mrb[0].mxu0
  %v2073 = vadd.f32 0.0, %v2072
  %v2074 = vpop.f32.mrb[0].mxu0
  %2075 = vmatprep.mubr.f32.mxu0 0.0
  %2076 = vmatmul.mubr.f32.gmra.mrb[0].mxu0 %v1197
  %v2077 = vpop.f32.mrb[0].mxu0
  %v2078 = vadd.f32 0.0, %v2077
  %v2079 = vpop.f32.mrb[0].mxu0
  %2080 = vmatprep.mubr.f32.mxu0 0.0
  %2081 = vmatmul.mubr.f32.gmra.mrb[0].mxu0 %v1200
  %v2082 = vpop.f32.mrb[0].mxu0
  %v2083 = vadd.f32 0.0, %v2082
  %v2084 = vpop.f32.mrb[0].mxu0
  %2085 = vmatprep.mubr.f32.mxu0 0.0
  %2086 = vmatmul.mubr.f32.gmra.mrb[0].mxu0 %v1203
  %v2087 = vpop.f32.mrb[0].mxu0
  %v2088 = vadd.f32 0.0, %v2087
  %v2089 = vpop.f32.mrb[0].mxu0
  %2090 = vmatprep.mubr.f32.mxu0 0.0
  %2091 = vmatmul.mubr.f32.gmra.mrb[0].mxu0 %v1206
  %v2092 = vpop.f32.mrb[0].mxu0
  %v2093 = vadd.f32 0.0, %v2092
  %v2094 = vpop.f32.mrb[0].mxu0
  %2095 = vmatprep.mubr.f32.mxu0 0.0
  %2096 = vmatmul.mubr.f32.gmra.mrb[0].mxu0 %v1209
  %v2097 = vpop.f32.mrb[0].mxu0
  %v2098 = vadd.f32 0.0, %v2097
  %v2099 = vpop.f32.mrb[0].mxu0
  %2100 = vmatprep.mubr.f32.mxu0 0.0
  %2101 = vmatmul.mubr.f32.gmra.mrb[0].mxu0 %v1212
  %v2102 = vpop.f32.mrb[0].mxu0
  %v2103 = vadd.f32 0.0, %v2102
  %v2104 = vpop.f32.mrb[0].mxu0
  %2105 = vmatprep.mubr.f32.mxu0 0.0
  %2106 = vmatmul.mubr.f32.gmra.mrb[0].mxu0 %v1215
  %v2107 = vpop.f32.mrb[0].mxu0
  %v2108 = vadd.f32 0.0, %v2107
  %v2109 = vpop.f32.mrb[0].mxu0
  %2110 = vmatprep.mubr.f32.mxu0 0.0
  %2111 = vmatmul.mubr.f32.gmra.mrb[0].mxu0 %v1218
  %v2112 = vpop.f32.mrb[0].mxu0
  %v2113 = vadd.f32 0.0, %v2112
  %v2114 = vpop.f32.mrb[0].mxu0
  %2115 = vmatprep.mubr.f32.mxu0 0.0
  %2116 = vmatmul.mubr.f32.gmra.mrb[0].mxu0 %v1221
  %v2117 = vpop.f32.mrb[0].mxu0
  %v2118 = vadd.f32 0.0, %v2117
  %v2119 = vpop.f32.mrb[0].mxu0
  %2120 = vmatprep.mubr.f32.mxu0 0.0
  %2121 = vmatmul.mubr.f32.gmra.mrb[0].mxu0 %v1224
  %v2122 = vpop.f32.mrb[0].mxu0
  %v2123 = vadd.f32 0.0, %v2122
  %v2124 = vpop.f32.mrb[0].mxu0
  %2125 = vmatprep.mubr.f32.mxu0 0.0
  %2126 = vmatmul.mubr.f32.gmra.mrb[0].mxu0 %v1227
  %v2127 = vpop.f32.mrb[0].mxu0
  %v2128 = vadd.f32 0.0, %v2127
  %v2129 = vpop.f32.mrb[0].mxu0
  %2130 = vmatprep.mubr.f32.mxu0 0.0
  %2131 = vmatmul.mubr.f32.gmra.mrb[0].mxu0 %v1230
  %v2132 = vpop.f32.mrb[0].mxu0
  %v2133 = vadd.f32 0.0, %v2132
  %v2134 = vpop.f32.mrb[0].mxu0
  %2135 = vmatprep.mubr.f32.mxu0 0.0
  %2136 = vmatmul.mubr.f32.gmra.mrb[0].mxu0 %v1233
  %v2137 = vpop.f32.mrb[0].mxu0
  %v2138 = vadd.f32 0.0, %v2137
  %v2139 = vpop.f32.mrb[0].mxu0
  %2140 = vmatprep.mubr.f32.mxu0 0.0
  %2141 = vmatmul.mubr.f32.gmra.mrb[0].mxu0 %v1236
  %v2142 = vpop.f32.mrb[0].mxu0
  %v2143 = vadd.f32 0.0, %v2142
  %v2144 = vpop.f32.mrb[0].mxu0
  %2145 = vmatprep.mubr.f32.mxu0 0.0
  %2146 = vmatmul.mubr.f32.gmra.mrb[0].mxu0 %v1239
  %v2147 = vpop.f32.mrb[0].mxu0
  %v2148 = vadd.f32 0.0, %v2147
  %v2149 = vpop.f32.mrb[0].mxu0
  %2150 = vmatprep.mubr.f32.mxu0 0.0
  %2151 = vmatmul.mubr.f32.gmra.mrb[0].mxu0 %v1242
  %v2152 = vpop.f32.mrb[0].mxu0
  %v2153 = vadd.f32 0.0, %v2152
  %v2154 = vpop.f32.mrb[0].mxu0
  %2155 = vmatprep.mubr.f32.mxu0 0.0
  %2156 = vmatmul.mubr.f32.gmra.mrb[0].mxu0 %v1245
  %v2157 = vpop.f32.mrb[0].mxu0
  %v2158 = vadd.f32 0.0, %v2157
  %v2159 = vpop.f32.mrb[0].mxu0
  %2160 = vmatprep.mubr.f32.mxu0 0.0
  %2161 = vmatmul.mubr.f32.gmra.mrb[0].mxu0 %v1248
  %v2162 = vpop.f32.mrb[0].mxu0
  %v2163 = vadd.f32 0.0, %v2162
  %v2164 = vpop.f32.mrb[0].mxu0
  %2165 = vmatprep.mubr.f32.mxu0 0.0
  %2166 = vmatmul.mubr.f32.gmra.mrb[0].mxu0 %v1251
  %v2167 = vpop.f32.mrb[0].mxu0
  %v2168 = vadd.f32 0.0, %v2167
  %v2169 = vpop.f32.mrb[0].mxu0
  %2170 = vmatprep.mubr.f32.mxu0 0.0
  %2171 = vmatmul.mubr.f32.gmra.mrb[0].mxu0 %v1980
  %v2172 = vpop.f32.mrb[0].mxu0
  %v2173 = vadd.f32 0.0, %v2172
  %v2174 = vpop.f32.mrb[0].mxu0
  %2175 = vmatprep.mubr.f32.mxu0 0.0
  %2176 = vmatmul.mubr.f32.gmra.mrb[0].mxu0 %v1983
  %v2177 = vpop.f32.mrb[0].mxu0
  %v2178 = vadd.f32 0.0, %v2177
  %v2179 = vpop.f32.mrb[0].mxu0
  %2180 = vmatprep.mubr.f32.mxu0 0.0
  %2181 = vmatmul.mubr.f32.gmra.mrb[0].mxu0 %v1260
  %v2182 = vpop.f32.mrb[0].mxu0
  %v2183 = vadd.f32 0.0, %v2182
  %v2184 = vpop.f32.mrb[0].mxu0
  %2185 = vmatprep.mubr.f32.mxu0 0.0
  %2186 = vmatmul.mubr.f32.gmra.mrb[0].mxu0 %v1263
  %v2187 = vpop.f32.mrb[0].mxu0
  %v2188 = vadd.f32 0.0, %v2187
  %v2189 = vpop.f32.mrb[0].mxu0
  %2190 = vmatprep.mubr.f32.mxu0 0.0
  %2191 = vmatmul.mubr.f32.gmra.mrb[0].mxu0 %v1266
  %v2192 = vpop.f32.mrb[0].mxu0
  %v2193 = vadd.f32 0.0, %v2192
  %v2194 = vpop.f32.mrb[0].mxu0
  %2195 = vmatprep.mubr.f32.mxu0 0.0
  %2196 = vmatmul.mubr.f32.gmra.mrb[0].mxu0 %v1269
  %v2197 = vpop.f32.mrb[0].mxu0
  %v2198 = vadd.f32 0.0, %v2197
  %v2199 = vpop.f32.mrb[0].mxu0
  %2200 = vmatprep.mubr.f32.mxu0 0.0
  %2201 = vmatmul.mubr.f32.gmra.mrb[0].mxu0 %v1272
  %v2202 = vpop.f32.mrb[0].mxu0
  %v2203 = vadd.f32 0.0, %v2202
  %v2204 = vpop.f32.mrb[0].mxu0
  %2205 = vmatprep.mubr.f32.mxu0 0.0
  %2206 = vmatmul.mubr.f32.gmra.mrb[0].mxu0 %v1275
  %v2207 = vpop.f32.mrb[0].mxu0
  %v2208 = vadd.f32 0.0, %v2207
  %v2209 = vpop.f32.mrb[0].mxu0
  %2210 = vmatprep.mubr.f32.mxu0 0.0
  %2211 = vmatmul.mubr.f32.gmra.mrb[0].mxu0 %v1278
  %v2212 = vpop.f32.mrb[0].mxu0
  %v2213 = vadd.f32 0.0, %v2212
  %v2214 = vpop.f32.mrb[0].mxu0
  %2215 = vmatprep.mubr.f32.mxu0 0.0
  %2216 = vmatmul.mubr.f32.gmra.mrb[0].mxu0 %v1281
  %v2217 = vpop.f32.mrb[0].mxu0
  %v2218 = vadd.f32 0.0, %v2217
  %v2219 = vpop.f32.mrb[0].mxu0
  %2220 = vmatprep.mubr.f32.mxu0 0.0
  %2221 = vmatmul.mubr.f32.gmra.mrb[0].mxu0 %v1284
  %v2222 = vpop.f32.mrb[0].mxu0
  %v2223 = vadd.f32 0.0, %v2222
  %v2224 = vpop.f32.mrb[0].mxu0
  %2225 = vmatprep.mubr.f32.mxu0 0.0
  %2226 = vmatmul.mubr.f32.gmra.mrb[0].mxu0 %v1287
  %v2227 = vpop.f32.mrb[0].mxu0
  %v2228 = vadd.f32 0.0, %v2227
  %v2229 = vpop.f32.mrb[0].mxu0
  %2230 = vmatprep.mubr.f32.mxu0 0.0
  %2231 = vmatmul.mubr.f32.gmra.mrb[0].mxu0 %v1290
  %v2232 = vpop.f32.mrb[0].mxu0
  %v2233 = vadd.f32 0.0, %v2232
  %v2234 = vpop.f32.mrb[0].mxu0
  %2235 = vmatprep.mubr.f32.mxu0 0.0
  %2236 = vmatmul.mubr.f32.gmra.mrb[0].mxu0 %v1293
  %v2237 = vpop.f32.mrb[0].mxu0
  %v2238 = vadd.f32 0.0, %v2237
  %v2239 = vpop.f32.mrb[0].mxu0
  %2240 = vmatprep.mubr.f32.mxu0 0.0
  %2241 = vmatmul.mubr.f32.gmra.mrb[0].mxu0 %v1296
  %v2242 = vpop.f32.mrb[0].mxu0
  %v2243 = vadd.f32 0.0, %v2242
  %v2244 = vpop.f32.mrb[0].mxu0
  %2245 = vmatprep.mubr.f32.mxu0 0.0
  %2246 = vmatmul.mubr.f32.gmra.mrb[0].mxu0 %v1299
  %v2247 = vpop.f32.mrb[0].mxu0
  %v2248 = vadd.f32 0.0, %v2247
  %v2249 = vpop.f32.mrb[0].mxu0
  %2250 = vmatprep.mubr.f32.mxu0 0.0
  %2251 = vmatmul.mubr.f32.gmra.mrb[0].mxu0 %v1302
  %v2252 = vpop.f32.mrb[0].mxu0
  %v2253 = vadd.f32 0.0, %v2252
  %v2254 = vpop.f32.mrb[0].mxu0
  %2255 = vmatprep.mubr.f32.mxu0 0.0
  %2256 = vmatmul.mubr.f32.gmra.mrb[0].mxu0 %v1305
  %v2257 = vpop.f32.mrb[0].mxu0
  %v2258 = vadd.f32 0.0, %v2257
  %v2259 = vpop.f32.mrb[0].mxu0
  %2260 = vmatprep.mubr.f32.mxu0 0.0
  %2261 = vmatmul.mubr.f32.gmra.mrb[0].mxu0 %v1308
  %v2262 = vpop.f32.mrb[0].mxu0
  %v2263 = vadd.f32 0.0, %v2262
  %v2264 = vpop.f32.mrb[0].mxu0
  %2265 = vmatprep.mubr.f32.mxu0 0.0
  %2266 = vmatmul.mubr.f32.gmra.mrb[0].mxu0 %v1311
  %v2267 = vpop.f32.mrb[0].mxu0
  %v2268 = vadd.f32 0.0, %v2267
  %v2269 = vpop.f32.mrb[0].mxu0
  %2270 = vmatprep.mubr.f32.mxu0 0.0
  %2271 = vmatmul.mubr.f32.gmra.mrb[0].mxu0 %v1314
  %v2272 = vpop.f32.mrb[0].mxu0
  %v2273 = vadd.f32 0.0, %v2272
  %v2274 = vpop.f32.mrb[0].mxu0
  %2275 = vmatprep.mubr.f32.mxu0 0.0
  %2276 = vmatmul.mubr.f32.gmra.mrb[0].mxu0 %v1317
  %v2277 = vpop.f32.mrb[0].mxu0
  %v2278 = vadd.f32 0.0, %v2277
  %v2279 = vpop.f32.mrb[0].mxu0
  %2280 = vmatprep.mubr.f32.mxu0 0.0
  %2281 = vmatmul.mubr.f32.gmra.mrb[0].mxu0 %v1320
  %v2282 = vpop.f32.mrb[0].mxu0
  %v2283 = vadd.f32 0.0, %v2282
  %v2284 = vpop.f32.mrb[0].mxu0
  %2285 = vmatprep.mubr.f32.mxu0 0.0
  %2286 = vmatmul.mubr.f32.gmra.mrb[0].mxu0 %v1323
  %v2287 = vpop.f32.mrb[0].mxu0
  %v2288 = vadd.f32 0.0, %v2287
  %v2289 = vpop.f32.mrb[0].mxu0
  %2290 = vmatprep.mubr.f32.mxu0 0.0
  %2291 = vmatmul.mubr.f32.gmra.mrb[0].mxu0 %v1326
  %v2292 = vpop.f32.mrb[0].mxu0
  %v2293 = vadd.f32 0.0, %v2292
  %v2294 = vpop.f32.mrb[0].mxu0
  %2295 = vmatprep.mubr.f32.mxu0 0.0
  %2296 = vmatmul.mubr.f32.gmra.mrb[0].mxu0 %v1986
  %v2297 = vpop.f32.mrb[0].mxu0
  %v2298 = vadd.f32 0.0, %v2297
  %v2299 = vpop.f32.mrb[0].mxu0
  %2300 = vmatprep.mubr.f32.mxu0 0.0
  %2301 = vmatmul.mubr.f32.gmra.mrb[0].mxu0 %v1989
  %v2302 = vpop.f32.mrb[0].mxu0
  %v2303 = vadd.f32 0.0, %v2302
  %v2304 = vpop.f32.mrb[0].mxu0
  %2305 = vdwg.mxu0
  %v2306 = vadd.f32 %v1722, %v2058
  %v2307 = vadd.f32 %v1727, %v2063
  %v2308 = vadd.f32 %v1732, %v2068
  %v2309 = vadd.f32 %v1737, %v2073
  %v2310 = vadd.f32 %v1742, %v2078
  %v2311 = vadd.f32 %v1747, %v2083
  %v2312 = vadd.f32 %v1752, %v2088
  %v2313 = vadd.f32 %v1757, %v2093
  %v2314 = vadd.f32 %v1762, %v2098
  %v2315 = vadd.f32 %v1767, %v2103
  %v2316 = vadd.f32 %v1772, %v2108
  %v2317 = vadd.f32 %v1777, %v2113
  %v2318 = vadd.f32 %v1782, %v2118
  %v2319 = vadd.f32 %v1787, %v2123
  %v2320 = vadd.f32 %v1792, %v2128
  %v2321 = vadd.f32 %v1797, %v2133
  %v2322 = vadd.f32 %v1802, %v2138
  %v2323 = vadd.f32 %v1807, %v2143
  %v2324 = vadd.f32 %v1812, %v2148
  %v2325 = vadd.f32 %v1817, %v2153
  %v2326 = vadd.f32 %v1822, %v2158
  %v2327 = vadd.f32 %v1827, %v2163
  %v2328 = vadd.f32 %v1832, %v2168
  %v2329 = vadd.f32 %v1837, %v2173
  %v2330 = vadd.f32 %v1842, %v2178
  %v2331 = vadd.f32 %v1847, %v2183
  %v2332 = vadd.f32 %v1852, %v2188
  %v2333 = vadd.f32 %v1857, %v2193
  %v2334 = vadd.f32 %v1862, %v2198
  %v2335 = vadd.f32 %v1867, %v2203
  %v2336 = vadd.f32 %v1872, %v2208
  %v2337 = vadd.f32 %v1877, %v2213
  %v2338 = vadd.f32 %v1882, %v2218
  %v2339 = vadd.f32 %v1887, %v2223
  %v2340 = vadd.f32 %v1892, %v2228
  %v2341 = vadd.f32 %v1897, %v2233
  %v2342 = vadd.f32 %v1902, %v2238
  %v2343 = vadd.f32 %v1907, %v2243
  %v2344 = vadd.f32 %v1912, %v2248
  %v2345 = vadd.f32 %v1917, %v2253
  %v2346 = vadd.f32 %v1922, %v2258
  %v2347 = vadd.f32 %v1927, %v2263
  %v2348 = vadd.f32 %v1932, %v2268
  %v2349 = vadd.f32 %v1937, %v2273
  %v2350 = vadd.f32 %v1942, %v2278
  %v2351 = vadd.f32 %v1947, %v2283
  %v2352 = vadd.f32 %v1952, %v2288
  %v2353 = vadd.f32 %v1957, %v2293
  %v2354 = vadd.f32 %v1962, %v2298
  %v2355 = vadd.f32 %v1967, %v2303
  %vm2406 = vcmask 1046528
  %v2407 = vrot.slane %v2306, 1
  %v2408 = vrot.slane %v2307, 1
  %v2409 = vsel %vm2406, %v2407, %v2408
  %v2410 = vrot.slane %v2308, 1
  %v2411 = vsel %vm2406, %v2408, %v2410
  %v2412 = vrot.slane %v2309, 1
  %v2413 = vsel %vm2406, %v2410, %v2412
  %v2414 = vrot.slane %v2310, 1
  %v2415 = vsel %vm2406, %v2412, %v2414
  %v2416 = vrot.slane %v2311, 1
  %v2417 = vsel %vm2406, %v2414, %v2416
  %v2418 = vrot.slane %v2312, 1
  %v2419 = vsel %vm2406, %v2416, %v2418
  %v2420 = vrot.slane %v2313, 1
  %v2421 = vsel %vm2406, %v2418, %v2420
  %v2422 = vrot.slane %v2314, 1
  %v2423 = vsel %vm2406, %v2420, %v2422
  %v2424 = vrot.slane %v2315, 1
  %v2425 = vsel %vm2406, %v2422, %v2424
  %v2426 = vrot.slane %v2316, 1
  %v2427 = vsel %vm2406, %v2424, %v2426
  %v2428 = vrot.slane %v2317, 1
  %v2429 = vsel %vm2406, %v2426, %v2428
  %v2430 = vrot.slane %v2318, 1
  %v2431 = vsel %vm2406, %v2428, %v2430
  %v2432 = vrot.slane %v2319, 1
  %v2433 = vsel %vm2406, %v2430, %v2432
  %v2434 = vrot.slane %v2320, 1
  %v2435 = vsel %vm2406, %v2432, %v2434
  %v2436 = vrot.slane %v2321, 1
  %v2437 = vsel %vm2406, %v2434, %v2436
  %v2438 = vrot.slane %v2322, 1
  %v2439 = vsel %vm2406, %v2436, %v2438
  %v2440 = vrot.slane %v2323, 1
  %v2441 = vsel %vm2406, %v2438, %v2440
  %v2442 = vrot.slane %v2324, 1
  %v2443 = vsel %vm2406, %v2440, %v2442
  %v2444 = vrot.slane %v2325, 1
  %v2445 = vsel %vm2406, %v2442, %v2444
  %v2446 = vrot.slane %v2326, 1
  %v2447 = vsel %vm2406, %v2444, %v2446
  %v2448 = vrot.slane %v2327, 1
  %v2449 = vsel %vm2406, %v2446, %v2448
  %v2450 = vrot.slane %v2328, 1
  %v2451 = vsel %vm2406, %v2448, %v2450
  %v2452 = vrot.slane %v2329, 1
  %v2453 = vsel %vm2406, %v2450, %v2452
  %v2454 = vrot.slane %v2330, 1
  %v2455 = vsel %vm2406, %v2452, %v2454
  %v2456 = vrot.slane %v2331, 1
  %v2457 = vrot.slane %v2332, 1
  %v2458 = vsel %vm2406, %v2456, %v2457
  %v2459 = vrot.slane %v2333, 1
  %v2460 = vsel %vm2406, %v2457, %v2459
  %v2461 = vrot.slane %v2334, 1
  %v2462 = vsel %vm2406, %v2459, %v2461
  %v2463 = vrot.slane %v2335, 1
  %v2464 = vsel %vm2406, %v2461, %v2463
  %v2465 = vrot.slane %v2336, 1
  %v2466 = vsel %vm2406, %v2463, %v2465
  %v2467 = vrot.slane %v2337, 1
  %v2468 = vsel %vm2406, %v2465, %v2467
  %v2469 = vrot.slane %v2338, 1
  %v2470 = vsel %vm2406, %v2467, %v2469
  %v2471 = vrot.slane %v2339, 1
  %v2472 = vsel %vm2406, %v2469, %v2471
  %v2473 = vrot.slane %v2340, 1
  %v2474 = vsel %vm2406, %v2471, %v2473
  %v2475 = vrot.slane %v2341, 1
  %v2476 = vsel %vm2406, %v2473, %v2475
  %v2477 = vrot.slane %v2342, 1
  %v2478 = vsel %vm2406, %v2475, %v2477
  %v2479 = vrot.slane %v2343, 1
  %v2480 = vsel %vm2406, %v2477, %v2479
  %v2481 = vrot.slane %v2344, 1
  %v2482 = vsel %vm2406, %v2479, %v2481
  %v2483 = vrot.slane %v2345, 1
  %v2484 = vsel %vm2406, %v2481, %v2483
  %v2485 = vrot.slane %v2346, 1
  %v2486 = vsel %vm2406, %v2483, %v2485
  %v2487 = vrot.slane %v2347, 1
  %v2488 = vsel %vm2406, %v2485, %v2487
  %v2489 = vrot.slane %v2348, 1
  %v2490 = vsel %vm2406, %v2487, %v2489
  %v2491 = vrot.slane %v2349, 1
  %v2492 = vsel %vm2406, %v2489, %v2491
  %v2493 = vrot.slane %v2350, 1
  %v2494 = vsel %vm2406, %v2491, %v2493
  %v2495 = vrot.slane %v2351, 1
  %v2496 = vsel %vm2406, %v2493, %v2495
  %v2497 = vrot.slane %v2352, 1
  %v2498 = vsel %vm2406, %v2495, %v2497
  %v2499 = vrot.slane %v2353, 1
  %v2500 = vsel %vm2406, %v2497, %v2499
  %v2501 = vrot.slane %v2354, 1
  %v2502 = vsel %vm2406, %v2499, %v2501
  %v2503 = vrot.slane %v2355, 1
  %v2504 = vsel %vm2406, %v2501, %v2503
  %2505 = vrot.lane.b32.xlu0 %v2409, 96
  %v2506 = vpop.permute.xlu0 %2505
  %2507 = vrot.lane.b32.xlu0 %v2411, 96
  %v2508 = vpop.permute.xlu0 %2507
  %2509 = vrot.lane.b32.xlu0 %v2413, 96
  %v2510 = vpop.permute.xlu0 %2509
  %2511 = vrot.lane.b32.xlu0 %v2415, 96
  %v2512 = vpop.permute.xlu0 %2511
  %2513 = vrot.lane.b32.xlu0 %v2417, 96
  %v2514 = vpop.permute.xlu0 %2513
  %2515 = vrot.lane.b32.xlu0 %v2419, 96
  %v2516 = vpop.permute.xlu0 %2515
  %2517 = vrot.lane.b32.xlu0 %v2421, 96
  %v2518 = vpop.permute.xlu0 %2517
  %2519 = vrot.lane.b32.xlu0 %v2423, 96
  %v2520 = vpop.permute.xlu0 %2519
  %2521 = vrot.lane.b32.xlu0 %v2425, 96
  %v2522 = vpop.permute.xlu0 %2521
  %2523 = vrot.lane.b32.xlu0 %v2427, 96
  %v2524 = vpop.permute.xlu0 %2523
  %2525 = vrot.lane.b32.xlu0 %v2429, 96
  %v2526 = vpop.permute.xlu0 %2525
  %2527 = vrot.lane.b32.xlu0 %v2431, 96
  %v2528 = vpop.permute.xlu0 %2527
  %2529 = vrot.lane.b32.xlu0 %v2433, 96
  %v2530 = vpop.permute.xlu0 %2529
  %2531 = vrot.lane.b32.xlu0 %v2435, 96
  %v2532 = vpop.permute.xlu0 %2531
  %2533 = vrot.lane.b32.xlu0 %v2437, 96
  %v2534 = vpop.permute.xlu0 %2533
  %2535 = vrot.lane.b32.xlu0 %v2439, 96
  %v2536 = vpop.permute.xlu0 %2535
  %2537 = vrot.lane.b32.xlu0 %v2441, 96
  %v2538 = vpop.permute.xlu0 %2537
  %2539 = vrot.lane.b32.xlu0 %v2443, 96
  %v2540 = vpop.permute.xlu0 %2539
  %2541 = vrot.lane.b32.xlu0 %v2445, 96
  %v2542 = vpop.permute.xlu0 %2541
  %2543 = vrot.lane.b32.xlu0 %v2447, 96
  %v2544 = vpop.permute.xlu0 %2543
  %2545 = vrot.lane.b32.xlu0 %v2449, 96
  %v2546 = vpop.permute.xlu0 %2545
  %2547 = vrot.lane.b32.xlu0 %v2451, 96
  %v2548 = vpop.permute.xlu0 %2547
  %2549 = vrot.lane.b32.xlu0 %v2453, 96
  %v2550 = vpop.permute.xlu0 %2549
  %2551 = vrot.lane.b32.xlu0 %v2455, 96
  %v2552 = vpop.permute.xlu0 %2551
  %2553 = vrot.lane.b32.xlu0 %v2458, 96
  %v2554 = vpop.permute.xlu0 %2553
  %2555 = vrot.lane.b32.xlu0 %v2460, 96
  %v2556 = vpop.permute.xlu0 %2555
  %2557 = vrot.lane.b32.xlu0 %v2462, 96
  %v2558 = vpop.permute.xlu0 %2557
  %2559 = vrot.lane.b32.xlu0 %v2464, 96
  %v2560 = vpop.permute.xlu0 %2559
  %2561 = vrot.lane.b32.xlu0 %v2466, 96
  %v2562 = vpop.permute.xlu0 %2561
  %2563 = vrot.lane.b32.xlu0 %v2468, 96
  %v2564 = vpop.permute.xlu0 %2563
  %2565 = vrot.lane.b32.xlu0 %v2470, 96
  %v2566 = vpop.permute.xlu0 %2565
  %2567 = vrot.lane.b32.xlu0 %v2472, 96
  %v2568 = vpop.permute.xlu0 %2567
  %2569 = vrot.lane.b32.xlu0 %v2474, 96
  %v2570 = vpop.permute.xlu0 %2569
  %2571 = vrot.lane.b32.xlu0 %v2476, 96
  %v2572 = vpop.permute.xlu0 %2571
  %2573 = vrot.lane.b32.xlu0 %v2478, 96
  %v2574 = vpop.permute.xlu0 %2573
  %2575 = vrot.lane.b32.xlu0 %v2480, 96
  %v2576 = vpop.permute.xlu0 %2575
  %2577 = vrot.lane.b32.xlu0 %v2482, 96
  %v2578 = vpop.permute.xlu0 %2577
  %2579 = vrot.lane.b32.xlu0 %v2484, 96
  %v2580 = vpop.permute.xlu0 %2579
  %2581 = vrot.lane.b32.xlu0 %v2486, 96
  %v2582 = vpop.permute.xlu0 %2581
  %2583 = vrot.lane.b32.xlu0 %v2488, 96
  %v2584 = vpop.permute.xlu0 %2583
  %2585 = vrot.lane.b32.xlu0 %v2490, 96
  %v2586 = vpop.permute.xlu0 %2585
  %2587 = vrot.lane.b32.xlu0 %v2492, 96
  %v2588 = vpop.permute.xlu0 %2587
  %2589 = vrot.lane.b32.xlu0 %v2494, 96
  %v2590 = vpop.permute.xlu0 %2589
  %2591 = vrot.lane.b32.xlu0 %v2496, 96
  %v2592 = vpop.permute.xlu0 %2591
  %2593 = vrot.lane.b32.xlu0 %v2498, 96
  %v2594 = vpop.permute.xlu0 %2593
  %2595 = vrot.lane.b32.xlu0 %v2500, 96
  %v2596 = vpop.permute.xlu0 %2595
  %2597 = vrot.lane.b32.xlu0 %v2502, 96
  %v2598 = vpop.permute.xlu0 %2597
  %2599 = vrot.lane.b32.xlu0 %v2504, 96
  %v2600 = vpop.permute.xlu0 %2599
  %v2649 = vadd.f32 %v2306, %v2506
  %v2650 = vadd.f32 %v2307, %v2508
  %v2651 = vadd.f32 %v2308, %v2510
  %v2652 = vadd.f32 %v2309, %v2512
  %v2653 = vadd.f32 %v2310, %v2514
  %v2654 = vadd.f32 %v2311, %v2516
  %v2655 = vadd.f32 %v2312, %v2518
  %v2656 = vadd.f32 %v2313, %v2520
  %v2657 = vadd.f32 %v2314, %v2522
  %v2658 = vadd.f32 %v2315, %v2524
  %v2659 = vadd.f32 %v2316, %v2526
  %v2660 = vadd.f32 %v2317, %v2528
  %v2661 = vadd.f32 %v2318, %v2530
  %v2662 = vadd.f32 %v2319, %v2532
  %v2663 = vadd.f32 %v2320, %v2534
  %v2664 = vadd.f32 %v2321, %v2536
  %v2665 = vadd.f32 %v2322, %v2538
  %v2666 = vadd.f32 %v2323, %v2540
  %v2667 = vadd.f32 %v2324, %v2542
  %v2668 = vadd.f32 %v2325, %v2544
  %v2669 = vadd.f32 %v2326, %v2546
  %v2670 = vadd.f32 %v2327, %v2548
  %v2671 = vadd.f32 %v2328, %v2550
  %v2672 = vadd.f32 %v2329, %v2552
  %v2673 = vadd.f32 %v2331, %v2554
  %v2674 = vadd.f32 %v2332, %v2556
  %v2675 = vadd.f32 %v2333, %v2558
  %v2676 = vadd.f32 %v2334, %v2560
  %v2677 = vadd.f32 %v2335, %v2562
  %v2678 = vadd.f32 %v2336, %v2564
  %v2679 = vadd.f32 %v2337, %v2566
  %v2680 = vadd.f32 %v2338, %v2568
  %v2681 = vadd.f32 %v2339, %v2570
  %v2682 = vadd.f32 %v2340, %v2572
  %v2683 = vadd.f32 %v2341, %v2574
  %v2684 = vadd.f32 %v2342, %v2576
  %v2685 = vadd.f32 %v2343, %v2578
  %v2686 = vadd.f32 %v2344, %v2580
  %v2687 = vadd.f32 %v2345, %v2582
  %v2688 = vadd.f32 %v2346, %v2584
  %v2689 = vadd.f32 %v2347, %v2586
  %v2690 = vadd.f32 %v2348, %v2588
  %v2691 = vadd.f32 %v2349, %v2590
  %v2692 = vadd.f32 %v2350, %v2592
  %v2693 = vadd.f32 %v2351, %v2594
  %v2694 = vadd.f32 %v2352, %v2596
  %v2695 = vadd.f32 %v2353, %v2598
  %v2696 = vadd.f32 %v2354, %v2600
  %vm2697 = vcmask 1045504
  %v2698 = vrot.slane %v2306, 2
  %v2699 = vrot.slane %v2307, 2
  %v2700 = vsel %vm2697, %v2698, %v2699
  %v2701 = vrot.slane %v2308, 2
  %v2702 = vsel %vm2697, %v2699, %v2701
  %v2703 = vrot.slane %v2309, 2
  %v2704 = vsel %vm2697, %v2701, %v2703
  %v2705 = vrot.slane %v2310, 2
  %v2706 = vsel %vm2697, %v2703, %v2705
  %v2707 = vrot.slane %v2311, 2
  %v2708 = vsel %vm2697, %v2705, %v2707
  %v2709 = vrot.slane %v2312, 2
  %v2710 = vsel %vm2697, %v2707, %v2709
  %v2711 = vrot.slane %v2313, 2
  %v2712 = vsel %vm2697, %v2709, %v2711
  %v2713 = vrot.slane %v2314, 2
  %v2714 = vsel %vm2697, %v2711, %v2713
  %v2715 = vrot.slane %v2315, 2
  %v2716 = vsel %vm2697, %v2713, %v2715
  %v2717 = vrot.slane %v2316, 2
  %v2718 = vsel %vm2697, %v2715, %v2717
  %v2719 = vrot.slane %v2317, 2
  %v2720 = vsel %vm2697, %v2717, %v2719
  %v2721 = vrot.slane %v2318, 2
  %v2722 = vsel %vm2697, %v2719, %v2721
  %v2723 = vrot.slane %v2319, 2
  %v2724 = vsel %vm2697, %v2721, %v2723
  %v2725 = vrot.slane %v2320, 2
  %v2726 = vsel %vm2697, %v2723, %v2725
  %v2727 = vrot.slane %v2321, 2
  %v2728 = vsel %vm2697, %v2725, %v2727
  %v2729 = vrot.slane %v2322, 2
  %v2730 = vsel %vm2697, %v2727, %v2729
  %v2731 = vrot.slane %v2323, 2
  %v2732 = vsel %vm2697, %v2729, %v2731
  %v2733 = vrot.slane %v2324, 2
  %v2734 = vsel %vm2697, %v2731, %v2733
  %v2735 = vrot.slane %v2325, 2
  %v2736 = vsel %vm2697, %v2733, %v2735
  %v2737 = vrot.slane %v2326, 2
  %v2738 = vsel %vm2697, %v2735, %v2737
  %v2739 = vrot.slane %v2327, 2
  %v2740 = vsel %vm2697, %v2737, %v2739
  %v2741 = vrot.slane %v2328, 2
  %v2742 = vsel %vm2697, %v2739, %v2741
  %v2743 = vrot.slane %v2329, 2
  %v2744 = vsel %vm2697, %v2741, %v2743
  %v2745 = vrot.slane %v2330, 2
  %v2746 = vsel %vm2697, %v2743, %v2745
  %v2747 = vrot.slane %v2331, 2
  %v2748 = vrot.slane %v2332, 2
  %v2749 = vsel %vm2697, %v2747, %v2748
  %v2750 = vrot.slane %v2333, 2
  %v2751 = vsel %vm2697, %v2748, %v2750
  %v2752 = vrot.slane %v2334, 2
  %v2753 = vsel %vm2697, %v2750, %v2752
  %v2754 = vrot.slane %v2335, 2
  %v2755 = vsel %vm2697, %v2752, %v2754
  %v2756 = vrot.slane %v2336, 2
  %v2757 = vsel %vm2697, %v2754, %v2756
  %v2758 = vrot.slane %v2337, 2
  %v2759 = vsel %vm2697, %v2756, %v2758
  %v2760 = vrot.slane %v2338, 2
  %v2761 = vsel %vm2697, %v2758, %v2760
  %v2762 = vrot.slane %v2339, 2
  %v2763 = vsel %vm2697, %v2760, %v2762
  %v2764 = vrot.slane %v2340, 2
  %v2765 = vsel %vm2697, %v2762, %v2764
  %v2766 = vrot.slane %v2341, 2
  %v2767 = vsel %vm2697, %v2764, %v2766
  %v2768 = vrot.slane %v2342, 2
  %v2769 = vsel %vm2697, %v2766, %v2768
  %v2770 = vrot.slane %v2343, 2
  %v2771 = vsel %vm2697, %v2768, %v2770
  %v2772 = vrot.slane %v2344, 2
  %v2773 = vsel %vm2697, %v2770, %v2772
  %v2774 = vrot.slane %v2345, 2
  %v2775 = vsel %vm2697, %v2772, %v2774
  %v2776 = vrot.slane %v2346, 2
  %v2777 = vsel %vm2697, %v2774, %v2776
  %v2778 = vrot.slane %v2347, 2
  %v2779 = vsel %vm2697, %v2776, %v2778
  %v2780 = vrot.slane %v2348, 2
  %v2781 = vsel %vm2697, %v2778, %v2780
  %v2782 = vrot.slane %v2349, 2
  %v2783 = vsel %vm2697, %v2780, %v2782
  %v2784 = vrot.slane %v2350, 2
  %v2785 = vsel %vm2697, %v2782, %v2784
  %v2786 = vrot.slane %v2351, 2
  %v2787 = vsel %vm2697, %v2784, %v2786
  %v2788 = vrot.slane %v2352, 2
  %v2789 = vsel %vm2697, %v2786, %v2788
  %v2790 = vrot.slane %v2353, 2
  %v2791 = vsel %vm2697, %v2788, %v2790
  %v2792 = vrot.slane %v2354, 2
  %v2793 = vsel %vm2697, %v2790, %v2792
  %v2794 = vrot.slane %v2355, 2
  %v2795 = vsel %vm2697, %v2792, %v2794
  %2796 = vrot.lane.b32.xlu0 %v2700, 64
  %v2797 = vpop.permute.xlu0 %2796
  %2798 = vrot.lane.b32.xlu0 %v2702, 64
  %v2799 = vpop.permute.xlu0 %2798
  %2800 = vrot.lane.b32.xlu0 %v2704, 64
  %v2801 = vpop.permute.xlu0 %2800
  %2802 = vrot.lane.b32.xlu0 %v2706, 64
  %v2803 = vpop.permute.xlu0 %2802
  %2804 = vrot.lane.b32.xlu0 %v2708, 64
  %v2805 = vpop.permute.xlu0 %2804
  %2806 = vrot.lane.b32.xlu0 %v2710, 64
  %v2807 = vpop.permute.xlu0 %2806
  %2808 = vrot.lane.b32.xlu0 %v2712, 64
  %v2809 = vpop.permute.xlu0 %2808
  %2810 = vrot.lane.b32.xlu0 %v2714, 64
  %v2811 = vpop.permute.xlu0 %2810
  %2812 = vrot.lane.b32.xlu0 %v2716, 64
  %v2813 = vpop.permute.xlu0 %2812
  %2814 = vrot.lane.b32.xlu0 %v2718, 64
  %v2815 = vpop.permute.xlu0 %2814
  %2816 = vrot.lane.b32.xlu0 %v2720, 64
  %v2817 = vpop.permute.xlu0 %2816
  %2818 = vrot.lane.b32.xlu0 %v2722, 64
  %v2819 = vpop.permute.xlu0 %2818
  %2820 = vrot.lane.b32.xlu0 %v2724, 64
  %v2821 = vpop.permute.xlu0 %2820
  %2822 = vrot.lane.b32.xlu0 %v2726, 64
  %v2823 = vpop.permute.xlu0 %2822
  %2824 = vrot.lane.b32.xlu0 %v2728, 64
  %v2825 = vpop.permute.xlu0 %2824
  %2826 = vrot.lane.b32.xlu0 %v2730, 64
  %v2827 = vpop.permute.xlu0 %2826
  %2828 = vrot.lane.b32.xlu0 %v2732, 64
  %v2829 = vpop.permute.xlu0 %2828
  %2830 = vrot.lane.b32.xlu0 %v2734, 64
  %v2831 = vpop.permute.xlu0 %2830
  %2832 = vrot.lane.b32.xlu0 %v2736, 64
  %v2833 = vpop.permute.xlu0 %2832
  %2834 = vrot.lane.b32.xlu0 %v2738, 64
  %v2835 = vpop.permute.xlu0 %2834
  %2836 = vrot.lane.b32.xlu0 %v2740, 64
  %v2837 = vpop.permute.xlu0 %2836
  %2838 = vrot.lane.b32.xlu0 %v2742, 64
  %v2839 = vpop.permute.xlu0 %2838
  %2840 = vrot.lane.b32.xlu0 %v2744, 64
  %v2841 = vpop.permute.xlu0 %2840
  %2842 = vrot.lane.b32.xlu0 %v2746, 64
  %v2843 = vpop.permute.xlu0 %2842
  %2844 = vrot.lane.b32.xlu0 %v2749, 64
  %v2845 = vpop.permute.xlu0 %2844
  %2846 = vrot.lane.b32.xlu0 %v2751, 64
  %v2847 = vpop.permute.xlu0 %2846
  %2848 = vrot.lane.b32.xlu0 %v2753, 64
  %v2849 = vpop.permute.xlu0 %2848
  %2850 = vrot.lane.b32.xlu0 %v2755, 64
  %v2851 = vpop.permute.xlu0 %2850
  %2852 = vrot.lane.b32.xlu0 %v2757, 64
  %v2853 = vpop.permute.xlu0 %2852
  %2854 = vrot.lane.b32.xlu0 %v2759, 64
  %v2855 = vpop.permute.xlu0 %2854
  %2856 = vrot.lane.b32.xlu0 %v2761, 64
  %v2857 = vpop.permute.xlu0 %2856
  %2858 = vrot.lane.b32.xlu0 %v2763, 64
  %v2859 = vpop.permute.xlu0 %2858
  %2860 = vrot.lane.b32.xlu0 %v2765, 64
  %v2861 = vpop.permute.xlu0 %2860
  %2862 = vrot.lane.b32.xlu0 %v2767, 64
  %v2863 = vpop.permute.xlu0 %2862
  %2864 = vrot.lane.b32.xlu0 %v2769, 64
  %v2865 = vpop.permute.xlu0 %2864
  %2866 = vrot.lane.b32.xlu0 %v2771, 64
  %v2867 = vpop.permute.xlu0 %2866
  %2868 = vrot.lane.b32.xlu0 %v2773, 64
  %v2869 = vpop.permute.xlu0 %2868
  %2870 = vrot.lane.b32.xlu0 %v2775, 64
  %v2871 = vpop.permute.xlu0 %2870
  %2872 = vrot.lane.b32.xlu0 %v2777, 64
  %v2873 = vpop.permute.xlu0 %2872
  %2874 = vrot.lane.b32.xlu0 %v2779, 64
  %v2875 = vpop.permute.xlu0 %2874
  %2876 = vrot.lane.b32.xlu0 %v2781, 64
  %v2877 = vpop.permute.xlu0 %2876
  %2878 = vrot.lane.b32.xlu0 %v2783, 64
  %v2879 = vpop.permute.xlu0 %2878
  %2880 = vrot.lane.b32.xlu0 %v2785, 64
  %v2881 = vpop.permute.xlu0 %2880
  %2882 = vrot.lane.b32.xlu0 %v2787, 64
  %v2883 = vpop.permute.xlu0 %2882
  %2884 = vrot.lane.b32.xlu0 %v2789, 64
  %v2885 = vpop.permute.xlu0 %2884
  %2886 = vrot.lane.b32.xlu0 %v2791, 64
  %v2887 = vpop.permute.xlu0 %2886
  %2888 = vrot.lane.b32.xlu0 %v2793, 64
  %v2889 = vpop.permute.xlu0 %2888
  %2890 = vrot.lane.b32.xlu0 %v2795, 64
  %v2891 = vpop.permute.xlu0 %2890
  %v2940 = vadd.f32 %v2649, %v2797
  %v2941 = vadd.f32 %v2650, %v2799
  %v2942 = vadd.f32 %v2651, %v2801
  %v2943 = vadd.f32 %v2652, %v2803
  %v2944 = vadd.f32 %v2653, %v2805
  %v2945 = vadd.f32 %v2654, %v2807
  %v2946 = vadd.f32 %v2655, %v2809
  %v2947 = vadd.f32 %v2656, %v2811
  %v2948 = vadd.f32 %v2657, %v2813
  %v2949 = vadd.f32 %v2658, %v2815
  %v2950 = vadd.f32 %v2659, %v2817
  %v2951 = vadd.f32 %v2660, %v2819
  %v2952 = vadd.f32 %v2661, %v2821
  %v2953 = vadd.f32 %v2662, %v2823
  %v2954 = vadd.f32 %v2663, %v2825
  %v2955 = vadd.f32 %v2664, %v2827
  %v2956 = vadd.f32 %v2665, %v2829
  %v2957 = vadd.f32 %v2666, %v2831
  %v2958 = vadd.f32 %v2667, %v2833
  %v2959 = vadd.f32 %v2668, %v2835
  %v2960 = vadd.f32 %v2669, %v2837
  %v2961 = vadd.f32 %v2670, %v2839
  %v2962 = vadd.f32 %v2671, %v2841
  %v2963 = vadd.f32 %v2672, %v2843
  %v2964 = vadd.f32 %v2673, %v2845
  %v2965 = vadd.f32 %v2674, %v2847
  %v2966 = vadd.f32 %v2675, %v2849
  %v2967 = vadd.f32 %v2676, %v2851
  %v2968 = vadd.f32 %v2677, %v2853
  %v2969 = vadd.f32 %v2678, %v2855
  %v2970 = vadd.f32 %v2679, %v2857
  %v2971 = vadd.f32 %v2680, %v2859
  %v2972 = vadd.f32 %v2681, %v2861
  %v2973 = vadd.f32 %v2682, %v2863
  %v2974 = vadd.f32 %v2683, %v2865
  %v2975 = vadd.f32 %v2684, %v2867
  %v2976 = vadd.f32 %v2685, %v2869
  %v2977 = vadd.f32 %v2686, %v2871
  %v2978 = vadd.f32 %v2687, %v2873
  %v2979 = vadd.f32 %v2688, %v2875
  %v2980 = vadd.f32 %v2689, %v2877
  %v2981 = vadd.f32 %v2690, %v2879
  %v2982 = vadd.f32 %v2691, %v2881
  %v2983 = vadd.f32 %v2692, %v2883
  %v2984 = vadd.f32 %v2693, %v2885
  %v2985 = vadd.f32 %v2694, %v2887
  %v2986 = vadd.f32 %v2695, %v2889
  %v2987 = vadd.f32 %v2696, %v2891
  %v2988 = vld [vmem:[%s4] sm:$0x1]
  %v2990 = vlaneseq
  %v2991 = vshrl.u32 %v2990, 7
  %v2992 = vsub.s32 0, %v2991
  %v2993 = vrot.slane %v2988, %v2992
  %v2995 = vadd.f32 %v2940, %v2993
  %v2996 = vadd.f32 %v2941, %v2993
  %v2997 = vadd.f32 %v2942, %v2993
  %v2998 = vadd.f32 %v2943, %v2993
  %v2999 = vadd.f32 %v2944, %v2993
  %v3000 = vadd.f32 %v2945, %v2993
  %v3001 = vadd.f32 %v2946, %v2993
  %v3002 = vadd.f32 %v2947, %v2993
  %v3003 = vadd.f32 %v2948, %v2993
  %v3004 = vadd.f32 %v2949, %v2993
  %v3005 = vadd.f32 %v2950, %v2993
  %v3006 = vadd.f32 %v2951, %v2993
  %v3007 = vadd.f32 %v2952, %v2993
  %v3008 = vadd.f32 %v2953, %v2993
  %v3009 = vadd.f32 %v2954, %v2993
  %v3010 = vadd.f32 %v2955, %v2993
  %v3011 = vadd.f32 %v2956, %v2993
  %v3012 = vadd.f32 %v2957, %v2993
  %v3013 = vadd.f32 %v2958, %v2993
  %v3014 = vadd.f32 %v2959, %v2993
  %v3015 = vadd.f32 %v2960, %v2993
  %v3016 = vadd.f32 %v2961, %v2993
  %v3017 = vadd.f32 %v2962, %v2993
  %v3018 = vadd.f32 %v2963, %v2993
  %v3019 = vadd.f32 %v2964, %v2993
  %v3020 = vadd.f32 %v2965, %v2993
  %v3021 = vadd.f32 %v2966, %v2993
  %v3022 = vadd.f32 %v2967, %v2993
  %v3023 = vadd.f32 %v2968, %v2993
  %v3024 = vadd.f32 %v2969, %v2993
  %v3025 = vadd.f32 %v2970, %v2993
  %v3026 = vadd.f32 %v2971, %v2993
  %v3027 = vadd.f32 %v2972, %v2993
  %v3028 = vadd.f32 %v2973, %v2993
  %v3029 = vadd.f32 %v2974, %v2993
  %v3030 = vadd.f32 %v2975, %v2993
  %v3031 = vadd.f32 %v2976, %v2993
  %v3032 = vadd.f32 %v2977, %v2993
  %v3033 = vadd.f32 %v2978, %v2993
  %v3034 = vadd.f32 %v2979, %v2993
  %v3035 = vadd.f32 %v2980, %v2993
  %v3036 = vadd.f32 %v2981, %v2993
  %v3037 = vadd.f32 %v2982, %v2993
  %v3038 = vadd.f32 %v2983, %v2993
  %v3039 = vadd.f32 %v2984, %v2993
  %v3040 = vadd.f32 %v2985, %v2993
  %v3041 = vadd.f32 %v2986, %v2993
  %v3042 = vadd.f32 %v2987, %v2993
  %v3043 = vmax.f32 %v2995, 0.0
  %v3044 = vmax.f32 %v2996, 0.0
  %v3045 = vmax.f32 %v2997, 0.0
  %v3046 = vmax.f32 %v2998, 0.0
  %v3047 = vmax.f32 %v2999, 0.0
  %v3048 = vmax.f32 %v3000, 0.0
  %v3049 = vmax.f32 %v3001, 0.0
  %v3050 = vmax.f32 %v3002, 0.0
  %v3051 = vmax.f32 %v3003, 0.0
  %v3052 = vmax.f32 %v3004, 0.0
  %v3053 = vmax.f32 %v3005, 0.0
  %v3054 = vmax.f32 %v3006, 0.0
  %v3055 = vmax.f32 %v3007, 0.0
  %v3056 = vmax.f32 %v3008, 0.0
  %v3057 = vmax.f32 %v3009, 0.0
  %v3058 = vmax.f32 %v3010, 0.0
  %v3059 = vmax.f32 %v3011, 0.0
  %v3060 = vmax.f32 %v3012, 0.0
  %v3061 = vmax.f32 %v3013, 0.0
  %v3062 = vmax.f32 %v3014, 0.0
  %v3063 = vmax.f32 %v3015, 0.0
  %v3064 = vmax.f32 %v3016, 0.0
  %v3065 = vmax.f32 %v3017, 0.0
  %v3066 = vmax.f32 %v3018, 0.0
  %v3067 = vmax.f32 %v3019, 0.0
  %v3068 = vmax.f32 %v3020, 0.0
  %v3069 = vmax.f32 %v3021, 0.0
  %v3070 = vmax.f32 %v3022, 0.0
  %v3071 = vmax.f32 %v3023, 0.0
  %v3072 = vmax.f32 %v3024, 0.0
  %v3073 = vmax.f32 %v3025, 0.0
  %v3074 = vmax.f32 %v3026, 0.0
  %v3075 = vmax.f32 %v3027, 0.0
  %v3076 = vmax.f32 %v3028, 0.0
  %v3077 = vmax.f32 %v3029, 0.0
  %v3078 = vmax.f32 %v3030, 0.0
  %v3079 = vmax.f32 %v3031, 0.0
  %v3080 = vmax.f32 %v3032, 0.0
  %v3081 = vmax.f32 %v3033, 0.0
  %v3082 = vmax.f32 %v3034, 0.0
  %v3083 = vmax.f32 %v3035, 0.0
  %v3084 = vmax.f32 %v3036, 0.0
  %v3085 = vmax.f32 %v3037, 0.0
  %v3086 = vmax.f32 %v3038, 0.0
  %v3087 = vmax.f32 %v3039, 0.0
  %v3088 = vmax.f32 %v3040, 0.0
  %v3089 = vmax.f32 %v3041, 0.0
  %v3090 = vmax.f32 %v3042, 0.0
  %v3091 = vld [vmem:[%s5] sm:$0xff]
  %v3092 = vld [vmem:[%s5 + $0x8] sm:$0xff]
  %v3093 = vld [vmem:[%s5 + $0x10] sm:$0xff]
  %v3094 = vld [vmem:[%s5 + $0x18] sm:$0xff]
  %v3095 = vld [vmem:[%s5 + $0x20] sm:$0xff]
  %v3096 = vld [vmem:[%s5 + $0x28] sm:$0xff]
  %v3097 = vld [vmem:[%s5 + $0x30] sm:$0xff]
  %v3098 = vld [vmem:[%s5 + $0x38] sm:$0xff]
  %v3099 = vld [vmem:[%s5 + $0x40] sm:$0xff]
  %v3100 = vld [vmem:[%s5 + $0x48] sm:$0xff]
  %v3101 = vld [vmem:[%s5 + $0x50] sm:$0xff]
  %v3102 = vld [vmem:[%s5 + $0x58] sm:$0xff]
  %v3103 = vld [vmem:[%s5 + $0x60] sm:$0xff]
  %v3104 = vld [vmem:[%s5 + $0x68] sm:$0xff]
  %v3105 = vld [vmem:[%s5 + $0x70] sm:$0xff]
  %v3106 = vld [vmem:[%s5 + $0x78] sm:$0xff]
  %v3107 = vld [vmem:[%s5 + $0x80] sm:$0xff]
  %v3108 = vld [vmem:[%s5 + $0x88] sm:$0xff]
  %v3109 = vld [vmem:[%s5 + $0x90] sm:$0xff]
  %v3110 = vld [vmem:[%s5 + $0x98] sm:$0xff]
  %v3111 = vld [vmem:[%s5 + $0xa0] sm:$0xff]
  %v3112 = vld [vmem:[%s5 + $0xa8] sm:$0xff]
  %v3113 = vld [vmem:[%s5 + $0xb0] sm:$0xff]
  %v3114 = vld [vmem:[%s5 + $0xb8] sm:$0xff]
  %v3115 = vld [vmem:[%s5 + $0xc0] sm:$0xff]
  %v3116 = vld [vmem:[%s5 + $0xc8] sm:$0xff]
  %v3117 = vld [vmem:[%s5 + $0xd0] sm:$0xff]
  %v3118 = vld [vmem:[%s5 + $0xd8] sm:$0xff]
  %v3119 = vld [vmem:[%s5 + $0xe0] sm:$0xff]
  %v3120 = vld [vmem:[%s5 + $0xe8] sm:$0xff]
  %v3121 = vld [vmem:[%s5 + $0xf0] sm:$0xff]
  %v3122 = vld [vmem:[%s5 + $0xf8] sm:$0xff]
  %v3123 = vld [vmem:[%s5 + $0x100] sm:$0xff]
  %v3124 = vld [vmem:[%s5 + $0x108] sm:$0xff]
  %v3125 = vld [vmem:[%s5 + $0x110] sm:$0xff]
  %v3126 = vld [vmem:[%s5 + $0x118] sm:$0xff]
  %v3127 = vld [vmem:[%s5 + $0x120] sm:$0xff]
  %v3128 = vld [vmem:[%s5 + $0x128] sm:$0xff]
  %v3129 = vld [vmem:[%s5 + $0x130] sm:$0xff]
  %v3130 = vld [vmem:[%s5 + $0x138] sm:$0xff]
  %v3132 = vsel %vm1177, %v3092, 0
  %v3135 = vsel %vm1177, %v3094, 0
  %v3138 = vsel %vm1177, %v3096, 0
  %v3141 = vsel %vm1177, %v3098, 0
  %v3144 = vsel %vm1177, %v3100, 0
  %v3147 = vsel %vm1177, %v3102, 0
  %v3150 = vsel %vm1177, %v3104, 0
  %v3153 = vsel %vm1177, %v3106, 0
  %v3156 = vsel %vm1177, %v3108, 0
  %v3159 = vsel %vm1177, %v3110, 0
  %v3162 = vsel %vm1177, %v3112, 0
  %v3165 = vsel %vm1177, %v3114, 0
  %v3168 = vsel %vm1177, %v3116, 0
  %v3171 = vsel %vm1177, %v3118, 0
  %v3174 = vsel %vm1177, %v3120, 0
  %v3177 = vsel %vm1177, %v3122, 0
  %v3180 = vsel %vm1177, %v3124, 0
  %v3183 = vsel %vm1177, %v3126, 0
  %v3186 = vsel %vm1177, %v3128, 0
  %v3189 = vsel %vm1177, %v3130, 0
  %3191 = vmatprep.subr.mxu0 0.0
  %3192 = vmatpush1.msra.mxu0 %v3043
  %3193 = vmatprep.subr.mxu0 0.0
  %3194 = vmatpush1.msra.mxu0 %v3044
  %3195 = vmatprep.subr.mxu0 0.0
  %3196 = vmatpush1.msra.mxu0 %v3045
  %3197 = vmatprep.subr.mxu0 0.0
  %3198 = vmatpush1.msra.mxu0 %v3046
  %3199 = vmatprep.subr.mxu0 0.0
  %3200 = vmatpush1.msra.mxu0 %v3047
  %3201 = vmatprep.subr.mxu0 0.0
  %3202 = vmatpush1.msra.mxu0 %v3048
  %3203 = vmatprep.subr.mxu0 0.0
  %3204 = vmatpush1.msra.mxu0 %v3049
  %3205 = vmatprep.subr.mxu0 0.0
  %3206 = vmatpush1.msra.mxu0 %v3050
  %3207 = vmatprep.subr.mxu0 0.0
  %3208 = vmatpush1.msra.mxu0 %v3051
  %3209 = vmatprep.subr.mxu0 0.0
  %3210 = vmatpush1.msra.mxu0 %v3052
  %3211 = vmatprep.subr.mxu0 0.0
  %3212 = vmatpush1.msra.mxu0 %v3053
  %3213 = vmatprep.subr.mxu0 0.0
  %3214 = vmatpush1.msra.mxu0 %v3054
  %3215 = vmatprep.subr.mxu0 0.0
  %3216 = vmatpush1.msra.mxu0 %v3055
  %3217 = vmatprep.subr.mxu0 0.0
  %3218 = vmatpush1.msra.mxu0 %v3056
  %3219 = vmatprep.subr.mxu0 0.0
  %3220 = vmatpush1.msra.mxu0 %v3057
  %3221 = vmatprep.subr.mxu0 0.0
  %3222 = vmatpush1.msra.mxu0 %v3058
  %3223 = vmatprep.subr.mxu0 0.0
  %3224 = vmatpush1.msra.mxu0 %v3059
  %3225 = vmatprep.subr.mxu0 0.0
  %3226 = vmatpush1.msra.mxu0 %v3060
  %3227 = vmatprep.subr.mxu0 0.0
  %3228 = vmatpush1.msra.mxu0 %v3061
  %3229 = vmatprep.subr.mxu0 0.0
  %3230 = vmatpush1.msra.mxu0 %v3062
  %3231 = vmatprep.subr.mxu0 0.0
  %3232 = vmatpush1.msra.mxu0 %v3063
  %3233 = vmatprep.subr.mxu0 0.0
  %3234 = vmatpush1.msra.mxu0 %v3064
  %3235 = vmatprep.subr.mxu0 0.0
  %3236 = vmatpush1.msra.mxu0 %v3065
  %3237 = vmatprep.subr.mxu0 0.0
  %3238 = vmatpush1.msra.mxu0 %v3066
  %3239 = vmatprep.subr.mxu0 0.0
  %3240 = vmatpush1.msra.mxu0 0.0
  %3241 = vmatprep.subr.mxu0 0.0
  %3242 = vmatpush1.msra.mxu0 0.0
  %3243 = vmatprep.subr.mxu0 0.0
  %3244 = vmatpush1.msra.mxu0 0.0
  %3245 = vmatprep.subr.mxu0 0.0
  %3246 = vmatpush1.msra.mxu0 0.0
  %3247 = vmatprep.subr.mxu0 0.0
  %3248 = vmatpush1.msra.mxu0 0.0
  %3249 = vmatprep.subr.mxu0 0.0
  %3250 = vmatpush1.msra.mxu0 0.0
  %3251 = vmatprep.subr.mxu0 0.0
  %3252 = vmatpush1.msra.mxu0 0.0
  %3253 = vmatprep.subr.mxu0 0.0
  %3254 = vmatpush1.msra.mxu0 0.0
  %3255 = vmatprep.mubr.f32.mxu0 %v3132
  %3256 = vmatmul.mubr.f32.gmra.mrb[0].mxu0 %v3091
  %v3257 = vpop.f32.mrb[0].mxu0
  %v3258 = vadd.f32 0.0, %v3257
  %v3259 = vpop.f32.mrb[0].mxu0
  %3260 = vmatprep.mubr.f32.mxu0 %v3135
  %3261 = vmatmul.mubr.f32.gmra.mrb[0].mxu0 %v3093
  %v3262 = vpop.f32.mrb[0].mxu0
  %v3263 = vadd.f32 0.0, %v3262
  %v3264 = vpop.f32.mrb[0].mxu0
  %3265 = vmatprep.mubr.f32.mxu0 %v3138
  %3266 = vmatmul.mubr.f32.gmra.mrb[0].mxu0 %v3095
  %v3267 = vpop.f32.mrb[0].mxu0
  %v3268 = vadd.f32 0.0, %v3267
  %v3269 = vpop.f32.mrb[0].mxu0
  %3270 = vmatprep.mubr.f32.mxu0 %v3141
  %3271 = vmatmul.mubr.f32.gmra.mrb[0].mxu0 %v3097
  %v3272 = vpop.f32.mrb[0].mxu0
  %v3273 = vadd.f32 0.0, %v3272
  %v3274 = vpop.f32.mrb[0].mxu0
  %3275 = vmatprep.mubr.f32.mxu0 %v3144
  %3276 = vmatmul.mubr.f32.gmra.mrb[0].mxu0 %v3099
  %v3277 = vpop.f32.mrb[0].mxu0
  %v3278 = vadd.f32 0.0, %v3277
  %v3279 = vpop.f32.mrb[0].mxu0
  %3280 = vmatprep.mubr.f32.mxu0 %v3147
  %3281 = vmatmul.mubr.f32.gmra.mrb[0].mxu0 %v3101
  %v3282 = vpop.f32.mrb[0].mxu0
  %v3283 = vadd.f32 0.0, %v3282
  %v3284 = vpop.f32.mrb[0].mxu0
  %3285 = vmatprep.mubr.f32.mxu0 %v3150
  %3286 = vmatmul.mubr.f32.gmra.mrb[0].mxu0 %v3103
  %v3287 = vpop.f32.mrb[0].mxu0
  %v3288 = vadd.f32 0.0, %v3287
  %v3289 = vpop.f32.mrb[0].mxu0
  %3290 = vmatprep.mubr.f32.mxu0 %v3153
  %3291 = vmatmul.mubr.f32.gmra.mrb[0].mxu0 %v3105
  %v3292 = vpop.f32.mrb[0].mxu0
  %v3293 = vadd.f32 0.0, %v3292
  %v3294 = vpop.f32.mrb[0].mxu0
  %3295 = vmatprep.mubr.f32.mxu0 %v3156
  %3296 = vmatmul.mubr.f32.gmra.mrb[0].mxu0 %v3107
  %v3297 = vpop.f32.mrb[0].mxu0
  %v3298 = vadd.f32 0.0, %v3297
  %v3299 = vpop.f32.mrb[0].mxu0
  %3300 = vmatprep.mubr.f32.mxu0 %v3159
  %3301 = vmatmul.mubr.f32.gmra.mrb[0].mxu0 %v3109
  %v3302 = vpop.f32.mrb[0].mxu0
  %v3303 = vadd.f32 0.0, %v3302
  %v3304 = vpop.f32.mrb[0].mxu0
  %3305 = vmatprep.mubr.f32.mxu0 %v3162
  %3306 = vmatmul.mubr.f32.gmra.mrb[0].mxu0 %v3111
  %v3307 = vpop.f32.mrb[0].mxu0
  %v3308 = vadd.f32 0.0, %v3307
  %v3309 = vpop.f32.mrb[0].mxu0
  %3310 = vmatprep.mubr.f32.mxu0 %v3165
  %3311 = vmatmul.mubr.f32.gmra.mrb[0].mxu0 %v3113
  %v3312 = vpop.f32.mrb[0].mxu0
  %v3313 = vadd.f32 0.0, %v3312
  %v3314 = vpop.f32.mrb[0].mxu0
  %3315 = vmatprep.mubr.f32.mxu0 %v3168
  %3316 = vmatmul.mubr.f32.gmra.mrb[0].mxu0 %v3115
  %v3317 = vpop.f32.mrb[0].mxu0
  %v3318 = vadd.f32 0.0, %v3317
  %v3319 = vpop.f32.mrb[0].mxu0
  %3320 = vmatprep.mubr.f32.mxu0 %v3171
  %3321 = vmatmul.mubr.f32.gmra.mrb[0].mxu0 %v3117
  %v3322 = vpop.f32.mrb[0].mxu0
  %v3323 = vadd.f32 0.0, %v3322
  %v3324 = vpop.f32.mrb[0].mxu0
  %3325 = vmatprep.mubr.f32.mxu0 %v3174
  %3326 = vmatmul.mubr.f32.gmra.mrb[0].mxu0 %v3119
  %v3327 = vpop.f32.mrb[0].mxu0
  %v3328 = vadd.f32 0.0, %v3327
  %v3329 = vpop.f32.mrb[0].mxu0
  %3330 = vmatprep.mubr.f32.mxu0 %v3177
  %3331 = vmatmul.mubr.f32.gmra.mrb[0].mxu0 %v3121
  %v3332 = vpop.f32.mrb[0].mxu0
  %v3333 = vadd.f32 0.0, %v3332
  %v3334 = vpop.f32.mrb[0].mxu0
  %3335 = vmatprep.mubr.f32.mxu0 %v3180
  %3336 = vmatmul.mubr.f32.gmra.mrb[0].mxu0 %v3123
  %v3337 = vpop.f32.mrb[0].mxu0
  %v3338 = vadd.f32 0.0, %v3337
  %v3339 = vpop.f32.mrb[0].mxu0
  %3340 = vmatprep.mubr.f32.mxu0 %v3183
  %3341 = vmatmul.mubr.f32.gmra.mrb[0].mxu0 %v3125
  %v3342 = vpop.f32.mrb[0].mxu0
  %v3343 = vadd.f32 0.0, %v3342
  %v3344 = vpop.f32.mrb[0].mxu0
  %3345 = vmatprep.mubr.f32.mxu0 %v3186
  %3346 = vmatmul.mubr.f32.gmra.mrb[0].mxu0 %v3127
  %v3347 = vpop.f32.mrb[0].mxu0
  %v3348 = vadd.f32 0.0, %v3347
  %v3349 = vpop.f32.mrb[0].mxu0
  %3350 = vmatprep.mubr.f32.mxu0 %v3189
  %3351 = vmatmul.mubr.f32.gmra.mrb[0].mxu0 %v3129
  %v3352 = vpop.f32.mrb[0].mxu0
  %v3353 = vadd.f32 0.0, %v3352
  %v3354 = vpop.f32.mrb[0].mxu0
  %3355 = vdwg.mxu0
  %3356 = vmatprep.subr.mxu0 0.0
  %3357 = vmatpush1.msra.mxu0 %v3067
  %3358 = vmatprep.subr.mxu0 0.0
  %3359 = vmatpush1.msra.mxu0 %v3068
  %3360 = vmatprep.subr.mxu0 0.0
  %3361 = vmatpush1.msra.mxu0 %v3069
  %3362 = vmatprep.subr.mxu0 0.0
  %3363 = vmatpush1.msra.mxu0 %v3070
  %3364 = vmatprep.subr.mxu0 0.0
  %3365 = vmatpush1.msra.mxu0 %v3071
  %3366 = vmatprep.subr.mxu0 0.0
  %3367 = vmatpush1.msra.mxu0 %v3072
  %3368 = vmatprep.subr.mxu0 0.0
  %3369 = vmatpush1.msra.mxu0 %v3073
  %3370 = vmatprep.subr.mxu0 0.0
  %3371 = vmatpush1.msra.mxu0 %v3074
  %3372 = vmatprep.subr.mxu0 0.0
  %3373 = vmatpush1.msra.mxu0 %v3075
  %3374 = vmatprep.subr.mxu0 0.0
  %3375 = vmatpush1.msra.mxu0 %v3076
  %3376 = vmatprep.subr.mxu0 0.0
  %3377 = vmatpush1.msra.mxu0 %v3077
  %3378 = vmatprep.subr.mxu0 0.0
  %3379 = vmatpush1.msra.mxu0 %v3078
  %3380 = vmatprep.subr.mxu0 0.0
  %3381 = vmatpush1.msra.mxu0 %v3079
  %3382 = vmatprep.subr.mxu0 0.0
  %3383 = vmatpush1.msra.mxu0 %v3080
  %3384 = vmatprep.subr.mxu0 0.0
  %3385 = vmatpush1.msra.mxu0 %v3081
  %3386 = vmatprep.subr.mxu0 0.0
  %3387 = vmatpush1.msra.mxu0 %v3082
  %3388 = vmatprep.subr.mxu0 0.0
  %3389 = vmatpush1.msra.mxu0 %v3083
  %3390 = vmatprep.subr.mxu0 0.0
  %3391 = vmatpush1.msra.mxu0 %v3084
  %3392 = vmatprep.subr.mxu0 0.0
  %3393 = vmatpush1.msra.mxu0 %v3085
  %3394 = vmatprep.subr.mxu0 0.0
  %3395 = vmatpush1.msra.mxu0 %v3086
  %3396 = vmatprep.subr.mxu0 0.0
  %3397 = vmatpush1.msra.mxu0 %v3087
  %3398 = vmatprep.subr.mxu0 0.0
  %3399 = vmatpush1.msra.mxu0 %v3088
  %3400 = vmatprep.subr.mxu0 0.0
  %3401 = vmatpush1.msra.mxu0 %v3089
  %3402 = vmatprep.subr.mxu0 0.0
  %3403 = vmatpush1.msra.mxu0 %v3090
  %3404 = vmatprep.subr.mxu0 0.0
  %3405 = vmatpush1.msra.mxu0 0.0
  %3406 = vmatprep.subr.mxu0 0.0
  %3407 = vmatpush1.msra.mxu0 0.0
  %3408 = vmatprep.subr.mxu0 0.0
  %3409 = vmatpush1.msra.mxu0 0.0
  %3410 = vmatprep.subr.mxu0 0.0
  %3411 = vmatpush1.msra.mxu0 0.0
  %3412 = vmatprep.subr.mxu0 0.0
  %3413 = vmatpush1.msra.mxu0 0.0
  %3414 = vmatprep.subr.mxu0 0.0
  %3415 = vmatpush1.msra.mxu0 0.0
  %3416 = vmatprep.subr.mxu0 0.0
  %3417 = vmatpush1.msra.mxu0 0.0
  %3418 = vmatprep.subr.mxu0 0.0
  %3419 = vmatpush1.msra.mxu0 0.0
  %3420 = vmatprep.mubr.f32.mxu0 %v3132
  %3421 = vmatmul.mubr.f32.gmra.mrb[0].mxu0 %v3091
  %v3422 = vpop.f32.mrb[0].mxu0
  %v3423 = vadd.f32 0.0, %v3422
  %v3424 = vpop.f32.mrb[0].mxu0
  %3425 = vmatprep.mubr.f32.mxu0 %v3135
  %3426 = vmatmul.mubr.f32.gmra.mrb[0].mxu0 %v3093
  %v3427 = vpop.f32.mrb[0].mxu0
  %v3428 = vadd.f32 0.0, %v3427
  %v3429 = vpop.f32.mrb[0].mxu0
  %3430 = vmatprep.mubr.f32.mxu0 %v3138
  %3431 = vmatmul.mubr.f32.gmra.mrb[0].mxu0 %v3095
  %v3432 = vpop.f32.mrb[0].mxu0
  %v3433 = vadd.f32 0.0, %v3432
  %v3434 = vpop.f32.mrb[0].mxu0
  %3435 = vmatprep.mubr.f32.mxu0 %v3141
  %3436 = vmatmul.mubr.f32.gmra.mrb[0].mxu0 %v3097
  %v3437 = vpop.f32.mrb[0].mxu0
  %v3438 = vadd.f32 0.0, %v3437
  %v3439 = vpop.f32.mrb[0].mxu0
  %3440 = vmatprep.mubr.f32.mxu0 %v3144
  %3441 = vmatmul.mubr.f32.gmra.mrb[0].mxu0 %v3099
  %v3442 = vpop.f32.mrb[0].mxu0
  %v3443 = vadd.f32 0.0, %v3442
  %v3444 = vpop.f32.mrb[0].mxu0
  %3445 = vmatprep.mubr.f32.mxu0 %v3147
  %3446 = vmatmul.mubr.f32.gmra.mrb[0].mxu0 %v3101
  %v3447 = vpop.f32.mrb[0].mxu0
  %v3448 = vadd.f32 0.0, %v3447
  %v3449 = vpop.f32.mrb[0].mxu0
  %3450 = vmatprep.mubr.f32.mxu0 %v3150
  %3451 = vmatmul.mubr.f32.gmra.mrb[0].mxu0 %v3103
  %v3452 = vpop.f32.mrb[0].mxu0
  %v3453 = vadd.f32 0.0, %v3452
  %v3454 = vpop.f32.mrb[0].mxu0
  %3455 = vmatprep.mubr.f32.mxu0 %v3153
  %3456 = vmatmul.mubr.f32.gmra.mrb[0].mxu0 %v3105
  %v3457 = vpop.f32.mrb[0].mxu0
  %v3458 = vadd.f32 0.0, %v3457
  %v3459 = vpop.f32.mrb[0].mxu0
  %3460 = vmatprep.mubr.f32.mxu0 %v3156
  %3461 = vmatmul.mubr.f32.gmra.mrb[0].mxu0 %v3107
  %v3462 = vpop.f32.mrb[0].mxu0
  %v3463 = vadd.f32 0.0, %v3462
  %v3464 = vpop.f32.mrb[0].mxu0
  %3465 = vmatprep.mubr.f32.mxu0 %v3159
  %3466 = vmatmul.mubr.f32.gmra.mrb[0].mxu0 %v3109
  %v3467 = vpop.f32.mrb[0].mxu0
  %v3468 = vadd.f32 0.0, %v3467
  %v3469 = vpop.f32.mrb[0].mxu0
  %3470 = vmatprep.mubr.f32.mxu0 %v3162
  %3471 = vmatmul.mubr.f32.gmra.mrb[0].mxu0 %v3111
  %v3472 = vpop.f32.mrb[0].mxu0
  %v3473 = vadd.f32 0.0, %v3472
  %v3474 = vpop.f32.mrb[0].mxu0
  %3475 = vmatprep.mubr.f32.mxu0 %v3165
  %3476 = vmatmul.mubr.f32.gmra.mrb[0].mxu0 %v3113
  %v3477 = vpop.f32.mrb[0].mxu0
  %v3478 = vadd.f32 0.0, %v3477
  %v3479 = vpop.f32.mrb[0].mxu0
  %3480 = vmatprep.mubr.f32.mxu0 %v3168
  %3481 = vmatmul.mubr.f32.gmra.mrb[0].mxu0 %v3115
  %v3482 = vpop.f32.mrb[0].mxu0
  %v3483 = vadd.f32 0.0, %v3482
  %v3484 = vpop.f32.mrb[0].mxu0
  %3485 = vmatprep.mubr.f32.mxu0 %v3171
  %3486 = vmatmul.mubr.f32.gmra.mrb[0].mxu0 %v3117
  %v3487 = vpop.f32.mrb[0].mxu0
  %v3488 = vadd.f32 0.0, %v3487
  %v3489 = vpop.f32.mrb[0].mxu0
  %3490 = vmatprep.mubr.f32.mxu0 %v3174
  %3491 = vmatmul.mubr.f32.gmra.mrb[0].mxu0 %v3119
  %v3492 = vpop.f32.mrb[0].mxu0
  %v3493 = vadd.f32 0.0, %v3492
  %v3494 = vpop.f32.mrb[0].mxu0
  %3495 = vmatprep.mubr.f32.mxu0 %v3177
  %3496 = vmatmul.mubr.f32.gmra.mrb[0].mxu0 %v3121
  %v3497 = vpop.f32.mrb[0].mxu0
  %v3498 = vadd.f32 0.0, %v3497
  %v3499 = vpop.f32.mrb[0].mxu0
  %3500 = vmatprep.mubr.f32.mxu0 %v3180
  %3501 = vmatmul.mubr.f32.gmra.mrb[0].mxu0 %v3123
  %v3502 = vpop.f32.mrb[0].mxu0
  %v3503 = vadd.f32 0.0, %v3502
  %v3504 = vpop.f32.mrb[0].mxu0
  %3505 = vmatprep.mubr.f32.mxu0 %v3183
  %3506 = vmatmul.mubr.f32.gmra.mrb[0].mxu0 %v3125
  %v3507 = vpop.f32.mrb[0].mxu0
  %v3508 = vadd.f32 0.0, %v3507
  %v3509 = vpop.f32.mrb[0].mxu0
  %3510 = vmatprep.mubr.f32.mxu0 %v3186
  %3511 = vmatmul.mubr.f32.gmra.mrb[0].mxu0 %v3127
  %v3512 = vpop.f32.mrb[0].mxu0
  %v3513 = vadd.f32 0.0, %v3512
  %v3514 = vpop.f32.mrb[0].mxu0
  %3515 = vmatprep.mubr.f32.mxu0 %v3189
  %3516 = vmatmul.mubr.f32.gmra.mrb[0].mxu0 %v3129
  %v3517 = vpop.f32.mrb[0].mxu0
  %v3518 = vadd.f32 0.0, %v3517
  %v3519 = vpop.f32.mrb[0].mxu0
  %3520 = vdwg.mxu0
  %v3521 = vmax.f32 %v3258, %v3283
  %v3522 = vmax.f32 %v3263, %v3288
  %v3523 = vmax.f32 %v3268, %v3293
  %v3524 = vmax.f32 %v3273, %v3298
  %v3525 = vmax.f32 %v3278, %v3303
  %v3526 = vmax.f32 %v3423, %v3448
  %v3527 = vmax.f32 %v3428, %v3453
  %v3528 = vmax.f32 %v3433, %v3458
  %v3529 = vmax.f32 %v3438, %v3463
  %v3530 = vmax.f32 %v3443, %v3468
  %v3531 = vmax.f32 %v3308, %v3333
  %v3532 = vmax.f32 %v3313, %v3338
  %v3533 = vmax.f32 %v3318, %v3343
  %v3534 = vmax.f32 %v3323, %v3348
  %v3535 = vmax.f32 %v3328, %v3353
  %v3536 = vmax.f32 %v3473, %v3498
  %v3537 = vmax.f32 %v3478, %v3503
  %v3538 = vmax.f32 %v3483, %v3508
  %v3539 = vmax.f32 %v3488, %v3513
  %v3540 = vmax.f32 %v3493, %v3518
  %v3541 = vmax.f32 %v3521, %v3531
  %v3542 = vmax.f32 %v3522, %v3532
  %v3543 = vmax.f32 %v3523, %v3533
  %v3544 = vmax.f32 %v3524, %v3534
  %v3545 = vmax.f32 %v3525, %v3535
  %v3546 = vmax.f32 %v3526, %v3536
  %v3547 = vmax.f32 %v3527, %v3537
  %v3548 = vmax.f32 %v3528, %v3538
  %v3549 = vmax.f32 %v3529, %v3539
  %v3550 = vmax.f32 %v3530, %v3540
  %vm3551 = vcmask 261120
  %3552 = vst.msk [vmem:[%s6] sm:$0xff] %vm3551, %v3541
  %3553 = vst.msk [vmem:[%s6 + $0x8] sm:$0xff] %vm3551, %v3542
  %3554 = vst.msk [vmem:[%s6 + $0x10] sm:$0xff] %vm3551, %v3543
  %3555 = vst.msk [vmem:[%s6 + $0x18] sm:$0xff] %vm3551, %v3544
  %3556 = vst.msk [vmem:[%s6 + $0x20] sm:$0xff] %vm3551, %v3545
  %3557 = vst.msk [vmem:[%s6 + $0x28] sm:$0xff] %vm3551, %v3546
  %3558 = vst.msk [vmem:[%s6 + $0x30] sm:$0xff] %vm3551, %v3547
  %3559 = vst.msk [vmem:[%s6 + $0x38] sm:$0xff] %vm3551, %v3548
  %3560 = vst.msk [vmem:[%s6 + $0x40] sm:$0xff] %vm3551, %v3549
  %3561 = vst.msk [vmem:[%s6 + $0x48] sm:$0xff] %vm3551, %v3550
  // Predicated region
  $region26: #{cnn_adam_forward.2} parent=0 // pred_check
    _
  $region27: #{cnn_adam_forward.2} parent=0 // pred_check_branch
    %3563 = sbr.rel (0) target = $region29
  $region28: #{cnn_adam_forward.2} parent=0 // pred_region
    _
  $region29: #{cnn_adam_forward.2} parent=0 // pred_fallthru
    _
  // Predicated region
  $region30: #{cnn_adam_forward.2} parent=0 // pred_check
    _
  $region31: #{cnn_adam_forward.2} parent=0 // pred_check_branch
    %3565 = sbr.rel (0) target = $region33
  $region32: #{cnn_adam_forward.2} parent=0 // pred_region
    _
  $region33: #{cnn_adam_forward.2} parent=0 // pred_fallthru
    _

</llo_original>
